<compile_context>
chip_gen: v5e
topology: v5e:2x2
jax: 0.10.0
libtpu: 0.0.40
codegen_flags: <defaults>
</compile_context>

<pallas_src>
import math

import jax
import jax.numpy as jnp
from jax.experimental import pallas as pl
from jax.experimental.pallas import tpu as pltpu

EPS = 1e-5                          # PyTorch BatchNorm2d default
_VMEM_LIMIT = 48 * 1024 * 1024      # <= 64 MiB physical on v7x


# -----------------------------------------------------------------------------
# Pass 1: fused 3x3 conv (9 tap matmuls, bf16 x bf16 -> f32 accum) + BN partials
#   x_ref : (H+2, W+2, C)  bf16   (padded input plane, N squeezed)
#   w_ref : (9, C, Co)     bf16   (tap-major weights, VMEM-resident)
#   y_ref : (H*W, Co)      bf16   (raw conv output, halved HBM traffic)
#   s_ref : (2, Co)        f32    (per-image sum / sum-of-squares)
# -----------------------------------------------------------------------------
def _make_conv_stats_kernel(h, w, ci):
    hw = h * w

    def kernel(x_ref, w_ref, y_ref, s_ref):
        co = y_ref.shape[-1]
        acc = jnp.zeros((hw, co), jnp.float32)
        for dy in range(3):
            for dx in range(3):
                # static halo window -> (H, W, C) -> (H*W, C); W is a multiple
                # of the sublane tile so the merge is a relabel, not a copy.
                xt = x_ref[dy:dy + h, dx:dx + w, :].reshape(hw, ci)
                acc = acc + jnp.dot(xt, w_ref[3 * dy + dx],
                                    preferred_element_type=jnp.float32)
        # BN partial statistics from the f32 accumulator (before the bf16 cast).
        s_ref[...] = jnp.concatenate(
            [jnp.sum(acc, axis=0, keepdims=True),
             jnp.sum(acc * acc, axis=0, keepdims=True)], axis=0)
        y_ref[...] = acc.astype(y_ref.dtype)

    return kernel


# -----------------------------------------------------------------------------
# Pass 2: y*scale + shift  [-> ReLU]  [-> + residual]       (VPU-only epilogue)
# -----------------------------------------------------------------------------
def _make_bn_kernel(relu, add_residual):
    if add_residual:
        def kernel(y_ref, sc_ref, sh_ref, r_ref, o_ref):
            y = y_ref[...].astype(jnp.float32) * sc_ref[...] + sh_ref[...]
            if relu:
                y = jnp.maximum(y, 0.0)
            o_ref[...] = (y + r_ref[...]).astype(o_ref.dtype)
    else:
        def kernel(y_ref, sc_ref, sh_ref, o_ref):
            y = y_ref[...].astype(jnp.float32) * sc_ref[...] + sh_ref[...]
            if relu:
                y = jnp.maximum(y, 0.0)
            o_ref[...] = y.astype(o_ref.dtype)
    return kernel


# -----------------------------------------------------------------------------
# pallas_call wrappers
# -----------------------------------------------------------------------------
def _fused_conv_stats(xp, w_taps, h, w):
    """xp: (N, H+2, W+2, Ci) bf16; w_taps: (9, Ci, Co) bf16."""
    n, _, _, ci = xp.shape
    co = w_taps.shape[-1]
    hw = h * w
    y, stats = pl.pallas_call(
        _make_conv_stats_kernel(h, w, ci),
        grid=(n,),
        in_specs=[pl.BlockSpec((None, h + 2, w + 2, ci), lambda i: (i, 0, 0, 0)),
                  pl.BlockSpec((9, ci, co), lambda i: (0, 0, 0))],
        out_specs=(pl.BlockSpec((None, hw, co), lambda i: (i, 0, 0)),
                   pl.BlockSpec((None, 2, co), lambda i: (i, 0, 0))),
        out_shape=(jax.ShapeDtypeStruct((n, hw, co), jnp.bfloat16),
                   jax.ShapeDtypeStruct((n, 2, co), jnp.float32)),
        compiler_params=pltpu.CompilerParams(
            dimension_semantics=("parallel",),
            vmem_limit_bytes=_VMEM_LIMIT),
    )(xp, w_taps)
    return y, stats


def _fold_bn(stats, gamma, beta, m):
    """Tiny global reduction + fold of gamma/beta into scale/shift (plain JAX)."""
    ssum = jnp.sum(stats[:, 0, :], axis=0)
    ssq = jnp.sum(stats[:, 1, :], axis=0)
    mean = ssum / m
    # NOTE: single-pass E[y^2]-E[y]^2 in f32; fine at these scales, clamp guards
    # the pathological case.  (Centered per-tile moments if M/C ever grows.)
    var = jnp.maximum(ssq / m - mean * mean, 0.0)
    rstd = jax.lax.rsqrt(var + EPS)
    scale = (gamma * rstd).astype(jnp.float32)[None, :]
    shift = (beta - mean * gamma * rstd).astype(jnp.float32)[None, :]
    return scale, shift


def _bn_apply(y_raw, scale, shift, *, relu, residual=None, out_dtype=jnp.float32):
    """y_raw: (N, H*W, C) bf16; scale/shift: (1, C) f32; residual: (N, H*W, C) f32."""
    n, hw, c = y_raw.shape
    args = [y_raw, scale, shift]
    in_specs = [pl.BlockSpec((None, hw, c), lambda i: (i, 0, 0)),
                pl.BlockSpec((1, c), lambda i: (0, 0)),
                pl.BlockSpec((1, c), lambda i: (0, 0))]
    if residual is not None:
        args.append(residual)                      # keep the skip path in f32
        in_specs.append(pl.BlockSpec((None, hw, c), lambda i: (i, 0, 0)))

    return pl.pallas_call(
        _make_bn_kernel(relu, residual is not None),
        grid=(n,),
        in_specs=in_specs,
        out_specs=pl.BlockSpec((None, hw, c), lambda i: (i, 0, 0)),
        out_shape=jax.ShapeDtypeStruct((n, hw, c), out_dtype),
        compiler_params=pltpu.CompilerParams(
            dimension_semantics=("parallel",),
            vmem_limit_bytes=_VMEM_LIMIT),
    )(*args)


# -----------------------------------------------------------------------------
# Parameters (mirror the PyTorch ResidualBlock) and forward pass
# -----------------------------------------------------------------------------
def init_residual_block_params(key, features):
    ks = jax.random.split(key, 8)
    std = 1.0 / math.sqrt(features * 9)
    return {
        "w1": std * jax.random.normal(ks[0], (features, features, 3, 3), jnp.float32),
        # conv biases kept for parameter fidelity but unused: training-mode
        # BatchNorm's mean subtraction cancels them exactly.
        "b1": 0.01 * jax.random.normal(ks[1], (features,), jnp.float32),
        "g1": 1.0 + 0.1 * jax.random.normal(ks[2], (features,), jnp.float32),
        "be1": 0.1 * jax.random.normal(ks[3], (features,), jnp.float32),
        "w2": std * jax.random.normal(ks[4], (features, features, 3, 3), jnp.float32),
        "b2": 0.01 * jax.random.normal(ks[5], (features,), jnp.float32),
        "g2": 1.0 + 0.1 * jax.random.normal(ks[6], (features,), jnp.float32),
        "be2": 0.1 * jax.random.normal(ks[7], (features,), jnp.float32),
    }


def _taps(w_oihw):
    """OIHW (Co, Ci, 3, 3) -> (9, Ci, Co) bf16, tap index = 3*dy + dx."""
    return jnp.transpose(w_oihw, (2, 3, 1, 0)).reshape(
        9, w_oihw.shape[1], w_oihw.shape[0]).astype(jnp.bfloat16)


def _pad_spatial(x_nhwc):
    return jnp.pad(x_nhwc.astype(jnp.bfloat16), ((0, 0), (1, 1), (1, 1), (0, 0)))


def residual_block_forward(params, x_nchw):
    x = jnp.transpose(x_nchw, (0, 2, 3, 1))          # NCHW -> NHWC, f32
    n, h, w, c = x.shape
    m = n * h * w

    w1 = _taps(params["w1"])
    w2 = _taps(params["w2"])

    # ---- conv1 + BN1 + ReLU ------------------------------------------------
    y1, s1 = _fused_conv_stats(_pad_spatial(x), w1, h, w)
    sc1, sh1 = _fold_bn(s1, params["g1"], params["be1"], m)
    h1 = _bn_apply(y1, sc1, sh1, relu=True, out_dtype=jnp.bfloat16)  # (N,HW,C)

    # ---- conv2 + BN2 + residual add -----------------------------------------
    y2, s2 = _fused_conv_stats(_pad_spatial(h1.reshape(n, h, w, c)), w2, h, w)
    sc2, sh2 = _fold_bn(s2, params["g2"], params["be2"], m)
    res = x.reshape(n, h * w, c)                     # skip connection stays f32
    out = _bn_apply(y2, sc2, sh2, relu=False, residual=res,
                    out_dtype=jnp.float32)

    return jnp.transpose(out.reshape(n, h, w, c), (0, 3, 1, 2))   # NHWC -> NCHW


# -----------------------------------------------------------------------------
# Pure-JAX reference (f32) for a sanity check
# -----------------------------------------------------------------------------
def _reference_forward(params, x_nchw):
    def conv_bn(x, w, g, b, relu):
        y = jax.lax.conv_general_dilated(
            x, w, window_strides=(1, 1), padding=((1, 1), (1, 1)),
            dimension_numbers=("NCHW", "OIHW", "NCHW"))
        mean = jnp.mean(y, axis=(0, 2, 3), keepdims=True)
        var = jnp.mean(jnp.square(y - mean), axis=(0, 2, 3), keepdims=True)
        y = (y - mean) * jax.lax.rsqrt(var + EPS)
        y = y * g.reshape(1, -1, 1, 1) + b.reshape(1, -1, 1, 1)
        return jnp.maximum(y, 0.0) if relu else y

    h = conv_bn(x_nchw, params["w1"], params["g1"], params["be1"], True)
    y = conv_bn(h, params["w2"], params["g2"], params["be2"], False)
    return x_nchw + y


if __name__ == "__main__":
    N, C, H, W = 2, 128, 16, 16   # features=128 -> lane-dense channel axis
    key = jax.random.PRNGKey(0)
    kx, kp = jax.random.split(key)
    x = jax.random.normal(kx, (N, C, H, W), jnp.float32)
    params = init_residual_block_params(kp, features=C)

    fwd = jax.jit(residual_block_forward)
    y = fwd(params, x)
    jax.block_until_ready(y)

    assert y.shape == (N, C, H, W), y.shape
    assert bool(jnp.all(jnp.isfinite(y)))

    y_ref = _reference_forward(params, x)
    assert bool(jnp.allclose(y, y_ref, atol=1e-1, rtol=5e-2)), (
        float(jnp.max(jnp.abs(y - y_ref))))

    print("KERNEL_OK")
</pallas_src>

<mosaic_0001>
module attributes {stable_mosaic.version = 11 : i64} {
  func.func @kernel(%arg0: i32, %arg1: memref<1x256x128xbf16, #tpu.memory_space<vmem>>, %arg2: memref<1x128xf32, #tpu.memory_space<vmem>>, %arg3: memref<1x128xf32, #tpu.memory_space<vmem>>, %arg4: memref<1x256x128xbf16, #tpu.memory_space<vmem>>) attributes {dimension_semantics = [#tpu.dimension_semantics<parallel>], iteration_bounds = array<i64: 2>, scalar_prefetch = 0 : i64, scratch_operands = 0 : i64, tpu.core_type = #tpu.core_type<tc>, window_params = [{transform_indices = @transform_0, window_bounds = array<i64: 1, 256, 128>}, {pipeline_mode = #tpu.pipeline_mode<synchronous>, transform_indices = @transform_1, window_bounds = array<i64: 1, 128>}, {pipeline_mode = #tpu.pipeline_mode<synchronous>, transform_indices = @transform_2, window_bounds = array<i64: 1, 128>}, {transform_indices = @transform_3, window_bounds = array<i64: 1, 256, 128>}]} {
    %c0 = arith.constant 0 : index
    %c0_0 = arith.constant 0 : index
    %c0_1 = arith.constant 0 : index
    %0 = vector.load %arg1[%c0, %c0_0, %c0_1] : memref<1x256x128xbf16, #tpu.memory_space<vmem>>, vector<1x256x128xbf16>
    %1 = vector.shape_cast %0 : vector<1x256x128xbf16> to vector<256x128xbf16>
    %2 = arith.extf %1 : vector<256x128xbf16> to vector<256x128xf32>
    %c0_2 = arith.constant 0 : index
    %c0_3 = arith.constant 0 : index
    %3 = vector.load %arg2[%c0_2, %c0_3] : memref<1x128xf32, #tpu.memory_space<vmem>>, vector<1x128xf32>
    %4 = vector.broadcast %3 : vector<1x128xf32> to vector<256x128xf32>
    %5 = arith.mulf %2, %4 : vector<256x128xf32>
    %c0_4 = arith.constant 0 : index
    %c0_5 = arith.constant 0 : index
    %6 = vector.load %arg3[%c0_4, %c0_5] : memref<1x128xf32, #tpu.memory_space<vmem>>, vector<1x128xf32>
    %7 = vector.broadcast %6 : vector<1x128xf32> to vector<256x128xf32>
    %8 = arith.addf %5, %7 : vector<256x128xf32>
    %cst = arith.constant 0.000000e+00 : f32
    %9 = vector.broadcast %cst : f32 to vector<256x128xf32>
    %10 = arith.maximumf %8, %9 : vector<256x128xf32>
    %11 = arith.truncf %10 : vector<256x128xf32> to vector<256x128xbf16>
    %c0_6 = arith.constant 0 : index
    %c0_7 = arith.constant 0 : index
    %c0_8 = arith.constant 0 : index
    %12 = vector.load %arg4[%c0_6, %c0_7, %c0_8] : memref<1x256x128xbf16, #tpu.memory_space<vmem>>, vector<1x256x128xbf16>
    %13 = vector.shape_cast %12 : vector<1x256x128xbf16> to vector<256x128xbf16>
    %14 = vector.shape_cast %11 : vector<256x128xbf16> to vector<1x256x128xbf16>
    tpu.vector_store %arg4[%c0_6, %c0_7, %c0_8], %14 {strides = array<i32>} : memref<1x256x128xbf16, #tpu.memory_space<vmem>>, vector<1x256x128xbf16>,
    return
  }
  func.func @transform_0(%arg0: i32) -> (i32, i32, i32) {
    %c0_i32 = arith.constant 0 : i32
    %c0_i32_0 = arith.constant 0 : i32
    %c0_i32_1 = arith.constant 0 : i32
    return %arg0, %c0_i32, %c0_i32_0 : i32, i32, i32
  }
  func.func @transform_1(%arg0: i32) -> (i32, i32) {
    %c0_i32 = arith.constant 0 : i32
    %c0_i32_0 = arith.constant 0 : i32
    %c0_i32_1 = arith.constant 0 : i32
    return %c0_i32, %c0_i32_0 : i32, i32
  }
  func.func @transform_2(%arg0: i32) -> (i32, i32) {
    %c0_i32 = arith.constant 0 : i32
    %c0_i32_0 = arith.constant 0 : i32
    %c0_i32_1 = arith.constant 0 : i32
    return %c0_i32, %c0_i32_0 : i32, i32
  }
  func.func @transform_3(%arg0: i32) -> (i32, i32, i32) {
    %c0_i32 = arith.constant 0 : i32
    %c0_i32_0 = arith.constant 0 : i32
    %c0_i32_1 = arith.constant 0 : i32
    return %arg0, %c0_i32, %c0_i32_0 : i32, i32, i32
  }
}

module attributes {stable_mosaic.version = 11 : i64} {
  func.func @kernel(%arg0: i32, %arg1: memref<1x256x128xbf16, #tpu.memory_space<vmem>>, %arg2: memref<1x128xf32, #tpu.memory_space<vmem>>, %arg3: memref<1x128xf32, #tpu.memory_space<vmem>>, %arg4: memref<1x256x128xf32, #tpu.memory_space<vmem>>, %arg5: memref<1x256x128xf32, #tpu.memory_space<vmem>>) attributes {dimension_semantics = [#tpu.dimension_semantics<parallel>], iteration_bounds = array<i64: 2>, scalar_prefetch = 0 : i64, scratch_operands = 0 : i64, tpu.core_type = #tpu.core_type<tc>, window_params = [{transform_indices = @transform_0, window_bounds = array<i64: 1, 256, 128>}, {pipeline_mode = #tpu.pipeline_mode<synchronous>, transform_indices = @transform_1, window_bounds = array<i64: 1, 128>}, {pipeline_mode = #tpu.pipeline_mode<synchronous>, transform_indices = @transform_2, window_bounds = array<i64: 1, 128>}, {transform_indices = @transform_3, window_bounds = array<i64: 1, 256, 128>}, {transform_indices = @transform_4, window_bounds = array<i64: 1, 256, 128>}]} {
    %c0 = arith.constant 0 : index
    %c0_0 = arith.constant 0 : index
    %c0_1 = arith.constant 0 : index
    %0 = vector.load %arg1[%c0, %c0_0, %c0_1] : memref<1x256x128xbf16, #tpu.memory_space<vmem>>, vector<1x256x128xbf16>
    %1 = vector.shape_cast %0 : vector<1x256x128xbf16> to vector<256x128xbf16>
    %2 = arith.extf %1 : vector<256x128xbf16> to vector<256x128xf32>
    %c0_2 = arith.constant 0 : index
    %c0_3 = arith.constant 0 : index
    %3 = vector.load %arg2[%c0_2, %c0_3] : memref<1x128xf32, #tpu.memory_space<vmem>>, vector<1x128xf32>
    %4 = vector.broadcast %3 : vector<1x128xf32> to vector<256x128xf32>
    %5 = arith.mulf %2, %4 : vector<256x128xf32>
    %c0_4 = arith.constant 0 : index
    %c0_5 = arith.constant 0 : index
    %6 = vector.load %arg3[%c0_4, %c0_5] : memref<1x128xf32, #tpu.memory_space<vmem>>, vector<1x128xf32>
    %7 = vector.broadcast %6 : vector<1x128xf32> to vector<256x128xf32>
    %8 = arith.addf %5, %7 : vector<256x128xf32>
    %c0_6 = arith.constant 0 : index
    %c0_7 = arith.constant 0 : index
    %c0_8 = arith.constant 0 : index
    %9 = vector.load %arg4[%c0_6, %c0_7, %c0_8] : memref<1x256x128xf32, #tpu.memory_space<vmem>>, vector<1x256x128xf32>
    %10 = vector.shape_cast %9 : vector<1x256x128xf32> to vector<256x128xf32>
    %11 = arith.addf %8, %10 : vector<256x128xf32>
    %c0_9 = arith.constant 0 : index
    %c0_10 = arith.constant 0 : index
    %c0_11 = arith.constant 0 : index
    %12 = vector.load %arg5[%c0_9, %c0_10, %c0_11] : memref<1x256x128xf32, #tpu.memory_space<vmem>>, vector<1x256x128xf32>
    %13 = vector.shape_cast %12 : vector<1x256x128xf32> to vector<256x128xf32>
    %14 = vector.shape_cast %11 : vector<256x128xf32> to vector<1x256x128xf32>
    tpu.vector_store %arg5[%c0_9, %c0_10, %c0_11], %14 {strides = array<i32>} : memref<1x256x128xf32, #tpu.memory_space<vmem>>, vector<1x256x128xf32>,
    return
  }
  func.func @transform_0(%arg0: i32) -> (i32, i32, i32) {
    %c0_i32 = arith.constant 0 : i32
    %c0_i32_0 = arith.constant 0 : i32
    %c0_i32_1 = arith.constant 0 : i32
    return %arg0, %c0_i32, %c0_i32_0 : i32, i32, i32
  }
  func.func @transform_1(%arg0: i32) -> (i32, i32) {
    %c0_i32 = arith.constant 0 : i32
    %c0_i32_0 = arith.constant 0 : i32
    %c0_i32_1 = arith.constant 0 : i32
    return %c0_i32, %c0_i32_0 : i32, i32
  }
  func.func @transform_2(%arg0: i32) -> (i32, i32) {
    %c0_i32 = arith.constant 0 : i32
    %c0_i32_0 = arith.constant 0 : i32
    %c0_i32_1 = arith.constant 0 : i32
    return %c0_i32, %c0_i32_0 : i32, i32
  }
  func.func @transform_3(%arg0: i32) -> (i32, i32, i32) {
    %c0_i32 = arith.constant 0 : i32
    %c0_i32_0 = arith.constant 0 : i32
    %c0_i32_1 = arith.constant 0 : i32
    return %arg0, %c0_i32, %c0_i32_0 : i32, i32, i32
  }
  func.func @transform_4(%arg0: i32) -> (i32, i32, i32) {
    %c0_i32 = arith.constant 0 : i32
    %c0_i32_0 = arith.constant 0 : i32
    %c0_i32_1 = arith.constant 0 : i32
    return %arg0, %c0_i32, %c0_i32_0 : i32, i32, i32
  }
}

module attributes {stable_mosaic.version = 11 : i64} {
  func.func @kernel(%arg0: i32, %arg1: memref<1x18x18x128xbf16, #tpu.memory_space<vmem>>, %arg2: memref<9x128x128xbf16, #tpu.memory_space<vmem>>, %arg3: memref<1x256x128xbf16, #tpu.memory_space<vmem>>, %arg4: memref<1x2x128xf32, #tpu.memory_space<vmem>>) attributes {dimension_semantics = [#tpu.dimension_semantics<parallel>], iteration_bounds = array<i64: 2>, scalar_prefetch = 0 : i64, scratch_operands = 0 : i64, tpu.core_type = #tpu.core_type<tc>, window_params = [{transform_indices = @transform_0, window_bounds = array<i64: 1, 18, 18, 128>}, {pipeline_mode = #tpu.pipeline_mode<synchronous>, transform_indices = @transform_1, window_bounds = array<i64: 9, 128, 128>}, {transform_indices = @transform_2, window_bounds = array<i64: 1, 256, 128>}, {transform_indices = @transform_3, window_bounds = array<i64: 1, 2, 128>}]} {
    %cst = arith.constant 0.000000e+00 : f32
    %0 = vector.broadcast %cst : f32 to vector<256x128xf32>
    %c0 = arith.constant 0 : index
    %c0_0 = arith.constant 0 : index
    %c0_1 = arith.constant 0 : index
    %c0_2 = arith.constant 0 : index
    %1 = vector.load %arg1[%c0, %c0_0, %c0_1, %c0_2] : memref<1x18x18x128xbf16, #tpu.memory_space<vmem>>, vector<1x16x16x128xbf16>
    %2 = vector.shape_cast %1 : vector<1x16x16x128xbf16> to vector<16x16x128xbf16>
    %3 = vector.shape_cast %2 : vector<16x16x128xbf16> to vector<256x128xbf16>
    %c0_3 = arith.constant 0 : index
    %c0_4 = arith.constant 0 : index
    %c0_5 = arith.constant 0 : index
    %4 = vector.load %arg2[%c0_3, %c0_4, %c0_5] : memref<9x128x128xbf16, #tpu.memory_space<vmem>>, vector<1x128x128xbf16>
    %5 = vector.shape_cast %4 : vector<1x128x128xbf16> to vector<128x128xbf16>
    %cst_6 = arith.constant dense<0.000000e+00> : vector<256x128xf32>
    %6 = tpu.matmul %3, %5, %cst_6 {dimension_numbers = #tpu.dot_dimension_numbers<[1], [0], [0], [1], [0, 0, 1, 1], [], []>} : vector<256x128xbf16>, vector<128x128xbf16>, vector<256x128xf32> -> vector<256x128xf32>
    %7 = arith.addf %0, %6 : vector<256x128xf32>
    %c0_7 = arith.constant 0 : index
    %c0_8 = arith.constant 0 : index
    %c1 = arith.constant 1 : index
    %c0_9 = arith.constant 0 : index
    %8 = vector.load %arg1[%c0_7, %c0_8, %c1, %c0_9] : memref<1x18x18x128xbf16, #tpu.memory_space<vmem>>, vector<1x16x16x128xbf16>
    %9 = vector.shape_cast %8 : vector<1x16x16x128xbf16> to vector<16x16x128xbf16>
    %10 = vector.shape_cast %9 : vector<16x16x128xbf16> to vector<256x128xbf16>
    %c1_10 = arith.constant 1 : index
    %c0_11 = arith.constant 0 : index
    %c0_12 = arith.constant 0 : index
    %11 = vector.load %arg2[%c1_10, %c0_11, %c0_12] : memref<9x128x128xbf16, #tpu.memory_space<vmem>>, vector<1x128x128xbf16>
    %12 = vector.shape_cast %11 : vector<1x128x128xbf16> to vector<128x128xbf16>
    %cst_13 = arith.constant dense<0.000000e+00> : vector<256x128xf32>
    %13 = tpu.matmul %10, %12, %cst_13 {dimension_numbers = #tpu.dot_dimension_numbers<[1], [0], [0], [1], [0, 0, 1, 1], [], []>} : vector<256x128xbf16>, vector<128x128xbf16>, vector<256x128xf32> -> vector<256x128xf32>
    %14 = arith.addf %7, %13 : vector<256x128xf32>
    %c0_14 = arith.constant 0 : index
    %c0_15 = arith.constant 0 : index
    %c2 = arith.constant 2 : index
    %c0_16 = arith.constant 0 : index
    %15 = vector.load %arg1[%c0_14, %c0_15, %c2, %c0_16] : memref<1x18x18x128xbf16, #tpu.memory_space<vmem>>, vector<1x16x16x128xbf16>
    %16 = vector.shape_cast %15 : vector<1x16x16x128xbf16> to vector<16x16x128xbf16>
    %17 = vector.shape_cast %16 : vector<16x16x128xbf16> to vector<256x128xbf16>
    %c2_17 = arith.constant 2 : index
    %c0_18 = arith.constant 0 : index
    %c0_19 = arith.constant 0 : index
    %18 = vector.load %arg2[%c2_17, %c0_18, %c0_19] : memref<9x128x128xbf16, #tpu.memory_space<vmem>>, vector<1x128x128xbf16>
    %19 = vector.shape_cast %18 : vector<1x128x128xbf16> to vector<128x128xbf16>
    %cst_20 = arith.constant dense<0.000000e+00> : vector<256x128xf32>
    %20 = tpu.matmul %17, %19, %cst_20 {dimension_numbers = #tpu.dot_dimension_numbers<[1], [0], [0], [1], [0, 0, 1, 1], [], []>} : vector<256x128xbf16>, vector<128x128xbf16>, vector<256x128xf32> -> vector<256x128xf32>
    %21 = arith.addf %14, %20 : vector<256x128xf32>
    %c0_21 = arith.constant 0 : index
    %c1_22 = arith.constant 1 : index
    %c0_23 = arith.constant 0 : index
    %c0_24 = arith.constant 0 : index
    %22 = vector.load %arg1[%c0_21, %c1_22, %c0_23, %c0_24] : memref<1x18x18x128xbf16, #tpu.memory_space<vmem>>, vector<1x16x16x128xbf16>
    %23 = vector.shape_cast %22 : vector<1x16x16x128xbf16> to vector<16x16x128xbf16>
    %24 = vector.shape_cast %23 : vector<16x16x128xbf16> to vector<256x128xbf16>
    %c3 = arith.constant 3 : index
    %c0_25 = arith.constant 0 : index
    %c0_26 = arith.constant 0 : index
    %25 = vector.load %arg2[%c3, %c0_25, %c0_26] : memref<9x128x128xbf16, #tpu.memory_space<vmem>>, vector<1x128x128xbf16>
    %26 = vector.shape_cast %25 : vector<1x128x128xbf16> to vector<128x128xbf16>
    %cst_27 = arith.constant dense<0.000000e+00> : vector<256x128xf32>
    %27 = tpu.matmul %24, %26, %cst_27 {dimension_numbers = #tpu.dot_dimension_numbers<[1], [0], [0], [1], [0, 0, 1, 1], [], []>} : vector<256x128xbf16>, vector<128x128xbf16>, vector<256x128xf32> -> vector<256x128xf32>
    %28 = arith.addf %21, %27 : vector<256x128xf32>
    %c0_28 = arith.constant 0 : index
    %c1_29 = arith.constant 1 : index
    %c1_30 = arith.constant 1 : index
    %c0_31 = arith.constant 0 : index
    %29 = vector.load %arg1[%c0_28, %c1_29, %c1_30, %c0_31] : memref<1x18x18x128xbf16, #tpu.memory_space<vmem>>, vector<1x16x16x128xbf16>
    %30 = vector.shape_cast %29 : vector<1x16x16x128xbf16> to vector<16x16x128xbf16>
    %31 = vector.shape_cast %30 : vector<16x16x128xbf16> to vector<256x128xbf16>
    %c4 = arith.constant 4 : index
    %c0_32 = arith.constant 0 : index
    %c0_33 = arith.constant 0 : index
    %32 = vector.load %arg2[%c4, %c0_32, %c0_33] : memref<9x128x128xbf16, #tpu.memory_space<vmem>>, vector<1x128x128xbf16>
    %33 = vector.shape_cast %32 : vector<1x128x128xbf16> to vector<128x128xbf16>
    %cst_34 = arith.constant dense<0.000000e+00> : vector<256x128xf32>
    %34 = tpu.matmul %31, %33, %cst_34 {dimension_numbers = #tpu.dot_dimension_numbers<[1], [0], [0], [1], [0, 0, 1, 1], [], []>} : vector<256x128xbf16>, vector<128x128xbf16>, vector<256x128xf32> -> vector<256x128xf32>
    %35 = arith.addf %28, %34 : vector<256x128xf32>
    %c0_35 = arith.constant 0 : index
    %c1_36 = arith.constant 1 : index
    %c2_37 = arith.constant 2 : index
    %c0_38 = arith.constant 0 : index
    %36 = vector.load %arg1[%c0_35, %c1_36, %c2_37, %c0_38] : memref<1x18x18x128xbf16, #tpu.memory_space<vmem>>, vector<1x16x16x128xbf16>
    %37 = vector.shape_cast %36 : vector<1x16x16x128xbf16> to vector<16x16x128xbf16>
    %38 = vector.shape_cast %37 : vector<16x16x128xbf16> to vector<256x128xbf16>
    %c5 = arith.constant 5 : index
    %c0_39 = arith.constant 0 : index
    %c0_40 = arith.constant 0 : index
    %39 = vector.load %arg2[%c5, %c0_39, %c0_40] : memref<9x128x128xbf16, #tpu.memory_space<vmem>>, vector<1x128x128xbf16>
    %40 = vector.shape_cast %39 : vector<1x128x128xbf16> to vector<128x128xbf16>
    %cst_41 = arith.constant dense<0.000000e+00> : vector<256x128xf32>
    %41 = tpu.matmul %38, %40, %cst_41 {dimension_numbers = #tpu.dot_dimension_numbers<[1], [0], [0], [1], [0, 0, 1, 1], [], []>} : vector<256x128xbf16>, vector<128x128xbf16>, vector<256x128xf32> -> vector<256x128xf32>
    %42 = arith.addf %35, %41 : vector<256x128xf32>
    %c0_42 = arith.constant 0 : index
    %c2_43 = arith.constant 2 : index
    %c0_44 = arith.constant 0 : index
    %c0_45 = arith.constant 0 : index
    %43 = vector.load %arg1[%c0_42, %c2_43, %c0_44, %c0_45] : memref<1x18x18x128xbf16, #tpu.memory_space<vmem>>, vector<1x16x16x128xbf16>
    %44 = vector.shape_cast %43 : vector<1x16x16x128xbf16> to vector<16x16x128xbf16>
    %45 = vector.shape_cast %44 : vector<16x16x128xbf16> to vector<256x128xbf16>
    %c6 = arith.constant 6 : index
    %c0_46 = arith.constant 0 : index
    %c0_47 = arith.constant 0 : index
    %46 = vector.load %arg2[%c6, %c0_46, %c0_47] : memref<9x128x128xbf16, #tpu.memory_space<vmem>>, vector<1x128x128xbf16>
    %47 = vector.shape_cast %46 : vector<1x128x128xbf16> to vector<128x128xbf16>
    %cst_48 = arith.constant dense<0.000000e+00> : vector<256x128xf32>
    %48 = tpu.matmul %45, %47, %cst_48 {dimension_numbers = #tpu.dot_dimension_numbers<[1], [0], [0], [1], [0, 0, 1, 1], [], []>} : vector<256x128xbf16>, vector<128x128xbf16>, vector<256x128xf32> -> vector<256x128xf32>
    %49 = arith.addf %42, %48 : vector<256x128xf32>
    %c0_49 = arith.constant 0 : index
    %c2_50 = arith.constant 2 : index
    %c1_51 = arith.constant 1 : index
    %c0_52 = arith.constant 0 : index
    %50 = vector.load %arg1[%c0_49, %c2_50, %c1_51, %c0_52] : memref<1x18x18x128xbf16, #tpu.memory_space<vmem>>, vector<1x16x16x128xbf16>
    %51 = vector.shape_cast %50 : vector<1x16x16x128xbf16> to vector<16x16x128xbf16>
    %52 = vector.shape_cast %51 : vector<16x16x128xbf16> to vector<256x128xbf16>
    %c7 = arith.constant 7 : index
    %c0_53 = arith.constant 0 : index
    %c0_54 = arith.constant 0 : index
    %53 = vector.load %arg2[%c7, %c0_53, %c0_54] : memref<9x128x128xbf16, #tpu.memory_space<vmem>>, vector<1x128x128xbf16>
    %54 = vector.shape_cast %53 : vector<1x128x128xbf16> to vector<128x128xbf16>
    %cst_55 = arith.constant dense<0.000000e+00> : vector<256x128xf32>
    %55 = tpu.matmul %52, %54, %cst_55 {dimension_numbers = #tpu.dot_dimension_numbers<[1], [0], [0], [1], [0, 0, 1, 1], [], []>} : vector<256x128xbf16>, vector<128x128xbf16>, vector<256x128xf32> -> vector<256x128xf32>
    %56 = arith.addf %49, %55 : vector<256x128xf32>
    %c0_56 = arith.constant 0 : index
    %c2_57 = arith.constant 2 : index
    %c2_58 = arith.constant 2 : index
    %c0_59 = arith.constant 0 : index
    %57 = vector.load %arg1[%c0_56, %c2_57, %c2_58, %c0_59] : memref<1x18x18x128xbf16, #tpu.memory_space<vmem>>, vector<1x16x16x128xbf16>
    %58 = vector.shape_cast %57 : vector<1x16x16x128xbf16> to vector<16x16x128xbf16>
    %59 = vector.shape_cast %58 : vector<16x16x128xbf16> to vector<256x128xbf16>
    %c8 = arith.constant 8 : index
    %c0_60 = arith.constant 0 : index
    %c0_61 = arith.constant 0 : index
    %60 = vector.load %arg2[%c8, %c0_60, %c0_61] : memref<9x128x128xbf16, #tpu.memory_space<vmem>>, vector<1x128x128xbf16>
    %61 = vector.shape_cast %60 : vector<1x128x128xbf16> to vector<128x128xbf16>
    %cst_62 = arith.constant dense<0.000000e+00> : vector<256x128xf32>
    %62 = tpu.matmul %59, %61, %cst_62 {dimension_numbers = #tpu.dot_dimension_numbers<[1], [0], [0], [1], [0, 0, 1, 1], [], []>} : vector<256x128xbf16>, vector<128x128xbf16>, vector<256x128xf32> -> vector<256x128xf32>
    %63 = arith.addf %56, %62 : vector<256x128xf32>
    %cst_63 = arith.constant dense<0.000000e+00> : vector<128xf32>
    %64 = vector.multi_reduction <add>, %63, %cst_63 [0] : vector<256x128xf32> to vector<128xf32>
    %65 = vector.shape_cast %64 : vector<128xf32> to vector<1x128xf32>
    %66 = arith.mulf %63, %63 : vector<256x128xf32>
    %cst_64 = arith.constant dense<0.000000e+00> : vector<128xf32>
    %67 = vector.multi_reduction <add>, %66, %cst_64 [0] : vector<256x128xf32> to vector<128xf32>
    %68 = vector.shape_cast %67 : vector<128xf32> to vector<1x128xf32>
    %69 = tpu.concatenate %65, %68 in 0 : vector<1x128xf32>, vector<1x128xf32> -> vector<2x128xf32>
    %c0_65 = arith.constant 0 : index
    %c0_66 = arith.constant 0 : index
    %c0_67 = arith.constant 0 : index
    %70 = vector.load %arg4[%c0_65, %c0_66, %c0_67] : memref<1x2x128xf32, #tpu.memory_space<vmem>>, vector<1x2x128xf32>
    %71 = vector.shape_cast %70 : vector<1x2x128xf32> to vector<2x128xf32>
    %72 = vector.shape_cast %69 : vector<2x128xf32> to vector<1x2x128xf32>
    tpu.vector_store %arg4[%c0_65, %c0_66, %c0_67], %72 {strides = array<i32>} : memref<1x2x128xf32, #tpu.memory_space<vmem>>, vector<1x2x128xf32>,
    %73 = arith.truncf %63 : vector<256x128xf32> to vector<256x128xbf16>
    %c0_68 = arith.constant 0 : index
    %c0_69 = arith.constant 0 : index
    %c0_70 = arith.constant 0 : index
    %74 = vector.load %arg3[%c0_68, %c0_69, %c0_70] : memref<1x256x128xbf16, #tpu.memory_space<vmem>>, vector<1x256x128xbf16>
    %75 = vector.shape_cast %74 : vector<1x256x128xbf16> to vector<256x128xbf16>
    %76 = vector.shape_cast %73 : vector<256x128xbf16> to vector<1x256x128xbf16>
    tpu.vector_store %arg3[%c0_68, %c0_69, %c0_70], %76 {strides = array<i32>} : memref<1x256x128xbf16, #tpu.memory_space<vmem>>, vector<1x256x128xbf16>,
    return
  }
  func.func @transform_0(%arg0: i32) -> (i32, i32, i32, i32) {
    %c0_i32 = arith.constant 0 : i32
    %c0_i32_0 = arith.constant 0 : i32
    %c0_i32_1 = arith.constant 0 : i32
    %c0_i32_2 = arith.constant 0 : i32
    return %arg0, %c0_i32, %c0_i32_0, %c0_i32_1 : i32, i32, i32, i32
  }
  func.func @transform_1(%arg0: i32) -> (i32, i32, i32) {
    %c0_i32 = arith.constant 0 : i32
    %c0_i32_0 = arith.constant 0 : i32
    %c0_i32_1 = arith.constant 0 : i32
    %c0_i32_2 = arith.constant 0 : i32
    return %c0_i32, %c0_i32_0, %c0_i32_1 : i32, i32, i32
  }
  func.func @transform_2(%arg0: i32) -> (i32, i32, i32) {
    %c0_i32 = arith.constant 0 : i32
    %c0_i32_0 = arith.constant 0 : i32
    %c0_i32_1 = arith.constant 0 : i32
    return %arg0, %c0_i32, %c0_i32_0 : i32, i32, i32
  }
  func.func @transform_3(%arg0: i32) -> (i32, i32, i32) {
    %c0_i32 = arith.constant 0 : i32
    %c0_i32_0 = arith.constant 0 : i32
    %c0_i32_1 = arith.constant 0 : i32
    return %arg0, %c0_i32, %c0_i32_0 : i32, i32, i32
  }
}

</mosaic_0001>

<llo_original>
// kernel: residual_block_forward.5
$region0: #{residual_block_forward.5}
  #allocation0 [shape = 'u32[]', space=smem, size = 0x4, offset = 0x4, fixed_abs, tag = 'smem constant byte address 0x4 - core index']
  #allocation1 [shape = 'u32[72,128]{1,0:T(1,128)}', space=vmem, size = 0x9000, scoped, tag = 'internal scratch']
  %s0 = inlined_call_operand.vmem [shape: bf16[2,256,128], index: 0, kind: input, shape index: {}]
  %s1 = inlined_call_operand.vmem [shape: f32[1,128], index: 1, kind: input, shape index: {}]
  %s2 = inlined_call_operand.vmem [shape: f32[1,128], index: 2, kind: input, shape index: {}]
  %s3 = inlined_call_operand.vmem [shape: bf16[2,256,128], index: 3, kind: output, shape index: {}]
  %s4 = sld [smem:[#allocation0]]
  $region45: #{residual_block_forward.5} parent=0
    _
  %s6 = ssub.s32 1, %s4
  %s7 = scalar_select 0, %s6, %s4
  loop: start=0, step=1, limit=4
  $region2: #{residual_block_forward.5} parent=0 // loop_pre_header
    _
  $region3: #{residual_block_forward.5} parent=0 // loop_header
    %s9 = sphi 0, %s13
    %p10 = scmp.ge.s32.totalorder %s9, 4
    %s19 = sphi 0, %s21
    %s22 = sphi 0, %s19
    %s23 = sphi 0, %s22
    %s39 = sphi 0, %s23
    %s43 = sphi 0, %s43
    %s45 = sphi 0, %s43
    %s46 = sphi 0, %s45
    %s60 = sphi 0, %s46
    %s64 = sphi 0, %s64
    %s66 = sphi 0, %s64
    %s67 = sphi 0, %s66
    %s81 = sphi 0, %s67
    %s87 = sphi 0, %s89
    %s90 = sphi 0, %s87
    %s91 = sphi 0, %s90
    %s107 = sphi 0, %s91
  $region4: #{residual_block_forward.5} parent=0 // loop_header_branch
    %12 = sbr.rel (%p10) target = $region8
  $region5: #{residual_block_forward.5} parent=0 // loop_body
    %s14 = ssub.s32 %s9, 1
    %s15 = ssub.s32 %s9, 2
    %s16 = sadd.s32 %s9, 1
    %s17 = ssub.s32 %s9, %s16
    %p18 = scmp.eq.s32.totalorder %s17, 0
    %s20 = sadd.s32 %s19, 1
    %s21 = scalar_select %p18, %s19, %s20
    %p24 = pneg %p18
    %p25 = scmp.eq.s32.totalorder %s9, 1
    %p26 = por %p24, %p25
    %p27 = scmp.ne.s32.totalorder %s19, %s22
    %p28 = scmp.eq.s32.totalorder %s9, 0
    %p29 = por %p27, %p28
    %p30 = scmp.ne.s32.totalorder %s19, %s22
    %p31 = scmp.eq.s32.totalorder %s14, 1
    %p32 = por %p30, %p31
    %p33 = scmp.ne.s32.totalorder %s22, %s23
    %p34 = scmp.eq.s32.totalorder %s14, 0
    %p35 = por %p33, %p34
    %p36 = scmp.ne.s32.totalorder %s22, %s23
    %p37 = scmp.eq.s32.totalorder %s15, 1
    %p38 = por %p36, %p37
    %p40 = scmp.ne.s32.totalorder %s23, %s39
    %p41 = scmp.eq.s32.totalorder %s15, 0
    %p42 = por %p40, %p41
    %s44 = sadd.s32 %s43, 1
    %p47 = scmp.eq.s32.totalorder %s9, 1
    %p48 = scmp.ne.s32.totalorder %s43, %s45
    %p49 = scmp.eq.s32.totalorder %s9, 0
    %p50 = por %p48, %p49
    %p51 = scmp.ne.s32.totalorder %s43, %s45
    %p52 = scmp.eq.s32.totalorder %s14, 1
    %p53 = por %p51, %p52
    %p54 = scmp.ne.s32.totalorder %s45, %s46
    %p55 = scmp.eq.s32.totalorder %s14, 0
    %p56 = por %p54, %p55
    %p57 = scmp.ne.s32.totalorder %s45, %s46
    %p58 = scmp.eq.s32.totalorder %s15, 1
    %p59 = por %p57, %p58
    %p61 = scmp.ne.s32.totalorder %s46, %s60
    %p62 = scmp.eq.s32.totalorder %s15, 0
    %p63 = por %p61, %p62
    %s65 = sadd.s32 %s64, 1
    %p68 = scmp.eq.s32.totalorder %s9, 1
    %p69 = scmp.ne.s32.totalorder %s64, %s66
    %p70 = scmp.eq.s32.totalorder %s9, 0
    %p71 = por %p69, %p70
    %p72 = scmp.ne.s32.totalorder %s64, %s66
    %p73 = scmp.eq.s32.totalorder %s14, 1
    %p74 = por %p72, %p73
    %p75 = scmp.ne.s32.totalorder %s66, %s67
    %p76 = scmp.eq.s32.totalorder %s14, 0
    %p77 = por %p75, %p76
    %p78 = scmp.ne.s32.totalorder %s66, %s67
    %p79 = scmp.eq.s32.totalorder %s15, 1
    %p80 = por %p78, %p79
    %p82 = scmp.ne.s32.totalorder %s67, %s81
    %p83 = scmp.eq.s32.totalorder %s15, 0
    %p84 = por %p82, %p83
    %s85 = ssub.s32 %s9, %s16
    %p86 = scmp.eq.s32.totalorder %s85, 0
    %s88 = sadd.s32 %s87, 1
    %s89 = scalar_select %p86, %s87, %s88
    %p92 = pneg %p86
    %p93 = scmp.eq.s32.totalorder %s9, 1
    %p94 = por %p92, %p93
    %p95 = scmp.ne.s32.totalorder %s87, %s90
    %p96 = scmp.eq.s32.totalorder %s9, 0
    %p97 = por %p95, %p96
    %p98 = scmp.ne.s32.totalorder %s87, %s90
    %p99 = scmp.eq.s32.totalorder %s14, 1
    %p100 = por %p98, %p99
    %p101 = scmp.ne.s32.totalorder %s90, %s91
    %p102 = scmp.eq.s32.totalorder %s14, 0
    %p103 = por %p101, %p102
    %p104 = scmp.ne.s32.totalorder %s90, %s91
    %p105 = scmp.eq.s32.totalorder %s15, 1
    %p106 = por %p104, %p105
    %p108 = scmp.ne.s32.totalorder %s91, %s107
    %p109 = scmp.eq.s32.totalorder %s15, 0
    %p110 = por %p108, %p109
    %p111 = scmp.le.s32.totalorder 1, %s9
    %p112 = scmp.lt.s32.totalorder %s9, 3
    %p113 = pnand %p111, %p112
    %p114 = pneg %p113
    // Predicated region
    $region9: #{residual_block_forward.5} parent=5 // pred_check
      _
    $region10: #{residual_block_forward.5} parent=5 // pred_check_branch
      %116 = sbr.rel (%p113) target = $region12
    $region11: #{residual_block_forward.5} parent=5 // pred_region
      %s117 = ssub.s32 %s9, 1
      // Predicated region
      $region13: #{residual_block_forward.5} parent=11 // pred_check
        %p118 = pneg %p56
      $region14: #{residual_block_forward.5} parent=11 // pred_check_branch
        %120 = sbr.rel (%p118) target = $region16
      $region15: #{residual_block_forward.5} parent=11 // pred_region
        _
      $region16: #{residual_block_forward.5} parent=11 // pred_fallthru
        _
      // Predicated region
      $region17: #{residual_block_forward.5} parent=11 // pred_check
        %p121 = pneg %p77
      $region18: #{residual_block_forward.5} parent=11 // pred_check_branch
        %123 = sbr.rel (%p121) target = $region20
      $region19: #{residual_block_forward.5} parent=11 // pred_region
        _
      $region20: #{residual_block_forward.5} parent=11 // pred_fallthru
        _
    $region12: #{residual_block_forward.5} parent=5 // pred_fallthru
      _
    %p124 = scmp.lt.s32.totalorder %s9, 2
    // Predicated region
    $region21: #{residual_block_forward.5} parent=5 // pred_check
      %p125 = pneg %p124
    $region22: #{residual_block_forward.5} parent=5 // pred_check_branch
      %127 = sbr.rel (%p125) target = $region24
    $region23: #{residual_block_forward.5} parent=5 // pred_region
      // Predicated region
      $region25: #{residual_block_forward.5} parent=23 // pred_check
        %p128 = pneg %p29
      $region26: #{residual_block_forward.5} parent=23 // pred_check_branch
        %130 = sbr.rel (%p128) target = $region28
      $region27: #{residual_block_forward.5} parent=23 // pred_region
        %p131 = scmp.lt.s32.totalorder %s9, 1
        %s132 = scalar_select %p131, %s9, 1
        %s133 = smul.addr %s132, 32
        %s134 = smul.addr %s133, 4
        %s135 = scalar_lea.vmem %s0, %s134
      $region28: #{residual_block_forward.5} parent=23 // pred_fallthru
        _
    $region24: #{residual_block_forward.5} parent=5 // pred_fallthru
      _
    %p136 = scmp.le.s32.totalorder 1, %s9
    %p137 = scmp.lt.s32.totalorder %s9, 3
    %p138 = pnand %p136, %p137
    %p139 = pneg %p138
    // Predicated region
    $region29: #{residual_block_forward.5} parent=5 // pred_check
      _
    $region30: #{residual_block_forward.5} parent=5 // pred_check_branch
      %141 = sbr.rel (%p138) target = $region32
    $region31: #{residual_block_forward.5} parent=5 // pred_region
      %s142 = ssub.s32 %s9, 1
      %p143 = scmp.lt.s32.totalorder %s14, 1
      %s144 = scalar_select %p143, %s14, 1
      %s145 = smul.addr %s144, 32
      %s146 = smul.addr %s145, 4
      %s147 = scalar_lea.vmem %s0, %s146
      %p148 = pneg %p35
      %p149 = pneg %p32
      %p150 = pneg %p56
      %p151 = pneg %p53
      %p152 = pneg %p77
      %p153 = pneg %p74
      %p154 = pneg %p103
      %p155 = pneg %p100
      %p156 = scmp.lt.s32.totalorder %s14, 1
      %s157 = scalar_select %p156, %s14, 1
      %s158 = smul.addr %s157, 32
      %s159 = smul.addr %s158, 4
      %s160 = scalar_lea.vmem %s3, %s159
      %p161 = scmp.lt.s32.totalorder %s14, 1
      %s162 = scalar_select %p161, %s14, 1
      %s163 = smul.addr %s162, 32
      %s164 = smul.addr %s163, 4
      %s165 = scalar_lea.vmem %s0, %s164
      %p166 = scmp.lt.s32.totalorder %s14, 1
      %s167 = scalar_select %p166, %s14, 1
      %s168 = smul.addr %s167, 32
      %s169 = smul.addr %s168, 4
      %s170 = scalar_lea.vmem %s3, %s169
      %v171 = vld [vmem:[%s165] sm:$0xf]
      %v172 = vld [vmem:[%s165 + $0x4] sm:$0xf]
      %v173 = vld [vmem:[%s165 + $0x8] sm:$0xf]
      %v174 = vld [vmem:[%s165 + $0xc] sm:$0xf]
      %v175 = vld [vmem:[%s165 + $0x10] sm:$0xf]
      %v176 = vld [vmem:[%s165 + $0x14] sm:$0xf]
      %v177 = vld [vmem:[%s165 + $0x18] sm:$0xf]
      %v178 = vld [vmem:[%s165 + $0x1c] sm:$0xf]
      %v179 = vld [vmem:[%s165 + $0x20] sm:$0xf]
      %v180 = vld [vmem:[%s165 + $0x24] sm:$0xf]
      %v181 = vld [vmem:[%s165 + $0x28] sm:$0xf]
      %v182 = vld [vmem:[%s165 + $0x2c] sm:$0xf]
      %v183 = vld [vmem:[%s165 + $0x30] sm:$0xf]
      %v184 = vld [vmem:[%s165 + $0x34] sm:$0xf]
      %v185 = vld [vmem:[%s165 + $0x38] sm:$0xf]
      %v186 = vld [vmem:[%s165 + $0x3c] sm:$0xf]
      %v187 = vld [vmem:[%s165 + $0x40] sm:$0xf]
      %v188 = vld [vmem:[%s165 + $0x44] sm:$0xf]
      %v189 = vld [vmem:[%s165 + $0x48] sm:$0xf]
      %v190 = vld [vmem:[%s165 + $0x4c] sm:$0xf]
      %v191 = vld [vmem:[%s165 + $0x50] sm:$0xf]
      %v192 = vld [vmem:[%s165 + $0x54] sm:$0xf]
      %v193 = vld [vmem:[%s165 + $0x58] sm:$0xf]
      %v194 = vld [vmem:[%s165 + $0x5c] sm:$0xf]
      %v195 = vld [vmem:[%s165 + $0x60] sm:$0xf]
      %v196 = vld [vmem:[%s165 + $0x64] sm:$0xf]
      %v197 = vld [vmem:[%s165 + $0x68] sm:$0xf]
      %v198 = vld [vmem:[%s165 + $0x6c] sm:$0xf]
      %v199 = vld [vmem:[%s165 + $0x70] sm:$0xf]
      %v200 = vld [vmem:[%s165 + $0x74] sm:$0xf]
      %v201 = vld [vmem:[%s165 + $0x78] sm:$0xf]
      %v202 = vld [vmem:[%s165 + $0x7c] sm:$0xf]
      %v203 = vunpack.c.l.bf16 %v171
      %v204 = vunpack.c.l.bf16 %v172
      %v205 = vunpack.c.l.bf16 %v173
      %v206 = vunpack.c.l.bf16 %v174
      %v207 = vunpack.c.l.bf16 %v175
      %v208 = vunpack.c.l.bf16 %v176
      %v209 = vunpack.c.l.bf16 %v177
      %v210 = vunpack.c.l.bf16 %v178
      %v211 = vunpack.c.l.bf16 %v179
      %v212 = vunpack.c.l.bf16 %v180
      %v213 = vunpack.c.l.bf16 %v181
      %v214 = vunpack.c.l.bf16 %v182
      %v215 = vunpack.c.l.bf16 %v183
      %v216 = vunpack.c.l.bf16 %v184
      %v217 = vunpack.c.l.bf16 %v185
      %v218 = vunpack.c.l.bf16 %v186
      %v219 = vunpack.c.l.bf16 %v187
      %v220 = vunpack.c.l.bf16 %v188
      %v221 = vunpack.c.l.bf16 %v189
      %v222 = vunpack.c.l.bf16 %v190
      %v223 = vunpack.c.l.bf16 %v191
      %v224 = vunpack.c.l.bf16 %v192
      %v225 = vunpack.c.l.bf16 %v193
      %v226 = vunpack.c.l.bf16 %v194
      %v227 = vunpack.c.l.bf16 %v195
      %v228 = vunpack.c.l.bf16 %v196
      %v229 = vunpack.c.l.bf16 %v197
      %v230 = vunpack.c.l.bf16 %v198
      %v231 = vunpack.c.l.bf16 %v199
      %v232 = vunpack.c.l.bf16 %v200
      %v233 = vunpack.c.l.bf16 %v201
      %v234 = vunpack.c.l.bf16 %v202
      %v235 = vld [vmem:[%s1] sm:$0x1]
      %v237 = vperm.slane %v235, 0
      %v239 = vmul.f32 %v203, %v237
      %v240 = vmul.f32 %v204, %v237
      %v241 = vmul.f32 %v205, %v237
      %v242 = vmul.f32 %v206, %v237
      %v243 = vmul.f32 %v207, %v237
      %v244 = vmul.f32 %v208, %v237
      %v245 = vmul.f32 %v209, %v237
      %v246 = vmul.f32 %v210, %v237
      %v247 = vmul.f32 %v211, %v237
      %v248 = vmul.f32 %v212, %v237
      %v249 = vmul.f32 %v213, %v237
      %v250 = vmul.f32 %v214, %v237
      %v251 = vmul.f32 %v215, %v237
      %v252 = vmul.f32 %v216, %v237
      %v253 = vmul.f32 %v217, %v237
      %v254 = vmul.f32 %v218, %v237
      %v255 = vmul.f32 %v219, %v237
      %v256 = vmul.f32 %v220, %v237
      %v257 = vmul.f32 %v221, %v237
      %v258 = vmul.f32 %v222, %v237
      %v259 = vmul.f32 %v223, %v237
      %v260 = vmul.f32 %v224, %v237
      %v261 = vmul.f32 %v225, %v237
      %v262 = vmul.f32 %v226, %v237
      %v263 = vmul.f32 %v227, %v237
      %v264 = vmul.f32 %v228, %v237
      %v265 = vmul.f32 %v229, %v237
      %v266 = vmul.f32 %v230, %v237
      %v267 = vmul.f32 %v231, %v237
      %v268 = vmul.f32 %v232, %v237
      %v269 = vmul.f32 %v233, %v237
      %v270 = vmul.f32 %v234, %v237
      %v271 = vld [vmem:[%s2] sm:$0x1]
      %v273 = vperm.slane %v271, 0
      %v275 = vadd.f32 %v239, %v273
      %v276 = vadd.f32 %v240, %v273
      %v277 = vadd.f32 %v241, %v273
      %v278 = vadd.f32 %v242, %v273
      %v279 = vadd.f32 %v243, %v273
      %v280 = vadd.f32 %v244, %v273
      %v281 = vadd.f32 %v245, %v273
      %v282 = vadd.f32 %v246, %v273
      %v283 = vadd.f32 %v247, %v273
      %v284 = vadd.f32 %v248, %v273
      %v285 = vadd.f32 %v249, %v273
      %v286 = vadd.f32 %v250, %v273
      %v287 = vadd.f32 %v251, %v273
      %v288 = vadd.f32 %v252, %v273
      %v289 = vadd.f32 %v253, %v273
      %v290 = vadd.f32 %v254, %v273
      %v291 = vadd.f32 %v255, %v273
      %v292 = vadd.f32 %v256, %v273
      %v293 = vadd.f32 %v257, %v273
      %v294 = vadd.f32 %v258, %v273
      %v295 = vadd.f32 %v259, %v273
      %v296 = vadd.f32 %v260, %v273
      %v297 = vadd.f32 %v261, %v273
      %v298 = vadd.f32 %v262, %v273
      %v299 = vadd.f32 %v263, %v273
      %v300 = vadd.f32 %v264, %v273
      %v301 = vadd.f32 %v265, %v273
      %v302 = vadd.f32 %v266, %v273
      %v303 = vadd.f32 %v267, %v273
      %v304 = vadd.f32 %v268, %v273
      %v305 = vadd.f32 %v269, %v273
      %v306 = vadd.f32 %v270, %v273
      %v307 = vmax.f32 %v275, 0.0
      %v308 = vmax.f32 %v276, 0.0
      %v309 = vmax.f32 %v277, 0.0
      %v310 = vmax.f32 %v278, 0.0
      %v311 = vmax.f32 %v279, 0.0
      %v312 = vmax.f32 %v280, 0.0
      %v313 = vmax.f32 %v281, 0.0
      %v314 = vmax.f32 %v282, 0.0
      %v315 = vmax.f32 %v283, 0.0
      %v316 = vmax.f32 %v284, 0.0
      %v317 = vmax.f32 %v285, 0.0
      %v318 = vmax.f32 %v286, 0.0
      %v319 = vmax.f32 %v287, 0.0
      %v320 = vmax.f32 %v288, 0.0
      %v321 = vmax.f32 %v289, 0.0
      %v322 = vmax.f32 %v290, 0.0
      %v323 = vmax.f32 %v291, 0.0
      %v324 = vmax.f32 %v292, 0.0
      %v325 = vmax.f32 %v293, 0.0
      %v326 = vmax.f32 %v294, 0.0
      %v327 = vmax.f32 %v295, 0.0
      %v328 = vmax.f32 %v296, 0.0
      %v329 = vmax.f32 %v297, 0.0
      %v330 = vmax.f32 %v298, 0.0
      %v331 = vmax.f32 %v299, 0.0
      %v332 = vmax.f32 %v300, 0.0
      %v333 = vmax.f32 %v301, 0.0
      %v334 = vmax.f32 %v302, 0.0
      %v335 = vmax.f32 %v303, 0.0
      %v336 = vmax.f32 %v304, 0.0
      %v337 = vmax.f32 %v305, 0.0
      %v338 = vmax.f32 %v306, 0.0
      %v339 = vpack.c.bf16 %v307, %v307
      %v340 = vpack.c.bf16 %v308, %v308
      %v341 = vpack.c.bf16 %v309, %v309
      %v342 = vpack.c.bf16 %v310, %v310
      %v343 = vpack.c.bf16 %v311, %v311
      %v344 = vpack.c.bf16 %v312, %v312
      %v345 = vpack.c.bf16 %v313, %v313
      %v346 = vpack.c.bf16 %v314, %v314
      %v347 = vpack.c.bf16 %v315, %v315
      %v348 = vpack.c.bf16 %v316, %v316
      %v349 = vpack.c.bf16 %v317, %v317
      %v350 = vpack.c.bf16 %v318, %v318
      %v351 = vpack.c.bf16 %v319, %v319
      %v352 = vpack.c.bf16 %v320, %v320
      %v353 = vpack.c.bf16 %v321, %v321
      %v354 = vpack.c.bf16 %v322, %v322
      %v355 = vpack.c.bf16 %v323, %v323
      %v356 = vpack.c.bf16 %v324, %v324
      %v357 = vpack.c.bf16 %v325, %v325
      %v358 = vpack.c.bf16 %v326, %v326
      %v359 = vpack.c.bf16 %v327, %v327
      %v360 = vpack.c.bf16 %v328, %v328
      %v361 = vpack.c.bf16 %v329, %v329
      %v362 = vpack.c.bf16 %v330, %v330
      %v363 = vpack.c.bf16 %v331, %v331
      %v364 = vpack.c.bf16 %v332, %v332
      %v365 = vpack.c.bf16 %v333, %v333
      %v366 = vpack.c.bf16 %v334, %v334
      %v367 = vpack.c.bf16 %v335, %v335
      %v368 = vpack.c.bf16 %v336, %v336
      %v369 = vpack.c.bf16 %v337, %v337
      %v370 = vpack.c.bf16 %v338, %v338
      %371 = vst [vmem:[%s170] sm:$0xf] %v339
      %372 = vst [vmem:[%s170 + $0x4] sm:$0xf] %v340
      %373 = vst [vmem:[%s170 + $0x8] sm:$0xf] %v341
      %374 = vst [vmem:[%s170 + $0xc] sm:$0xf] %v342
      %375 = vst [vmem:[%s170 + $0x10] sm:$0xf] %v343
      %376 = vst [vmem:[%s170 + $0x14] sm:$0xf] %v344
      %377 = vst [vmem:[%s170 + $0x18] sm:$0xf] %v345
      %378 = vst [vmem:[%s170 + $0x1c] sm:$0xf] %v346
      %379 = vst [vmem:[%s170 + $0x20] sm:$0xf] %v347
      %380 = vst [vmem:[%s170 + $0x24] sm:$0xf] %v348
      %381 = vst [vmem:[%s170 + $0x28] sm:$0xf] %v349
      %382 = vst [vmem:[%s170 + $0x2c] sm:$0xf] %v350
      %383 = vst [vmem:[%s170 + $0x30] sm:$0xf] %v351
      %384 = vst [vmem:[%s170 + $0x34] sm:$0xf] %v352
      %385 = vst [vmem:[%s170 + $0x38] sm:$0xf] %v353
      %386 = vst [vmem:[%s170 + $0x3c] sm:$0xf] %v354
      %387 = vst [vmem:[%s170 + $0x40] sm:$0xf] %v355
      %388 = vst [vmem:[%s170 + $0x44] sm:$0xf] %v356
      %389 = vst [vmem:[%s170 + $0x48] sm:$0xf] %v357
      %390 = vst [vmem:[%s170 + $0x4c] sm:$0xf] %v358
      %391 = vst [vmem:[%s170 + $0x50] sm:$0xf] %v359
      %392 = vst [vmem:[%s170 + $0x54] sm:$0xf] %v360
      %393 = vst [vmem:[%s170 + $0x58] sm:$0xf] %v361
      %394 = vst [vmem:[%s170 + $0x5c] sm:$0xf] %v362
      %395 = vst [vmem:[%s170 + $0x60] sm:$0xf] %v363
      %396 = vst [vmem:[%s170 + $0x64] sm:$0xf] %v364
      %397 = vst [vmem:[%s170 + $0x68] sm:$0xf] %v365
      %398 = vst [vmem:[%s170 + $0x6c] sm:$0xf] %v366
      %399 = vst [vmem:[%s170 + $0x70] sm:$0xf] %v367
      %400 = vst [vmem:[%s170 + $0x74] sm:$0xf] %v368
      %401 = vst [vmem:[%s170 + $0x78] sm:$0xf] %v369
      %402 = vst [vmem:[%s170 + $0x7c] sm:$0xf] %v370
      %p403 = scmp.lt.s32.totalorder %s14, 1
      %s404 = scalar_select %p403, %s14, 1
      %s405 = smul.addr %s404, 32
      %s406 = smul.addr %s405, 4
      %s407 = scalar_lea.vmem %s3, %s406
      // Predicated region
      $region33: #{residual_block_forward.5} parent=31 // pred_check
        %p408 = pneg %p100
      $region34: #{residual_block_forward.5} parent=31 // pred_check_branch
        %410 = sbr.rel (%p408) target = $region36
      $region35: #{residual_block_forward.5} parent=31 // pred_region
        _
      $region36: #{residual_block_forward.5} parent=31 // pred_fallthru
        _
    $region32: #{residual_block_forward.5} parent=5 // pred_fallthru
      _
    %p411 = scmp.le.s32.totalorder 2, %s9
    // Predicated region
    $region37: #{residual_block_forward.5} parent=5 // pred_check
      %p412 = pneg %p411
    $region38: #{residual_block_forward.5} parent=5 // pred_check_branch
      %414 = sbr.rel (%p412) target = $region40
    $region39: #{residual_block_forward.5} parent=5 // pred_region
      %s415 = ssub.s32 %s9, 2
      // Predicated region
      $region41: #{residual_block_forward.5} parent=39 // pred_check
        %p416 = pneg %p106
      $region42: #{residual_block_forward.5} parent=39 // pred_check_branch
        %418 = sbr.rel (%p416) target = $region44
      $region43: #{residual_block_forward.5} parent=39 // pred_region
        %p419 = scmp.lt.s32.totalorder %s15, 1
        %s420 = scalar_select %p419, %s15, 1
        %s421 = smul.addr %s420, 32
        %s422 = smul.addr %s421, 4
        %s423 = scalar_lea.vmem %s3, %s422
      $region44: #{residual_block_forward.5} parent=39 // pred_fallthru
        _
    $region40: #{residual_block_forward.5} parent=5 // pred_fallthru
      _
  $region6: #{residual_block_forward.5} parent=0 // loop_footer
    %s13 = sadd.s32 1, %s9
  $region7: #{residual_block_forward.5} parent=0 // loop_footer_branch
    %8 = sbr.rel target = $region3
  $region8: #{residual_block_forward.5} parent=0 // loop_exit
    _

// kernel: residual_block_forward.7
$region0: #{residual_block_forward.7}
  #allocation0 [shape = 'u32[]', space=smem, size = 0x4, offset = 0x4, fixed_abs, tag = 'smem constant byte address 0x4 - core index']
  #allocation1 [shape = 'u32[72,128]{1,0:T(1,128)}', space=vmem, size = 0x9000, scoped, tag = 'internal scratch']
  %s0 = inlined_call_operand.vmem [shape: bf16[2,256,128], index: 0, kind: input, shape index: {}]
  %s1 = inlined_call_operand.vmem [shape: f32[1,128], index: 1, kind: input, shape index: {}]
  %s2 = inlined_call_operand.vmem [shape: f32[1,128], index: 2, kind: input, shape index: {}]
  %s3 = inlined_call_operand.vmem [shape: f32[2,256,128], index: 3, kind: input, shape index: {}]
  %s4 = inlined_call_operand.hbm [shape: f32[2,256,128], index: 4, kind: output, shape index: {}]
  %s5 = sld [smem:[#allocation0]]
  $region49: #{residual_block_forward.7} parent=0
    _
  %s7 = ssub.s32 1, %s5
  %s8 = scalar_select 0, %s7, %s5
  $region1: #{residual_block_forward.7} parent=0
    #allocation2 [shape = 'u8[262144]{0}', space=vmem, size = 0x40000, scoped, tag = 'output window, operand 0']
    #allocation3 [shape = 's32[2]{0}', space=sflag, size = 0x8, scoped, tag = 'scoped memory for residual_block_forward.7']
    %9 = vsyncpa [#allocation3], 0
    %s10 = scalar_lea.sflag [#allocation3], 1
    %11 = vsyncpa %s10, 0
    loop: start=0, step=1, limit=4
    $region2: #{residual_block_forward.7} parent=1 // loop_pre_header
      _
    $region3: #{residual_block_forward.7} parent=1 // loop_header
      %s13 = sphi 0, %s17
      %p14 = scmp.ge.s32.totalorder %s13, 4
      %s23 = sphi 0, %s25
      %s26 = sphi 0, %s23
      %s27 = sphi 0, %s26
      %s43 = sphi 0, %s27
      %s47 = sphi 0, %s47
      %s49 = sphi 0, %s47
      %s50 = sphi 0, %s49
      %s64 = sphi 0, %s50
      %s68 = sphi 0, %s68
      %s70 = sphi 0, %s68
      %s71 = sphi 0, %s70
      %s85 = sphi 0, %s71
      %s91 = sphi 0, %s93
      %s94 = sphi 0, %s91
      %s95 = sphi 0, %s94
      %s111 = sphi 0, %s95
      %s117 = sphi 0, %s119
      %s120 = sphi 0, %s117
      %s121 = sphi 0, %s120
      %s137 = sphi 0, %s121
    $region4: #{residual_block_forward.7} parent=1 // loop_header_branch
      %16 = sbr.rel (%p14) target = $region8
    $region5: #{residual_block_forward.7} parent=1 // loop_body
      %s18 = ssub.s32 %s13, 1
      %s19 = ssub.s32 %s13, 2
      %s20 = sadd.s32 %s13, 1
      %s21 = ssub.s32 %s13, %s20
      %p22 = scmp.eq.s32.totalorder %s21, 0
      %s24 = sadd.s32 %s23, 1
      %s25 = scalar_select %p22, %s23, %s24
      %p28 = pneg %p22
      %p29 = scmp.eq.s32.totalorder %s13, 1
      %p30 = por %p28, %p29
      %p31 = scmp.ne.s32.totalorder %s23, %s26
      %p32 = scmp.eq.s32.totalorder %s13, 0
      %p33 = por %p31, %p32
      %p34 = scmp.ne.s32.totalorder %s23, %s26
      %p35 = scmp.eq.s32.totalorder %s18, 1
      %p36 = por %p34, %p35
      %p37 = scmp.ne.s32.totalorder %s26, %s27
      %p38 = scmp.eq.s32.totalorder %s18, 0
      %p39 = por %p37, %p38
      %p40 = scmp.ne.s32.totalorder %s26, %s27
      %p41 = scmp.eq.s32.totalorder %s19, 1
      %p42 = por %p40, %p41
      %p44 = scmp.ne.s32.totalorder %s27, %s43
      %p45 = scmp.eq.s32.totalorder %s19, 0
      %p46 = por %p44, %p45
      %s48 = sadd.s32 %s47, 1
      %p51 = scmp.eq.s32.totalorder %s13, 1
      %p52 = scmp.ne.s32.totalorder %s47, %s49
      %p53 = scmp.eq.s32.totalorder %s13, 0
      %p54 = por %p52, %p53
      %p55 = scmp.ne.s32.totalorder %s47, %s49
      %p56 = scmp.eq.s32.totalorder %s18, 1
      %p57 = por %p55, %p56
      %p58 = scmp.ne.s32.totalorder %s49, %s50
      %p59 = scmp.eq.s32.totalorder %s18, 0
      %p60 = por %p58, %p59
      %p61 = scmp.ne.s32.totalorder %s49, %s50
      %p62 = scmp.eq.s32.totalorder %s19, 1
      %p63 = por %p61, %p62
      %p65 = scmp.ne.s32.totalorder %s50, %s64
      %p66 = scmp.eq.s32.totalorder %s19, 0
      %p67 = por %p65, %p66
      %s69 = sadd.s32 %s68, 1
      %p72 = scmp.eq.s32.totalorder %s13, 1
      %p73 = scmp.ne.s32.totalorder %s68, %s70
      %p74 = scmp.eq.s32.totalorder %s13, 0
      %p75 = por %p73, %p74
      %p76 = scmp.ne.s32.totalorder %s68, %s70
      %p77 = scmp.eq.s32.totalorder %s18, 1
      %p78 = por %p76, %p77
      %p79 = scmp.ne.s32.totalorder %s70, %s71
      %p80 = scmp.eq.s32.totalorder %s18, 0
      %p81 = por %p79, %p80
      %p82 = scmp.ne.s32.totalorder %s70, %s71
      %p83 = scmp.eq.s32.totalorder %s19, 1
      %p84 = por %p82, %p83
      %p86 = scmp.ne.s32.totalorder %s71, %s85
      %p87 = scmp.eq.s32.totalorder %s19, 0
      %p88 = por %p86, %p87
      %s89 = ssub.s32 %s13, %s20
      %p90 = scmp.eq.s32.totalorder %s89, 0
      %s92 = sadd.s32 %s91, 1
      %s93 = scalar_select %p90, %s91, %s92
      %p96 = pneg %p90
      %p97 = scmp.eq.s32.totalorder %s13, 1
      %p98 = por %p96, %p97
      %p99 = scmp.ne.s32.totalorder %s91, %s94
      %p100 = scmp.eq.s32.totalorder %s13, 0
      %p101 = por %p99, %p100
      %p102 = scmp.ne.s32.totalorder %s91, %s94
      %p103 = scmp.eq.s32.totalorder %s18, 1
      %p104 = por %p102, %p103
      %p105 = scmp.ne.s32.totalorder %s94, %s95
      %p106 = scmp.eq.s32.totalorder %s18, 0
      %p107 = por %p105, %p106
      %p108 = scmp.ne.s32.totalorder %s94, %s95
      %p109 = scmp.eq.s32.totalorder %s19, 1
      %p110 = por %p108, %p109
      %p112 = scmp.ne.s32.totalorder %s95, %s111
      %p113 = scmp.eq.s32.totalorder %s19, 0
      %p114 = por %p112, %p113
      %s115 = ssub.s32 %s13, %s20
      %p116 = scmp.eq.s32.totalorder %s115, 0
      %s118 = sadd.s32 %s117, 1
      %s119 = scalar_select %p116, %s117, %s118
      %p122 = pneg %p116
      %p123 = scmp.eq.s32.totalorder %s13, 1
      %p124 = por %p122, %p123
      %p125 = scmp.ne.s32.totalorder %s117, %s120
      %p126 = scmp.eq.s32.totalorder %s13, 0
      %p127 = por %p125, %p126
      %p128 = scmp.ne.s32.totalorder %s117, %s120
      %p129 = scmp.eq.s32.totalorder %s18, 1
      %p130 = por %p128, %p129
      %p131 = scmp.ne.s32.totalorder %s120, %s121
      %p132 = scmp.eq.s32.totalorder %s18, 0
      %p133 = por %p131, %p132
      %p134 = scmp.ne.s32.totalorder %s120, %s121
      %p135 = scmp.eq.s32.totalorder %s19, 1
      %p136 = por %p134, %p135
      %p138 = scmp.ne.s32.totalorder %s121, %s137
      %p139 = scmp.eq.s32.totalorder %s19, 0
      %p140 = por %p138, %p139
      %p141 = scmp.le.s32.totalorder 1, %s13
      %p142 = scmp.lt.s32.totalorder %s13, 3
      %p143 = pnand %p141, %p142
      %p144 = pneg %p143
      // Predicated region
      $region9: #{residual_block_forward.7} parent=5 // pred_check
        _
      $region10: #{residual_block_forward.7} parent=5 // pred_check_branch
        %146 = sbr.rel (%p143) target = $region12
      $region11: #{residual_block_forward.7} parent=5 // pred_region
        %s147 = ssub.s32 %s13, 1
        // Predicated region
        $region13: #{residual_block_forward.7} parent=11 // pred_check
          %p148 = pneg %p60
        $region14: #{residual_block_forward.7} parent=11 // pred_check_branch
          %150 = sbr.rel (%p148) target = $region16
        $region15: #{residual_block_forward.7} parent=11 // pred_region
          _
        $region16: #{residual_block_forward.7} parent=11 // pred_fallthru
          _
        // Predicated region
        $region17: #{residual_block_forward.7} parent=11 // pred_check
          %p151 = pneg %p81
        $region18: #{residual_block_forward.7} parent=11 // pred_check_branch
          %153 = sbr.rel (%p151) target = $region20
        $region19: #{residual_block_forward.7} parent=11 // pred_region
          _
        $region20: #{residual_block_forward.7} parent=11 // pred_fallthru
          _
      $region12: #{residual_block_forward.7} parent=5 // pred_fallthru
        _
      %p154 = scmp.lt.s32.totalorder %s13, 2
      // Predicated region
      $region21: #{residual_block_forward.7} parent=5 // pred_check
        %p155 = pneg %p154
      $region22: #{residual_block_forward.7} parent=5 // pred_check_branch
        %157 = sbr.rel (%p155) target = $region24
      $region23: #{residual_block_forward.7} parent=5 // pred_region
        // Predicated region
        $region25: #{residual_block_forward.7} parent=23 // pred_check
          %p158 = pneg %p33
        $region26: #{residual_block_forward.7} parent=23 // pred_check_branch
          %160 = sbr.rel (%p158) target = $region28
        $region27: #{residual_block_forward.7} parent=23 // pred_region
          %p161 = scmp.lt.s32.totalorder %s13, 1
          %s162 = scalar_select %p161, %s13, 1
          %s163 = smul.addr %s162, 32
          %s164 = smul.addr %s163, 4
          %s165 = scalar_lea.vmem %s0, %s164
        $region28: #{residual_block_forward.7} parent=23 // pred_fallthru
          _
        // Predicated region
        $region29: #{residual_block_forward.7} parent=23 // pred_check
          %p166 = pneg %p101
        $region30: #{residual_block_forward.7} parent=23 // pred_check_branch
          %168 = sbr.rel (%p166) target = $region32
        $region31: #{residual_block_forward.7} parent=23 // pred_region
          %p169 = scmp.lt.s32.totalorder %s13, 1
          %s170 = scalar_select %p169, %s13, 1
          %s171 = smul.addr %s170, 32
          %s172 = smul.addr %s171, 8
          %s173 = scalar_lea.vmem %s3, %s172
        $region32: #{residual_block_forward.7} parent=23 // pred_fallthru
          _
      $region24: #{residual_block_forward.7} parent=5 // pred_fallthru
        _
      %p174 = scmp.le.s32.totalorder 1, %s13
      %p175 = scmp.lt.s32.totalorder %s13, 3
      %p176 = pnand %p174, %p175
      %p177 = pneg %p176
      // Predicated region
      $region33: #{residual_block_forward.7} parent=5 // pred_check
        _
      $region34: #{residual_block_forward.7} parent=5 // pred_check_branch
        %179 = sbr.rel (%p176) target = $region36
      $region35: #{residual_block_forward.7} parent=5 // pred_region
        %s180 = ssub.s32 %s13, 1
        %p181 = scmp.lt.s32.totalorder %s18, 1
        %s182 = scalar_select %p181, %s18, 1
        %s183 = smul.addr %s182, 32
        %s184 = smul.addr %s183, 4
        %s185 = scalar_lea.vmem %s0, %s184
        %p186 = pneg %p39
        %p187 = pneg %p36
        %p188 = pneg %p60
        %p189 = pneg %p57
        %p190 = pneg %p81
        %p191 = pneg %p78
        %p192 = scmp.lt.s32.totalorder %s18, 1
        %s193 = scalar_select %p192, %s18, 1
        %s194 = smul.addr %s193, 32
        %s195 = smul.addr %s194, 8
        %s196 = scalar_lea.vmem %s3, %s195
        %p197 = pneg %p107
        %p198 = pneg %p104
        %p199 = pneg %p133
        %p200 = pneg %p130
        %s201 = sand.u32 %s120, 1
        %s202 = scalar_lea.sflag [#allocation3], %s201
        %s203 = sand.u32 %s120, 1
        %s204 = smul.addr %s203, 256
        %s205 = scalar_lea.vmem [#allocation2], %s204
        %p206 = scmp.lt.s32.totalorder %s18, 1
        %s207 = scalar_select %p206, %s18, 1
        %s208 = smul.addr %s207, 32
        %s209 = smul.addr %s208, 4
        %s210 = scalar_lea.vmem %s0, %s209
        %p211 = scmp.lt.s32.totalorder %s18, 1
        %s212 = scalar_select %p211, %s18, 1
        %s213 = smul.addr %s212, 32
        %s214 = smul.addr %s213, 8
        %s215 = scalar_lea.vmem %s3, %s214
        %v216 = vld [vmem:[%s210] sm:$0xf]
        %v217 = vld [vmem:[%s210 + $0x4] sm:$0xf]
        %v218 = vld [vmem:[%s210 + $0x8] sm:$0xf]
        %v219 = vld [vmem:[%s210 + $0xc] sm:$0xf]
        %v220 = vld [vmem:[%s210 + $0x10] sm:$0xf]
        %v221 = vld [vmem:[%s210 + $0x14] sm:$0xf]
        %v222 = vld [vmem:[%s210 + $0x18] sm:$0xf]
        %v223 = vld [vmem:[%s210 + $0x1c] sm:$0xf]
        %v224 = vld [vmem:[%s210 + $0x20] sm:$0xf]
        %v225 = vld [vmem:[%s210 + $0x24] sm:$0xf]
        %v226 = vld [vmem:[%s210 + $0x28] sm:$0xf]
        %v227 = vld [vmem:[%s210 + $0x2c] sm:$0xf]
        %v228 = vld [vmem:[%s210 + $0x30] sm:$0xf]
        %v229 = vld [vmem:[%s210 + $0x34] sm:$0xf]
        %v230 = vld [vmem:[%s210 + $0x38] sm:$0xf]
        %v231 = vld [vmem:[%s210 + $0x3c] sm:$0xf]
        %v232 = vld [vmem:[%s210 + $0x40] sm:$0xf]
        %v233 = vld [vmem:[%s210 + $0x44] sm:$0xf]
        %v234 = vld [vmem:[%s210 + $0x48] sm:$0xf]
        %v235 = vld [vmem:[%s210 + $0x4c] sm:$0xf]
        %v236 = vld [vmem:[%s210 + $0x50] sm:$0xf]
        %v237 = vld [vmem:[%s210 + $0x54] sm:$0xf]
        %v238 = vld [vmem:[%s210 + $0x58] sm:$0xf]
        %v239 = vld [vmem:[%s210 + $0x5c] sm:$0xf]
        %v240 = vld [vmem:[%s210 + $0x60] sm:$0xf]
        %v241 = vld [vmem:[%s210 + $0x64] sm:$0xf]
        %v242 = vld [vmem:[%s210 + $0x68] sm:$0xf]
        %v243 = vld [vmem:[%s210 + $0x6c] sm:$0xf]
        %v244 = vld [vmem:[%s210 + $0x70] sm:$0xf]
        %v245 = vld [vmem:[%s210 + $0x74] sm:$0xf]
        %v246 = vld [vmem:[%s210 + $0x78] sm:$0xf]
        %v247 = vld [vmem:[%s210 + $0x7c] sm:$0xf]
        %v248 = vunpack.c.l.bf16 %v216
        %v249 = vunpack.c.l.bf16 %v217
        %v250 = vunpack.c.l.bf16 %v218
        %v251 = vunpack.c.l.bf16 %v219
        %v252 = vunpack.c.l.bf16 %v220
        %v253 = vunpack.c.l.bf16 %v221
        %v254 = vunpack.c.l.bf16 %v222
        %v255 = vunpack.c.l.bf16 %v223
        %v256 = vunpack.c.l.bf16 %v224
        %v257 = vunpack.c.l.bf16 %v225
        %v258 = vunpack.c.l.bf16 %v226
        %v259 = vunpack.c.l.bf16 %v227
        %v260 = vunpack.c.l.bf16 %v228
        %v261 = vunpack.c.l.bf16 %v229
        %v262 = vunpack.c.l.bf16 %v230
        %v263 = vunpack.c.l.bf16 %v231
        %v264 = vunpack.c.l.bf16 %v232
        %v265 = vunpack.c.l.bf16 %v233
        %v266 = vunpack.c.l.bf16 %v234
        %v267 = vunpack.c.l.bf16 %v235
        %v268 = vunpack.c.l.bf16 %v236
        %v269 = vunpack.c.l.bf16 %v237
        %v270 = vunpack.c.l.bf16 %v238
        %v271 = vunpack.c.l.bf16 %v239
        %v272 = vunpack.c.l.bf16 %v240
        %v273 = vunpack.c.l.bf16 %v241
        %v274 = vunpack.c.l.bf16 %v242
        %v275 = vunpack.c.l.bf16 %v243
        %v276 = vunpack.c.l.bf16 %v244
        %v277 = vunpack.c.l.bf16 %v245
        %v278 = vunpack.c.l.bf16 %v246
        %v279 = vunpack.c.l.bf16 %v247
        %v280 = vld [vmem:[%s1] sm:$0x1]
        %v282 = vperm.slane %v280, 0
        %v284 = vmul.f32 %v248, %v282
        %v285 = vmul.f32 %v249, %v282
        %v286 = vmul.f32 %v250, %v282
        %v287 = vmul.f32 %v251, %v282
        %v288 = vmul.f32 %v252, %v282
        %v289 = vmul.f32 %v253, %v282
        %v290 = vmul.f32 %v254, %v282
        %v291 = vmul.f32 %v255, %v282
        %v292 = vmul.f32 %v256, %v282
        %v293 = vmul.f32 %v257, %v282
        %v294 = vmul.f32 %v258, %v282
        %v295 = vmul.f32 %v259, %v282
        %v296 = vmul.f32 %v260, %v282
        %v297 = vmul.f32 %v261, %v282
        %v298 = vmul.f32 %v262, %v282
        %v299 = vmul.f32 %v263, %v282
        %v300 = vmul.f32 %v264, %v282
        %v301 = vmul.f32 %v265, %v282
        %v302 = vmul.f32 %v266, %v282
        %v303 = vmul.f32 %v267, %v282
        %v304 = vmul.f32 %v268, %v282
        %v305 = vmul.f32 %v269, %v282
        %v306 = vmul.f32 %v270, %v282
        %v307 = vmul.f32 %v271, %v282
        %v308 = vmul.f32 %v272, %v282
        %v309 = vmul.f32 %v273, %v282
        %v310 = vmul.f32 %v274, %v282
        %v311 = vmul.f32 %v275, %v282
        %v312 = vmul.f32 %v276, %v282
        %v313 = vmul.f32 %v277, %v282
        %v314 = vmul.f32 %v278, %v282
        %v315 = vmul.f32 %v279, %v282
        %v316 = vld [vmem:[%s2] sm:$0x1]
        %v318 = vperm.slane %v316, 0
        %v320 = vadd.f32 %v284, %v318
        %v321 = vadd.f32 %v285, %v318
        %v322 = vadd.f32 %v286, %v318
        %v323 = vadd.f32 %v287, %v318
        %v324 = vadd.f32 %v288, %v318
        %v325 = vadd.f32 %v289, %v318
        %v326 = vadd.f32 %v290, %v318
        %v327 = vadd.f32 %v291, %v318
        %v328 = vadd.f32 %v292, %v318
        %v329 = vadd.f32 %v293, %v318
        %v330 = vadd.f32 %v294, %v318
        %v331 = vadd.f32 %v295, %v318
        %v332 = vadd.f32 %v296, %v318
        %v333 = vadd.f32 %v297, %v318
        %v334 = vadd.f32 %v298, %v318
        %v335 = vadd.f32 %v299, %v318
        %v336 = vadd.f32 %v300, %v318
        %v337 = vadd.f32 %v301, %v318
        %v338 = vadd.f32 %v302, %v318
        %v339 = vadd.f32 %v303, %v318
        %v340 = vadd.f32 %v304, %v318
        %v341 = vadd.f32 %v305, %v318
        %v342 = vadd.f32 %v306, %v318
        %v343 = vadd.f32 %v307, %v318
        %v344 = vadd.f32 %v308, %v318
        %v345 = vadd.f32 %v309, %v318
        %v346 = vadd.f32 %v310, %v318
        %v347 = vadd.f32 %v311, %v318
        %v348 = vadd.f32 %v312, %v318
        %v349 = vadd.f32 %v313, %v318
        %v350 = vadd.f32 %v314, %v318
        %v351 = vadd.f32 %v315, %v318
        %v352 = vld [vmem:[%s215] sm:$0xff]
        %v353 = vld [vmem:[%s215 + $0x8] sm:$0xff]
        %v354 = vld [vmem:[%s215 + $0x10] sm:$0xff]
        %v355 = vld [vmem:[%s215 + $0x18] sm:$0xff]
        %v356 = vld [vmem:[%s215 + $0x20] sm:$0xff]
        %v357 = vld [vmem:[%s215 + $0x28] sm:$0xff]
        %v358 = vld [vmem:[%s215 + $0x30] sm:$0xff]
        %v359 = vld [vmem:[%s215 + $0x38] sm:$0xff]
        %v360 = vld [vmem:[%s215 + $0x40] sm:$0xff]
        %v361 = vld [vmem:[%s215 + $0x48] sm:$0xff]
        %v362 = vld [vmem:[%s215 + $0x50] sm:$0xff]
        %v363 = vld [vmem:[%s215 + $0x58] sm:$0xff]
        %v364 = vld [vmem:[%s215 + $0x60] sm:$0xff]
        %v365 = vld [vmem:[%s215 + $0x68] sm:$0xff]
        %v366 = vld [vmem:[%s215 + $0x70] sm:$0xff]
        %v367 = vld [vmem:[%s215 + $0x78] sm:$0xff]
        %v368 = vld [vmem:[%s215 + $0x80] sm:$0xff]
        %v369 = vld [vmem:[%s215 + $0x88] sm:$0xff]
        %v370 = vld [vmem:[%s215 + $0x90] sm:$0xff]
        %v371 = vld [vmem:[%s215 + $0x98] sm:$0xff]
        %v372 = vld [vmem:[%s215 + $0xa0] sm:$0xff]
        %v373 = vld [vmem:[%s215 + $0xa8] sm:$0xff]
        %v374 = vld [vmem:[%s215 + $0xb0] sm:$0xff]
        %v375 = vld [vmem:[%s215 + $0xb8] sm:$0xff]
        %v376 = vld [vmem:[%s215 + $0xc0] sm:$0xff]
        %v377 = vld [vmem:[%s215 + $0xc8] sm:$0xff]
        %v378 = vld [vmem:[%s215 + $0xd0] sm:$0xff]
        %v379 = vld [vmem:[%s215 + $0xd8] sm:$0xff]
        %v380 = vld [vmem:[%s215 + $0xe0] sm:$0xff]
        %v381 = vld [vmem:[%s215 + $0xe8] sm:$0xff]
        %v382 = vld [vmem:[%s215 + $0xf0] sm:$0xff]
        %v383 = vld [vmem:[%s215 + $0xf8] sm:$0xff]
        %v384 = vadd.f32 %v320, %v352
        %v385 = vadd.f32 %v321, %v353
        %v386 = vadd.f32 %v322, %v354
        %v387 = vadd.f32 %v323, %v355
        %v388 = vadd.f32 %v324, %v356
        %v389 = vadd.f32 %v325, %v357
        %v390 = vadd.f32 %v326, %v358
        %v391 = vadd.f32 %v327, %v359
        %v392 = vadd.f32 %v328, %v360
        %v393 = vadd.f32 %v329, %v361
        %v394 = vadd.f32 %v330, %v362
        %v395 = vadd.f32 %v331, %v363
        %v396 = vadd.f32 %v332, %v364
        %v397 = vadd.f32 %v333, %v365
        %v398 = vadd.f32 %v334, %v366
        %v399 = vadd.f32 %v335, %v367
        %v400 = vadd.f32 %v336, %v368
        %v401 = vadd.f32 %v337, %v369
        %v402 = vadd.f32 %v338, %v370
        %v403 = vadd.f32 %v339, %v371
        %v404 = vadd.f32 %v340, %v372
        %v405 = vadd.f32 %v341, %v373
        %v406 = vadd.f32 %v342, %v374
        %v407 = vadd.f32 %v343, %v375
        %v408 = vadd.f32 %v344, %v376
        %v409 = vadd.f32 %v345, %v377
        %v410 = vadd.f32 %v346, %v378
        %v411 = vadd.f32 %v347, %v379
        %v412 = vadd.f32 %v348, %v380
        %v413 = vadd.f32 %v349, %v381
        %v414 = vadd.f32 %v350, %v382
        %v415 = vadd.f32 %v351, %v383
        %416 = vst [vmem:[%s205] sm:$0xff] %v384
        %417 = vst [vmem:[%s205 + $0x8] sm:$0xff] %v385
        %418 = vst [vmem:[%s205 + $0x10] sm:$0xff] %v386
        %419 = vst [vmem:[%s205 + $0x18] sm:$0xff] %v387
        %420 = vst [vmem:[%s205 + $0x20] sm:$0xff] %v388
        %421 = vst [vmem:[%s205 + $0x28] sm:$0xff] %v389
        %422 = vst [vmem:[%s205 + $0x30] sm:$0xff] %v390
        %423 = vst [vmem:[%s205 + $0x38] sm:$0xff] %v391
        %424 = vst [vmem:[%s205 + $0x40] sm:$0xff] %v392
        %425 = vst [vmem:[%s205 + $0x48] sm:$0xff] %v393
        %426 = vst [vmem:[%s205 + $0x50] sm:$0xff] %v394
        %427 = vst [vmem:[%s205 + $0x58] sm:$0xff] %v395
        %428 = vst [vmem:[%s205 + $0x60] sm:$0xff] %v396
        %429 = vst [vmem:[%s205 + $0x68] sm:$0xff] %v397
        %430 = vst [vmem:[%s205 + $0x70] sm:$0xff] %v398
        %431 = vst [vmem:[%s205 + $0x78] sm:$0xff] %v399
        %432 = vst [vmem:[%s205 + $0x80] sm:$0xff] %v400
        %433 = vst [vmem:[%s205 + $0x88] sm:$0xff] %v401
        %434 = vst [vmem:[%s205 + $0x90] sm:$0xff] %v402
        %435 = vst [vmem:[%s205 + $0x98] sm:$0xff] %v403
        %436 = vst [vmem:[%s205 + $0xa0] sm:$0xff] %v404
        %437 = vst [vmem:[%s205 + $0xa8] sm:$0xff] %v405
        %438 = vst [vmem:[%s205 + $0xb0] sm:$0xff] %v406
        %439 = vst [vmem:[%s205 + $0xb8] sm:$0xff] %v407
        %440 = vst [vmem:[%s205 + $0xc0] sm:$0xff] %v408
        %441 = vst [vmem:[%s205 + $0xc8] sm:$0xff] %v409
        %442 = vst [vmem:[%s205 + $0xd0] sm:$0xff] %v410
        %443 = vst [vmem:[%s205 + $0xd8] sm:$0xff] %v411
        %444 = vst [vmem:[%s205 + $0xe0] sm:$0xff] %v412
        %445 = vst [vmem:[%s205 + $0xe8] sm:$0xff] %v413
        %446 = vst [vmem:[%s205 + $0xf0] sm:$0xff] %v414
        %447 = vst [vmem:[%s205 + $0xf8] sm:$0xff] %v415
        %s448 = sand.u32 %s120, 1
        %s449 = scalar_lea.sflag [#allocation3], %s448
        %s450 = sand.u32 %s120, 1
        %s451 = smul.addr %s450, 256
        %s452 = scalar_lea.vmem [#allocation2], %s451
        // Predicated region
        $region37: #{residual_block_forward.7} parent=35 // pred_check
          %p453 = pneg %p130
        $region38: #{residual_block_forward.7} parent=35 // pred_check_branch
          %455 = sbr.rel (%p453) target = $region40
        $region39: #{residual_block_forward.7} parent=35 // pred_region
          %457 = vsyncadd %s449, 0
          %s458 = smul.addr %s18, 32
          %s459 = smul.addr %s458, 8
          %s460 = scalar_lea.hbm %s4, %s459
          %s461 = sshll.u32 %s452, 4
          %s462 = int_to_ptr.vmem [resolvable:$true] %s461
          %s463 = sshll.u32 %s460, 4
          %s464 = int_to_ptr.hbm [resolvable:$true] %s463
          %469 = dma.vmem_to_hbm [thread:$0]  %s462, 4096, %s464, %s449, 128, 128, 8
        $region40: #{residual_block_forward.7} parent=35 // pred_fallthru
          _
      $region36: #{residual_block_forward.7} parent=5 // pred_fallthru
        _
      %p470 = scmp.le.s32.totalorder 2, %s13
      // Predicated region
      $region41: #{residual_block_forward.7} parent=5 // pred_check
        %p471 = pneg %p470
      $region42: #{residual_block_forward.7} parent=5 // pred_check_branch
        %473 = sbr.rel (%p471) target = $region44
      $region43: #{residual_block_forward.7} parent=5 // pred_region
        %s474 = ssub.s32 %s13, 2
        // Predicated region
        $region45: #{residual_block_forward.7} parent=43 // pred_check
          %p475 = pneg %p136
        $region46: #{residual_block_forward.7} parent=43 // pred_check_branch
          %477 = sbr.rel (%p475) target = $region48
        $region47: #{residual_block_forward.7} parent=43 // pred_region
          %s478 = sand.u32 %s121, 1
          %s479 = scalar_lea.sflag [#allocation3], %s478
          %s480 = sand.u32 %s121, 1
          %s481 = smul.addr %s480, 256
          %s482 = scalar_lea.vmem [#allocation2], %s481
          %484 = dma.done %s479, 4096
        $region48: #{residual_block_forward.7} parent=43 // pred_fallthru
          _
      $region44: #{residual_block_forward.7} parent=5 // pred_fallthru
        _
    $region6: #{residual_block_forward.7} parent=1 // loop_footer
      %s17 = sadd.s32 1, %s13
    $region7: #{residual_block_forward.7} parent=1 // loop_footer_branch
      %12 = sbr.rel target = $region3
    $region8: #{residual_block_forward.7} parent=1 // loop_exit
      _
    %485 = vsyncpa [#allocation3], 1
    %s486 = scalar_lea.sflag [#allocation3], 1
    %487 = vsyncpa %s486, 1

// kernel: residual_block_forward.4
$region0: #{residual_block_forward.4}
  #allocation0 [shape = 'u32[]', space=smem, size = 0x4, offset = 0x4, fixed_abs, tag = 'smem constant byte address 0x4 - core index']
  #allocation1 [shape = 'u32[72,128]{1,0:T(1,128)}', space=vmem, size = 0x9000, scoped, tag = 'internal scratch']
  %s0 = inlined_call_operand.vmem [shape: bf16[2,18,18,128], index: 0, kind: input, shape index: {}]
  %s1 = inlined_call_operand.vmem [shape: bf16[9,128,128], index: 1, kind: input, shape index: {}]
  %s2 = inlined_call_operand.vmem [shape: bf16[2,256,128], index: 2, kind: output, shape index: {0}]
  %s3 = inlined_call_operand.vmem [shape: f32[2,2,128], index: 3, kind: output, shape index: {1}]
  %4 = xla_tuple %s2, %s3
  %s5 = sld [smem:[#allocation0]]
  $region49: #{residual_block_forward.4} parent=0
    _
  %s7 = ssub.s32 1, %s5
  %s8 = scalar_select 0, %s7, %s5
  loop: start=0, step=1, limit=4
  $region2: #{residual_block_forward.4} parent=0 // loop_pre_header
    _
  $region3: #{residual_block_forward.4} parent=0 // loop_header
    %s10 = sphi 0, %s14
    %p11 = scmp.ge.s32.totalorder %s10, 4
    %s20 = sphi 0, %s22
    %s23 = sphi 0, %s20
    %s24 = sphi 0, %s23
    %s40 = sphi 0, %s24
    %s44 = sphi 0, %s44
    %s46 = sphi 0, %s44
    %s47 = sphi 0, %s46
    %s61 = sphi 0, %s47
    %s67 = sphi 0, %s69
    %s70 = sphi 0, %s67
    %s71 = sphi 0, %s70
    %s87 = sphi 0, %s71
    %s93 = sphi 0, %s95
    %s96 = sphi 0, %s93
    %s97 = sphi 0, %s96
    %s113 = sphi 0, %s97
  $region4: #{residual_block_forward.4} parent=0 // loop_header_branch
    %13 = sbr.rel (%p11) target = $region8
  $region5: #{residual_block_forward.4} parent=0 // loop_body
    %s15 = ssub.s32 %s10, 1
    %s16 = ssub.s32 %s10, 2
    %s17 = sadd.s32 %s10, 1
    %s18 = ssub.s32 %s10, %s17
    %p19 = scmp.eq.s32.totalorder %s18, 0
    %s21 = sadd.s32 %s20, 1
    %s22 = scalar_select %p19, %s20, %s21
    %p25 = pneg %p19
    %p26 = scmp.eq.s32.totalorder %s10, 1
    %p27 = por %p25, %p26
    %p28 = scmp.ne.s32.totalorder %s20, %s23
    %p29 = scmp.eq.s32.totalorder %s10, 0
    %p30 = por %p28, %p29
    %p31 = scmp.ne.s32.totalorder %s20, %s23
    %p32 = scmp.eq.s32.totalorder %s15, 1
    %p33 = por %p31, %p32
    %p34 = scmp.ne.s32.totalorder %s23, %s24
    %p35 = scmp.eq.s32.totalorder %s15, 0
    %p36 = por %p34, %p35
    %p37 = scmp.ne.s32.totalorder %s23, %s24
    %p38 = scmp.eq.s32.totalorder %s16, 1
    %p39 = por %p37, %p38
    %p41 = scmp.ne.s32.totalorder %s24, %s40
    %p42 = scmp.eq.s32.totalorder %s16, 0
    %p43 = por %p41, %p42
    %s45 = sadd.s32 %s44, 1
    %p48 = scmp.eq.s32.totalorder %s10, 1
    %p49 = scmp.ne.s32.totalorder %s44, %s46
    %p50 = scmp.eq.s32.totalorder %s10, 0
    %p51 = por %p49, %p50
    %p52 = scmp.ne.s32.totalorder %s44, %s46
    %p53 = scmp.eq.s32.totalorder %s15, 1
    %p54 = por %p52, %p53
    %p55 = scmp.ne.s32.totalorder %s46, %s47
    %p56 = scmp.eq.s32.totalorder %s15, 0
    %p57 = por %p55, %p56
    %p58 = scmp.ne.s32.totalorder %s46, %s47
    %p59 = scmp.eq.s32.totalorder %s16, 1
    %p60 = por %p58, %p59
    %p62 = scmp.ne.s32.totalorder %s47, %s61
    %p63 = scmp.eq.s32.totalorder %s16, 0
    %p64 = por %p62, %p63
    %s65 = ssub.s32 %s10, %s17
    %p66 = scmp.eq.s32.totalorder %s65, 0
    %s68 = sadd.s32 %s67, 1
    %s69 = scalar_select %p66, %s67, %s68
    %p72 = pneg %p66
    %p73 = scmp.eq.s32.totalorder %s10, 1
    %p74 = por %p72, %p73
    %p75 = scmp.ne.s32.totalorder %s67, %s70
    %p76 = scmp.eq.s32.totalorder %s10, 0
    %p77 = por %p75, %p76
    %p78 = scmp.ne.s32.totalorder %s67, %s70
    %p79 = scmp.eq.s32.totalorder %s15, 1
    %p80 = por %p78, %p79
    %p81 = scmp.ne.s32.totalorder %s70, %s71
    %p82 = scmp.eq.s32.totalorder %s15, 0
    %p83 = por %p81, %p82
    %p84 = scmp.ne.s32.totalorder %s70, %s71
    %p85 = scmp.eq.s32.totalorder %s16, 1
    %p86 = por %p84, %p85
    %p88 = scmp.ne.s32.totalorder %s71, %s87
    %p89 = scmp.eq.s32.totalorder %s16, 0
    %p90 = por %p88, %p89
    %s91 = ssub.s32 %s10, %s17
    %p92 = scmp.eq.s32.totalorder %s91, 0
    %s94 = sadd.s32 %s93, 1
    %s95 = scalar_select %p92, %s93, %s94
    %p98 = pneg %p92
    %p99 = scmp.eq.s32.totalorder %s10, 1
    %p100 = por %p98, %p99
    %p101 = scmp.ne.s32.totalorder %s93, %s96
    %p102 = scmp.eq.s32.totalorder %s10, 0
    %p103 = por %p101, %p102
    %p104 = scmp.ne.s32.totalorder %s93, %s96
    %p105 = scmp.eq.s32.totalorder %s15, 1
    %p106 = por %p104, %p105
    %p107 = scmp.ne.s32.totalorder %s96, %s97
    %p108 = scmp.eq.s32.totalorder %s15, 0
    %p109 = por %p107, %p108
    %p110 = scmp.ne.s32.totalorder %s96, %s97
    %p111 = scmp.eq.s32.totalorder %s16, 1
    %p112 = por %p110, %p111
    %p114 = scmp.ne.s32.totalorder %s97, %s113
    %p115 = scmp.eq.s32.totalorder %s16, 0
    %p116 = por %p114, %p115
    %p117 = scmp.le.s32.totalorder 1, %s10
    %p118 = scmp.lt.s32.totalorder %s10, 3
    %p119 = pnand %p117, %p118
    %p120 = pneg %p119
    // Predicated region
    $region9: #{residual_block_forward.4} parent=5 // pred_check
      _
    $region10: #{residual_block_forward.4} parent=5 // pred_check_branch
      %122 = sbr.rel (%p119) target = $region12
    $region11: #{residual_block_forward.4} parent=5 // pred_region
      %s123 = ssub.s32 %s10, 1
      // Predicated region
      $region13: #{residual_block_forward.4} parent=11 // pred_check
        %p124 = pneg %p57
      $region14: #{residual_block_forward.4} parent=11 // pred_check_branch
        %126 = sbr.rel (%p124) target = $region16
      $region15: #{residual_block_forward.4} parent=11 // pred_region
        _
      $region16: #{residual_block_forward.4} parent=11 // pred_fallthru
        _
    $region12: #{residual_block_forward.4} parent=5 // pred_fallthru
      _
    %p127 = scmp.lt.s32.totalorder %s10, 2
    // Predicated region
    $region17: #{residual_block_forward.4} parent=5 // pred_check
      %p128 = pneg %p127
    $region18: #{residual_block_forward.4} parent=5 // pred_check_branch
      %130 = sbr.rel (%p128) target = $region20
    $region19: #{residual_block_forward.4} parent=5 // pred_region
      // Predicated region
      $region21: #{residual_block_forward.4} parent=19 // pred_check
        %p131 = pneg %p30
      $region22: #{residual_block_forward.4} parent=19 // pred_check_branch
        %133 = sbr.rel (%p131) target = $region24
      $region23: #{residual_block_forward.4} parent=19 // pred_region
        %p134 = scmp.lt.s32.totalorder %s10, 1
        %s135 = scalar_select %p134, %s10, 1
        %s136 = smul.addr %s135, 54
        %s137 = smul.addr %s136, 4
        %s138 = scalar_lea.vmem %s0, %s137
      $region24: #{residual_block_forward.4} parent=19 // pred_fallthru
        _
    $region20: #{residual_block_forward.4} parent=5 // pred_fallthru
      _
    %p139 = scmp.le.s32.totalorder 1, %s10
    %p140 = scmp.lt.s32.totalorder %s10, 3
    %p141 = pnand %p139, %p140
    %p142 = pneg %p141
    // Predicated region
    $region25: #{residual_block_forward.4} parent=5 // pred_check
      _
    $region26: #{residual_block_forward.4} parent=5 // pred_check_branch
      %144 = sbr.rel (%p141) target = $region28
    $region27: #{residual_block_forward.4} parent=5 // pred_region
      %s145 = ssub.s32 %s10, 1
      %p146 = scmp.lt.s32.totalorder %s15, 1
      %s147 = scalar_select %p146, %s15, 1
      %s148 = smul.addr %s147, 54
      %s149 = smul.addr %s148, 4
      %s150 = scalar_lea.vmem %s0, %s149
      %p151 = pneg %p36
      %p152 = pneg %p33
      %p153 = pneg %p57
      %p154 = pneg %p54
      %p155 = pneg %p83
      %p156 = pneg %p80
      %p157 = scmp.lt.s32.totalorder %s15, 1
      %s158 = scalar_select %p157, %s15, 1
      %s159 = smul.addr %s158, 32
      %s160 = smul.addr %s159, 4
      %s161 = scalar_lea.vmem %s2, %s160
      %p162 = pneg %p109
      %p163 = pneg %p106
      %p164 = scmp.lt.s32.totalorder %s15, 1
      %s165 = scalar_select %p164, %s15, 1
      %s166 = smul.addr %s165, 2
      %s167 = scalar_lea.vmem %s3, %s166
      %p168 = scmp.lt.s32.totalorder %s15, 1
      %s169 = scalar_select %p168, %s15, 1
      %s170 = smul.addr %s169, 54
      %s171 = smul.addr %s170, 4
      %s172 = scalar_lea.vmem %s0, %s171
      %p173 = scmp.lt.s32.totalorder %s15, 1
      %s174 = scalar_select %p173, %s15, 1
      %s175 = smul.addr %s174, 32
      %s176 = smul.addr %s175, 4
      %s177 = scalar_lea.vmem %s2, %s176
      %p178 = scmp.lt.s32.totalorder %s15, 1
      %s179 = scalar_select %p178, %s15, 1
      %s180 = smul.addr %s179, 2
      %s181 = scalar_lea.vmem %s3, %s180
      %v182 = vld [vmem:[%s172] sm:$0xf]
      %v183 = vld [vmem:[%s172 + $0x4] sm:$0xf]
      %v184 = vld [vmem:[%s172 + $0xc] sm:$0xf]
      %v185 = vld [vmem:[%s172 + $0x10] sm:$0xf]
      %v186 = vld [vmem:[%s172 + $0x18] sm:$0xf]
      %v187 = vld [vmem:[%s172 + $0x1c] sm:$0xf]
      %v188 = vld [vmem:[%s172 + $0x24] sm:$0xf]
      %v189 = vld [vmem:[%s172 + $0x28] sm:$0xf]
      %v190 = vld [vmem:[%s172 + $0x30] sm:$0xf]
      %v191 = vld [vmem:[%s172 + $0x34] sm:$0xf]
      %v192 = vld [vmem:[%s172 + $0x3c] sm:$0xf]
      %v193 = vld [vmem:[%s172 + $0x40] sm:$0xf]
      %v194 = vld [vmem:[%s172 + $0x48] sm:$0xf]
      %v195 = vld [vmem:[%s172 + $0x4c] sm:$0xf]
      %v196 = vld [vmem:[%s172 + $0x54] sm:$0xf]
      %v197 = vld [vmem:[%s172 + $0x58] sm:$0xf]
      %v198 = vld [vmem:[%s172 + $0x60] sm:$0xf]
      %v199 = vld [vmem:[%s172 + $0x64] sm:$0xf]
      %v200 = vld [vmem:[%s172 + $0x6c] sm:$0xf]
      %v201 = vld [vmem:[%s172 + $0x70] sm:$0xf]
      %v202 = vld [vmem:[%s172 + $0x78] sm:$0xf]
      %v203 = vld [vmem:[%s172 + $0x7c] sm:$0xf]
      %v204 = vld [vmem:[%s172 + $0x84] sm:$0xf]
      %v205 = vld [vmem:[%s172 + $0x88] sm:$0xf]
      %v206 = vld [vmem:[%s172 + $0x90] sm:$0xf]
      %v207 = vld [vmem:[%s172 + $0x94] sm:$0xf]
      %v208 = vld [vmem:[%s172 + $0x9c] sm:$0xf]
      %v209 = vld [vmem:[%s172 + $0xa0] sm:$0xf]
      %v210 = vld [vmem:[%s172 + $0xa8] sm:$0xf]
      %v211 = vld [vmem:[%s172 + $0xac] sm:$0xf]
      %v212 = vld [vmem:[%s172 + $0xb4] sm:$0xf]
      %v213 = vld [vmem:[%s172 + $0xb8] sm:$0xf]
      %v214 = vld [vmem:[%s1] sm:$0xf]
      %v215 = vld [vmem:[%s1 + $0x4] sm:$0xf]
      %v216 = vld [vmem:[%s1 + $0x8] sm:$0xf]
      %v217 = vld [vmem:[%s1 + $0xc] sm:$0xf]
      %v218 = vld [vmem:[%s1 + $0x10] sm:$0xf]
      %v219 = vld [vmem:[%s1 + $0x14] sm:$0xf]
      %v220 = vld [vmem:[%s1 + $0x18] sm:$0xf]
      %v221 = vld [vmem:[%s1 + $0x1c] sm:$0xf]
      %v222 = vld [vmem:[%s1 + $0x20] sm:$0xf]
      %v223 = vld [vmem:[%s1 + $0x24] sm:$0xf]
      %v224 = vld [vmem:[%s1 + $0x28] sm:$0xf]
      %v225 = vld [vmem:[%s1 + $0x2c] sm:$0xf]
      %v226 = vld [vmem:[%s1 + $0x30] sm:$0xf]
      %v227 = vld [vmem:[%s1 + $0x34] sm:$0xf]
      %v228 = vld [vmem:[%s1 + $0x38] sm:$0xf]
      %v229 = vld [vmem:[%s1 + $0x3c] sm:$0xf]
      %v230 = vld [vmem:[%s172 + $0x8] sm:$0x1]
      %v231 = vld [vmem:[%s172 + $0x14] sm:$0x1]
      %v232 = vld [vmem:[%s172 + $0x20] sm:$0x1]
      %v233 = vld [vmem:[%s172 + $0x2c] sm:$0x1]
      %v234 = vld [vmem:[%s172 + $0x38] sm:$0x1]
      %v235 = vld [vmem:[%s172 + $0x44] sm:$0x1]
      %v236 = vld [vmem:[%s172 + $0x50] sm:$0x1]
      %v237 = vld [vmem:[%s172 + $0x5c] sm:$0x1]
      %v238 = vld [vmem:[%s172 + $0x68] sm:$0x1]
      %v239 = vld [vmem:[%s172 + $0x74] sm:$0x1]
      %v240 = vld [vmem:[%s172 + $0x80] sm:$0x1]
      %v241 = vld [vmem:[%s172 + $0x8c] sm:$0x1]
      %v242 = vld [vmem:[%s172 + $0x98] sm:$0x1]
      %v243 = vld [vmem:[%s172 + $0xa4] sm:$0x1]
      %v244 = vld [vmem:[%s172 + $0xb0] sm:$0x1]
      %v245 = vld [vmem:[%s172 + $0xbc] sm:$0x1]
      %vm246 = vsmask.f32 3328
      %vm247 = vsmask.f32 7440
      %vm248 = vmor %vm246, %vm247
      %v250 = vshrl.u32 %v182, 16
      %v252 = vrot.slane %v250, 4
      %v253 = vshll.u32 %v182, 16
      %v255 = vrot.slane %v253, 5
      %v256 = vor.u32 %v252, %v255
      %v257 = vrot.slane %v256, 4
      %v259 = vshll.u32 %v183, 16
      %v261 = vrot.slane %v259, 5
      %v262 = vsel %vm248, %v257, %v261
      %v263 = vshrl.u32 %v183, 16
      %v265 = vrot.slane %v263, 4
      %v266 = vor.u32 %v265, %v261
      %v267 = vrot.slane %v266, 4
      %v269 = vshll.u32 %v230, 16
      %v271 = vrot.slane %v269, 5
      %v272 = vsel %vm248, %v267, %v271
      %v274 = vshrl.u32 %v184, 16
      %v276 = vrot.slane %v274, 4
      %v277 = vshll.u32 %v184, 16
      %v279 = vrot.slane %v277, 5
      %v280 = vor.u32 %v276, %v279
      %v281 = vrot.slane %v280, 4
      %v283 = vshll.u32 %v185, 16
      %v285 = vrot.slane %v283, 5
      %v286 = vsel %vm248, %v281, %v285
      %v287 = vshrl.u32 %v185, 16
      %v289 = vrot.slane %v287, 4
      %v290 = vor.u32 %v289, %v285
      %v291 = vrot.slane %v290, 4
      %v293 = vshll.u32 %v231, 16
      %v295 = vrot.slane %v293, 5
      %v296 = vsel %vm248, %v291, %v295
      %v298 = vshrl.u32 %v186, 16
      %v300 = vrot.slane %v298, 4
      %v301 = vshll.u32 %v186, 16
      %v303 = vrot.slane %v301, 5
      %v304 = vor.u32 %v300, %v303
      %v305 = vrot.slane %v304, 4
      %v307 = vshll.u32 %v187, 16
      %v309 = vrot.slane %v307, 5
      %v310 = vsel %vm248, %v305, %v309
      %v311 = vshrl.u32 %v187, 16
      %v313 = vrot.slane %v311, 4
      %v314 = vor.u32 %v313, %v309
      %v315 = vrot.slane %v314, 4
      %v317 = vshll.u32 %v232, 16
      %v319 = vrot.slane %v317, 5
      %v320 = vsel %vm248, %v315, %v319
      %v322 = vshrl.u32 %v188, 16
      %v324 = vrot.slane %v322, 4
      %v325 = vshll.u32 %v188, 16
      %v327 = vrot.slane %v325, 5
      %v328 = vor.u32 %v324, %v327
      %v329 = vrot.slane %v328, 4
      %v331 = vshll.u32 %v189, 16
      %v333 = vrot.slane %v331, 5
      %v334 = vsel %vm248, %v329, %v333
      %v335 = vshrl.u32 %v189, 16
      %v337 = vrot.slane %v335, 4
      %v338 = vor.u32 %v337, %v333
      %v339 = vrot.slane %v338, 4
      %v341 = vshll.u32 %v233, 16
      %v343 = vrot.slane %v341, 5
      %v344 = vsel %vm248, %v339, %v343
      %v346 = vshrl.u32 %v190, 16
      %v348 = vrot.slane %v346, 4
      %v349 = vshll.u32 %v190, 16
      %v351 = vrot.slane %v349, 5
      %v352 = vor.u32 %v348, %v351
      %v353 = vrot.slane %v352, 4
      %v355 = vshll.u32 %v191, 16
      %v357 = vrot.slane %v355, 5
      %v358 = vsel %vm248, %v353, %v357
      %v359 = vshrl.u32 %v191, 16
      %v361 = vrot.slane %v359, 4
      %v362 = vor.u32 %v361, %v357
      %v363 = vrot.slane %v362, 4
      %v365 = vshll.u32 %v234, 16
      %v367 = vrot.slane %v365, 5
      %v368 = vsel %vm248, %v363, %v367
      %v370 = vshrl.u32 %v192, 16
      %v372 = vrot.slane %v370, 4
      %v373 = vshll.u32 %v192, 16
      %v375 = vrot.slane %v373, 5
      %v376 = vor.u32 %v372, %v375
      %v377 = vrot.slane %v376, 4
      %v379 = vshll.u32 %v193, 16
      %v381 = vrot.slane %v379, 5
      %v382 = vsel %vm248, %v377, %v381
      %v383 = vshrl.u32 %v193, 16
      %v385 = vrot.slane %v383, 4
      %v386 = vor.u32 %v385, %v381
      %v387 = vrot.slane %v386, 4
      %v389 = vshll.u32 %v235, 16
      %v391 = vrot.slane %v389, 5
      %v392 = vsel %vm248, %v387, %v391
      %v394 = vshrl.u32 %v194, 16
      %v396 = vrot.slane %v394, 4
      %v397 = vshll.u32 %v194, 16
      %v399 = vrot.slane %v397, 5
      %v400 = vor.u32 %v396, %v399
      %v401 = vrot.slane %v400, 4
      %v403 = vshll.u32 %v195, 16
      %v405 = vrot.slane %v403, 5
      %v406 = vsel %vm248, %v401, %v405
      %v407 = vshrl.u32 %v195, 16
      %v409 = vrot.slane %v407, 4
      %v410 = vor.u32 %v409, %v405
      %v411 = vrot.slane %v410, 4
      %v413 = vshll.u32 %v236, 16
      %v415 = vrot.slane %v413, 5
      %v416 = vsel %vm248, %v411, %v415
      %v418 = vshrl.u32 %v196, 16
      %v420 = vrot.slane %v418, 4
      %v421 = vshll.u32 %v196, 16
      %v423 = vrot.slane %v421, 5
      %v424 = vor.u32 %v420, %v423
      %v425 = vrot.slane %v424, 4
      %v427 = vshll.u32 %v197, 16
      %v429 = vrot.slane %v427, 5
      %v430 = vsel %vm248, %v425, %v429
      %v431 = vshrl.u32 %v197, 16
      %v433 = vrot.slane %v431, 4
      %v434 = vor.u32 %v433, %v429
      %v435 = vrot.slane %v434, 4
      %v437 = vshll.u32 %v237, 16
      %v439 = vrot.slane %v437, 5
      %v440 = vsel %vm248, %v435, %v439
      %v442 = vshrl.u32 %v198, 16
      %v444 = vrot.slane %v442, 4
      %v445 = vshll.u32 %v198, 16
      %v447 = vrot.slane %v445, 5
      %v448 = vor.u32 %v444, %v447
      %v449 = vrot.slane %v448, 4
      %v451 = vshll.u32 %v199, 16
      %v453 = vrot.slane %v451, 5
      %v454 = vsel %vm248, %v449, %v453
      %v455 = vshrl.u32 %v199, 16
      %v457 = vrot.slane %v455, 4
      %v458 = vor.u32 %v457, %v453
      %v459 = vrot.slane %v458, 4
      %v461 = vshll.u32 %v238, 16
      %v463 = vrot.slane %v461, 5
      %v464 = vsel %vm248, %v459, %v463
      %v466 = vshrl.u32 %v200, 16
      %v468 = vrot.slane %v466, 4
      %v469 = vshll.u32 %v200, 16
      %v471 = vrot.slane %v469, 5
      %v472 = vor.u32 %v468, %v471
      %v473 = vrot.slane %v472, 4
      %v475 = vshll.u32 %v201, 16
      %v477 = vrot.slane %v475, 5
      %v478 = vsel %vm248, %v473, %v477
      %v479 = vshrl.u32 %v201, 16
      %v481 = vrot.slane %v479, 4
      %v482 = vor.u32 %v481, %v477
      %v483 = vrot.slane %v482, 4
      %v485 = vshll.u32 %v239, 16
      %v487 = vrot.slane %v485, 5
      %v488 = vsel %vm248, %v483, %v487
      %v490 = vshrl.u32 %v202, 16
      %v492 = vrot.slane %v490, 4
      %v493 = vshll.u32 %v202, 16
      %v495 = vrot.slane %v493, 5
      %v496 = vor.u32 %v492, %v495
      %v497 = vrot.slane %v496, 4
      %v499 = vshll.u32 %v203, 16
      %v501 = vrot.slane %v499, 5
      %v502 = vsel %vm248, %v497, %v501
      %v503 = vshrl.u32 %v203, 16
      %v505 = vrot.slane %v503, 4
      %v506 = vor.u32 %v505, %v501
      %v507 = vrot.slane %v506, 4
      %v509 = vshll.u32 %v240, 16
      %v511 = vrot.slane %v509, 5
      %v512 = vsel %vm248, %v507, %v511
      %v514 = vshrl.u32 %v204, 16
      %v516 = vrot.slane %v514, 4
      %v517 = vshll.u32 %v204, 16
      %v519 = vrot.slane %v517, 5
      %v520 = vor.u32 %v516, %v519
      %v521 = vrot.slane %v520, 4
      %v523 = vshll.u32 %v205, 16
      %v525 = vrot.slane %v523, 5
      %v526 = vsel %vm248, %v521, %v525
      %v527 = vshrl.u32 %v205, 16
      %v529 = vrot.slane %v527, 4
      %v530 = vor.u32 %v529, %v525
      %v531 = vrot.slane %v530, 4
      %v533 = vshll.u32 %v241, 16
      %v535 = vrot.slane %v533, 5
      %v536 = vsel %vm248, %v531, %v535
      %v538 = vshrl.u32 %v206, 16
      %v540 = vrot.slane %v538, 4
      %v541 = vshll.u32 %v206, 16
      %v543 = vrot.slane %v541, 5
      %v544 = vor.u32 %v540, %v543
      %v545 = vrot.slane %v544, 4
      %v547 = vshll.u32 %v207, 16
      %v549 = vrot.slane %v547, 5
      %v550 = vsel %vm248, %v545, %v549
      %v551 = vshrl.u32 %v207, 16
      %v553 = vrot.slane %v551, 4
      %v554 = vor.u32 %v553, %v549
      %v555 = vrot.slane %v554, 4
      %v557 = vshll.u32 %v242, 16
      %v559 = vrot.slane %v557, 5
      %v560 = vsel %vm248, %v555, %v559
      %v562 = vshrl.u32 %v208, 16
      %v564 = vrot.slane %v562, 4
      %v565 = vshll.u32 %v208, 16
      %v567 = vrot.slane %v565, 5
      %v568 = vor.u32 %v564, %v567
      %v569 = vrot.slane %v568, 4
      %v571 = vshll.u32 %v209, 16
      %v573 = vrot.slane %v571, 5
      %v574 = vsel %vm248, %v569, %v573
      %v575 = vshrl.u32 %v209, 16
      %v577 = vrot.slane %v575, 4
      %v578 = vor.u32 %v577, %v573
      %v579 = vrot.slane %v578, 4
      %v581 = vshll.u32 %v243, 16
      %v583 = vrot.slane %v581, 5
      %v584 = vsel %vm248, %v579, %v583
      %v586 = vshrl.u32 %v210, 16
      %v588 = vrot.slane %v586, 4
      %v589 = vshll.u32 %v210, 16
      %v591 = vrot.slane %v589, 5
      %v592 = vor.u32 %v588, %v591
      %v593 = vrot.slane %v592, 4
      %v595 = vshll.u32 %v211, 16
      %v597 = vrot.slane %v595, 5
      %v598 = vsel %vm248, %v593, %v597
      %v599 = vshrl.u32 %v211, 16
      %v601 = vrot.slane %v599, 4
      %v602 = vor.u32 %v601, %v597
      %v603 = vrot.slane %v602, 4
      %v605 = vshll.u32 %v244, 16
      %v607 = vrot.slane %v605, 5
      %v608 = vsel %vm248, %v603, %v607
      %v610 = vshrl.u32 %v212, 16
      %v612 = vrot.slane %v610, 4
      %v613 = vshll.u32 %v212, 16
      %v615 = vrot.slane %v613, 5
      %v616 = vor.u32 %v612, %v615
      %v617 = vrot.slane %v616, 4
      %v619 = vshll.u32 %v213, 16
      %v621 = vrot.slane %v619, 5
      %v622 = vsel %vm248, %v617, %v621
      %v623 = vshrl.u32 %v213, 16
      %v625 = vrot.slane %v623, 4
      %v626 = vor.u32 %v625, %v621
      %v627 = vrot.slane %v626, 4
      %v629 = vshll.u32 %v245, 16
      %v631 = vrot.slane %v629, 5
      %v632 = vsel %vm248, %v627, %v631
      %s633 = scalar_lea.vmem %s1, 64
      %v634 = vld [vmem:[%s633] sm:$0xf]
      %v635 = vld [vmem:[%s633 + $0x4] sm:$0xf]
      %v636 = vld [vmem:[%s633 + $0x8] sm:$0xf]
      %v637 = vld [vmem:[%s633 + $0xc] sm:$0xf]
      %v638 = vld [vmem:[%s633 + $0x10] sm:$0xf]
      %v639 = vld [vmem:[%s633 + $0x14] sm:$0xf]
      %v640 = vld [vmem:[%s633 + $0x18] sm:$0xf]
      %v641 = vld [vmem:[%s633 + $0x1c] sm:$0xf]
      %v642 = vld [vmem:[%s633 + $0x20] sm:$0xf]
      %v643 = vld [vmem:[%s633 + $0x24] sm:$0xf]
      %v644 = vld [vmem:[%s633 + $0x28] sm:$0xf]
      %v645 = vld [vmem:[%s633 + $0x2c] sm:$0xf]
      %v646 = vld [vmem:[%s633 + $0x30] sm:$0xf]
      %v647 = vld [vmem:[%s633 + $0x34] sm:$0xf]
      %v648 = vld [vmem:[%s633 + $0x38] sm:$0xf]
      %v649 = vld [vmem:[%s633 + $0x3c] sm:$0xf]
      %v650 = vunpack.c.l.b16 %v262
      %v651 = vunpack.c.l.b16 %v272
      %v652 = vunpack.c.l.b16 %v286
      %v653 = vunpack.c.l.b16 %v296
      %v654 = vunpack.c.l.b16 %v310
      %v655 = vunpack.c.l.b16 %v320
      %v656 = vunpack.c.l.b16 %v334
      %v657 = vunpack.c.l.b16 %v344
      %v658 = vunpack.c.l.b16 %v358
      %v659 = vunpack.c.l.b16 %v368
      %v660 = vunpack.c.l.b16 %v382
      %v661 = vunpack.c.l.b16 %v392
      %v662 = vunpack.c.l.b16 %v406
      %v663 = vunpack.c.l.b16 %v416
      %v664 = vunpack.c.l.b16 %v430
      %v665 = vunpack.c.l.b16 %v440
      %v666 = vunpack.c.l.b16 %v454
      %v667 = vunpack.c.l.b16 %v464
      %v668 = vunpack.c.l.b16 %v478
      %v669 = vunpack.c.l.b16 %v488
      %v670 = vunpack.c.l.b16 %v502
      %v671 = vunpack.c.l.b16 %v512
      %v672 = vunpack.c.l.b16 %v526
      %v673 = vunpack.c.l.b16 %v536
      %v674 = vunpack.c.l.b16 %v550
      %v675 = vunpack.c.l.b16 %v560
      %v676 = vunpack.c.l.b16 %v574
      %v677 = vunpack.c.l.b16 %v584
      %v678 = vunpack.c.l.b16 %v598
      %v679 = vunpack.c.l.b16 %v608
      %v680 = vunpack.c.l.b16 %v622
      %v681 = vunpack.c.l.b16 %v632
      %v682 = vpack.c.b16 %v651, %v650
      %v683 = vpack.c.b16 %v653, %v652
      %v684 = vpack.c.b16 %v655, %v654
      %v685 = vpack.c.b16 %v657, %v656
      %v686 = vpack.c.b16 %v659, %v658
      %v687 = vpack.c.b16 %v661, %v660
      %v688 = vpack.c.b16 %v663, %v662
      %v689 = vpack.c.b16 %v665, %v664
      %v690 = vpack.c.b16 %v667, %v666
      %v691 = vpack.c.b16 %v669, %v668
      %v692 = vpack.c.b16 %v671, %v670
      %v693 = vpack.c.b16 %v673, %v672
      %v694 = vpack.c.b16 %v675, %v674
      %v695 = vpack.c.b16 %v677, %v676
      %v696 = vpack.c.b16 %v679, %v678
      %v697 = vpack.c.b16 %v681, %v680
      %v730 = vunpack.c.l.b16 %v634
      %v731 = vunpack.c.l.b16 %v635
      %v732 = vunpack.c.l.b16 %v636
      %v733 = vunpack.c.l.b16 %v637
      %v734 = vunpack.c.l.b16 %v638
      %v735 = vunpack.c.l.b16 %v639
      %v736 = vunpack.c.l.b16 %v640
      %v737 = vunpack.c.l.b16 %v641
      %v738 = vunpack.c.l.b16 %v642
      %v739 = vunpack.c.l.b16 %v643
      %v740 = vunpack.c.l.b16 %v644
      %v741 = vunpack.c.l.b16 %v645
      %v742 = vunpack.c.l.b16 %v646
      %v743 = vunpack.c.l.b16 %v647
      %v744 = vunpack.c.l.b16 %v648
      %v745 = vunpack.c.l.b16 %v649
      %v746 = vpack.c.b16 %v731, %v730
      %v747 = vpack.c.b16 %v733, %v732
      %v748 = vpack.c.b16 %v735, %v734
      %v749 = vpack.c.b16 %v737, %v736
      %v750 = vpack.c.b16 %v739, %v738
      %v751 = vpack.c.b16 %v741, %v740
      %v752 = vpack.c.b16 %v743, %v742
      %v753 = vpack.c.b16 %v745, %v744
      %762 = vmatpush.bf16.msra.mxu0 %v753
      %763 = vmatpush.bf16.msra.mxu0 %v752
      %764 = vmatpush.bf16.msra.mxu0 %v751
      %765 = vmatpush.bf16.msra.mxu0 %v750
      %766 = vmatpush.bf16.msra.mxu0 %v749
      %767 = vmatpush.bf16.msra.mxu0 %v748
      %768 = vmatpush.bf16.msra.mxu0 %v747
      %769 = vmatpush.bf16.msra.mxu0 %v746
      %770 = vmatmul.bf16.gmra.mxu0 %v682
      %v771 = vpop.f32.mrf.mxu0
      %v772 = vadd.f32 0.0, %v771
      %v773 = vpop.f32.mrf.mxu0
      %v774 = vadd.f32 0.0, %v773
      %775 = vmatmul.bf16.gmra.mxu0 %v683
      %v776 = vpop.f32.mrf.mxu0
      %v777 = vadd.f32 0.0, %v776
      %v778 = vpop.f32.mrf.mxu0
      %v779 = vadd.f32 0.0, %v778
      %780 = vmatmul.bf16.gmra.mxu0 %v684
      %v781 = vpop.f32.mrf.mxu0
      %v782 = vadd.f32 0.0, %v781
      %v783 = vpop.f32.mrf.mxu0
      %v784 = vadd.f32 0.0, %v783
      %785 = vmatmul.bf16.gmra.mxu0 %v685
      %v786 = vpop.f32.mrf.mxu0
      %v787 = vadd.f32 0.0, %v786
      %v788 = vpop.f32.mrf.mxu0
      %v789 = vadd.f32 0.0, %v788
      %790 = vmatmul.bf16.gmra.mxu0 %v686
      %v791 = vpop.f32.mrf.mxu0
      %v792 = vadd.f32 0.0, %v791
      %v793 = vpop.f32.mrf.mxu0
      %v794 = vadd.f32 0.0, %v793
      %795 = vmatmul.bf16.gmra.mxu0 %v687
      %v796 = vpop.f32.mrf.mxu0
      %v797 = vadd.f32 0.0, %v796
      %v798 = vpop.f32.mrf.mxu0
      %v799 = vadd.f32 0.0, %v798
      %800 = vmatmul.bf16.gmra.mxu0 %v688
      %v801 = vpop.f32.mrf.mxu0
      %v802 = vadd.f32 0.0, %v801
      %v803 = vpop.f32.mrf.mxu0
      %v804 = vadd.f32 0.0, %v803
      %805 = vmatmul.bf16.gmra.mxu0 %v689
      %v806 = vpop.f32.mrf.mxu0
      %v807 = vadd.f32 0.0, %v806
      %v808 = vpop.f32.mrf.mxu0
      %v809 = vadd.f32 0.0, %v808
      %810 = vmatmul.bf16.gmra.mxu0 %v690
      %v811 = vpop.f32.mrf.mxu0
      %v812 = vadd.f32 0.0, %v811
      %v813 = vpop.f32.mrf.mxu0
      %v814 = vadd.f32 0.0, %v813
      %815 = vmatmul.bf16.gmra.mxu0 %v691
      %v816 = vpop.f32.mrf.mxu0
      %v817 = vadd.f32 0.0, %v816
      %v818 = vpop.f32.mrf.mxu0
      %v819 = vadd.f32 0.0, %v818
      %820 = vmatmul.bf16.gmra.mxu0 %v692
      %v821 = vpop.f32.mrf.mxu0
      %v822 = vadd.f32 0.0, %v821
      %v823 = vpop.f32.mrf.mxu0
      %v824 = vadd.f32 0.0, %v823
      %825 = vmatmul.bf16.gmra.mxu0 %v693
      %v826 = vpop.f32.mrf.mxu0
      %v827 = vadd.f32 0.0, %v826
      %v828 = vpop.f32.mrf.mxu0
      %v829 = vadd.f32 0.0, %v828
      %830 = vmatmul.bf16.gmra.mxu0 %v694
      %v831 = vpop.f32.mrf.mxu0
      %v832 = vadd.f32 0.0, %v831
      %v833 = vpop.f32.mrf.mxu0
      %v834 = vadd.f32 0.0, %v833
      %835 = vmatmul.bf16.gmra.mxu0 %v695
      %v836 = vpop.f32.mrf.mxu0
      %v837 = vadd.f32 0.0, %v836
      %v838 = vpop.f32.mrf.mxu0
      %v839 = vadd.f32 0.0, %v838
      %840 = vmatmul.bf16.gmra.mxu0 %v696
      %v841 = vpop.f32.mrf.mxu0
      %v842 = vadd.f32 0.0, %v841
      %v843 = vpop.f32.mrf.mxu0
      %v844 = vadd.f32 0.0, %v843
      %845 = vmatmul.bf16.gmra.mxu0 %v697
      %v846 = vpop.f32.mrf.mxu0
      %v847 = vadd.f32 0.0, %v846
      %v848 = vpop.f32.mrf.mxu0
      %v849 = vadd.f32 0.0, %v848
      %850 = vdwg.mxu0
      %v883 = vunpack.c.l.b16 %v182
      %v884 = vunpack.c.l.b16 %v183
      %v885 = vunpack.c.l.b16 %v184
      %v886 = vunpack.c.l.b16 %v185
      %v887 = vunpack.c.l.b16 %v186
      %v888 = vunpack.c.l.b16 %v187
      %v889 = vunpack.c.l.b16 %v188
      %v890 = vunpack.c.l.b16 %v189
      %v891 = vunpack.c.l.b16 %v190
      %v892 = vunpack.c.l.b16 %v191
      %v893 = vunpack.c.l.b16 %v192
      %v894 = vunpack.c.l.b16 %v193
      %v895 = vunpack.c.l.b16 %v194
      %v896 = vunpack.c.l.b16 %v195
      %v897 = vunpack.c.l.b16 %v196
      %v898 = vunpack.c.l.b16 %v197
      %v899 = vunpack.c.l.b16 %v198
      %v900 = vunpack.c.l.b16 %v199
      %v901 = vunpack.c.l.b16 %v200
      %v902 = vunpack.c.l.b16 %v201
      %v903 = vunpack.c.l.b16 %v202
      %v904 = vunpack.c.l.b16 %v203
      %v905 = vunpack.c.l.b16 %v204
      %v906 = vunpack.c.l.b16 %v205
      %v907 = vunpack.c.l.b16 %v206
      %v908 = vunpack.c.l.b16 %v207
      %v909 = vunpack.c.l.b16 %v208
      %v910 = vunpack.c.l.b16 %v209
      %v911 = vunpack.c.l.b16 %v210
      %v912 = vunpack.c.l.b16 %v211
      %v913 = vunpack.c.l.b16 %v212
      %v914 = vunpack.c.l.b16 %v213
      %v915 = vpack.c.b16 %v884, %v883
      %v916 = vpack.c.b16 %v886, %v885
      %v917 = vpack.c.b16 %v888, %v887
      %v918 = vpack.c.b16 %v890, %v889
      %v919 = vpack.c.b16 %v892, %v891
      %v920 = vpack.c.b16 %v894, %v893
      %v921 = vpack.c.b16 %v896, %v895
      %v922 = vpack.c.b16 %v898, %v897
      %v923 = vpack.c.b16 %v900, %v899
      %v924 = vpack.c.b16 %v902, %v901
      %v925 = vpack.c.b16 %v904, %v903
      %v926 = vpack.c.b16 %v906, %v905
      %v927 = vpack.c.b16 %v908, %v907
      %v928 = vpack.c.b16 %v910, %v909
      %v929 = vpack.c.b16 %v912, %v911
      %v930 = vpack.c.b16 %v914, %v913
      %v963 = vunpack.c.l.b16 %v214
      %v964 = vunpack.c.l.b16 %v215
      %v965 = vunpack.c.l.b16 %v216
      %v966 = vunpack.c.l.b16 %v217
      %v967 = vunpack.c.l.b16 %v218
      %v968 = vunpack.c.l.b16 %v219
      %v969 = vunpack.c.l.b16 %v220
      %v970 = vunpack.c.l.b16 %v221
      %v971 = vunpack.c.l.b16 %v222
      %v972 = vunpack.c.l.b16 %v223
      %v973 = vunpack.c.l.b16 %v224
      %v974 = vunpack.c.l.b16 %v225
      %v975 = vunpack.c.l.b16 %v226
      %v976 = vunpack.c.l.b16 %v227
      %v977 = vunpack.c.l.b16 %v228
      %v978 = vunpack.c.l.b16 %v229
      %v979 = vpack.c.b16 %v964, %v963
      %v980 = vpack.c.b16 %v966, %v965
      %v981 = vpack.c.b16 %v968, %v967
      %v982 = vpack.c.b16 %v970, %v969
      %v983 = vpack.c.b16 %v972, %v971
      %v984 = vpack.c.b16 %v974, %v973
      %v985 = vpack.c.b16 %v976, %v975
      %v986 = vpack.c.b16 %v978, %v977
      %995 = vmatpush.bf16.msra.mxu0 %v986
      %996 = vmatpush.bf16.msra.mxu0 %v985
      %997 = vmatpush.bf16.msra.mxu0 %v984
      %998 = vmatpush.bf16.msra.mxu0 %v983
      %999 = vmatpush.bf16.msra.mxu0 %v982
      %1000 = vmatpush.bf16.msra.mxu0 %v981
      %1001 = vmatpush.bf16.msra.mxu0 %v980
      %1002 = vmatpush.bf16.msra.mxu0 %v979
      %1003 = vmatmul.bf16.gmra.mxu0 %v915
      %v1004 = vpop.f32.mrf.mxu0
      %v1005 = vadd.f32 %v772, %v1004
      %v1006 = vpop.f32.mrf.mxu0
      %v1007 = vadd.f32 %v774, %v1006
      %1008 = vmatmul.bf16.gmra.mxu0 %v916
      %v1009 = vpop.f32.mrf.mxu0
      %v1010 = vadd.f32 %v777, %v1009
      %v1011 = vpop.f32.mrf.mxu0
      %v1012 = vadd.f32 %v779, %v1011
      %1013 = vmatmul.bf16.gmra.mxu0 %v917
      %v1014 = vpop.f32.mrf.mxu0
      %v1015 = vadd.f32 %v782, %v1014
      %v1016 = vpop.f32.mrf.mxu0
      %v1017 = vadd.f32 %v784, %v1016
      %1018 = vmatmul.bf16.gmra.mxu0 %v918
      %v1019 = vpop.f32.mrf.mxu0
      %v1020 = vadd.f32 %v787, %v1019
      %v1021 = vpop.f32.mrf.mxu0
      %v1022 = vadd.f32 %v789, %v1021
      %1023 = vmatmul.bf16.gmra.mxu0 %v919
      %v1024 = vpop.f32.mrf.mxu0
      %v1025 = vadd.f32 %v792, %v1024
      %v1026 = vpop.f32.mrf.mxu0
      %v1027 = vadd.f32 %v794, %v1026
      %1028 = vmatmul.bf16.gmra.mxu0 %v920
      %v1029 = vpop.f32.mrf.mxu0
      %v1030 = vadd.f32 %v797, %v1029
      %v1031 = vpop.f32.mrf.mxu0
      %v1032 = vadd.f32 %v799, %v1031
      %1033 = vmatmul.bf16.gmra.mxu0 %v921
      %v1034 = vpop.f32.mrf.mxu0
      %v1035 = vadd.f32 %v802, %v1034
      %v1036 = vpop.f32.mrf.mxu0
      %v1037 = vadd.f32 %v804, %v1036
      %1038 = vmatmul.bf16.gmra.mxu0 %v922
      %v1039 = vpop.f32.mrf.mxu0
      %v1040 = vadd.f32 %v807, %v1039
      %v1041 = vpop.f32.mrf.mxu0
      %v1042 = vadd.f32 %v809, %v1041
      %1043 = vmatmul.bf16.gmra.mxu0 %v923
      %v1044 = vpop.f32.mrf.mxu0
      %v1045 = vadd.f32 %v812, %v1044
      %v1046 = vpop.f32.mrf.mxu0
      %v1047 = vadd.f32 %v814, %v1046
      %1048 = vmatmul.bf16.gmra.mxu0 %v924
      %v1049 = vpop.f32.mrf.mxu0
      %v1050 = vadd.f32 %v817, %v1049
      %v1051 = vpop.f32.mrf.mxu0
      %v1052 = vadd.f32 %v819, %v1051
      %1053 = vmatmul.bf16.gmra.mxu0 %v925
      %v1054 = vpop.f32.mrf.mxu0
      %v1055 = vadd.f32 %v822, %v1054
      %v1056 = vpop.f32.mrf.mxu0
      %v1057 = vadd.f32 %v824, %v1056
      %1058 = vmatmul.bf16.gmra.mxu0 %v926
      %v1059 = vpop.f32.mrf.mxu0
      %v1060 = vadd.f32 %v827, %v1059
      %v1061 = vpop.f32.mrf.mxu0
      %v1062 = vadd.f32 %v829, %v1061
      %1063 = vmatmul.bf16.gmra.mxu0 %v927
      %v1064 = vpop.f32.mrf.mxu0
      %v1065 = vadd.f32 %v832, %v1064
      %v1066 = vpop.f32.mrf.mxu0
      %v1067 = vadd.f32 %v834, %v1066
      %1068 = vmatmul.bf16.gmra.mxu0 %v928
      %v1069 = vpop.f32.mrf.mxu0
      %v1070 = vadd.f32 %v837, %v1069
      %v1071 = vpop.f32.mrf.mxu0
      %v1072 = vadd.f32 %v839, %v1071
      %1073 = vmatmul.bf16.gmra.mxu0 %v929
      %v1074 = vpop.f32.mrf.mxu0
      %v1075 = vadd.f32 %v842, %v1074
      %v1076 = vpop.f32.mrf.mxu0
      %v1077 = vadd.f32 %v844, %v1076
      %1078 = vmatmul.bf16.gmra.mxu0 %v930
      %v1079 = vpop.f32.mrf.mxu0
      %v1080 = vadd.f32 %v847, %v1079
      %v1081 = vpop.f32.mrf.mxu0
      %v1082 = vadd.f32 %v849, %v1081
      %1083 = vdwg.mxu0
      %v1084 = vld [vmem:[%s172] sm:$0xe]
      %v1085 = vld [vmem:[%s172 + $0xc] sm:$0xe]
      %v1086 = vld [vmem:[%s172 + $0x18] sm:$0xe]
      %v1087 = vld [vmem:[%s172 + $0x24] sm:$0xe]
      %v1088 = vld [vmem:[%s172 + $0x30] sm:$0xe]
      %v1089 = vld [vmem:[%s172 + $0x3c] sm:$0xe]
      %v1090 = vld [vmem:[%s172 + $0x48] sm:$0xe]
      %v1091 = vld [vmem:[%s172 + $0x54] sm:$0xe]
      %v1092 = vld [vmem:[%s172 + $0x60] sm:$0xe]
      %v1093 = vld [vmem:[%s172 + $0x6c] sm:$0xe]
      %v1094 = vld [vmem:[%s172 + $0x78] sm:$0xe]
      %v1095 = vld [vmem:[%s172 + $0x84] sm:$0xe]
      %v1096 = vld [vmem:[%s172 + $0x90] sm:$0xe]
      %v1097 = vld [vmem:[%s172 + $0x9c] sm:$0xe]
      %v1098 = vld [vmem:[%s172 + $0xa8] sm:$0xe]
      %v1099 = vld [vmem:[%s172 + $0xb4] sm:$0xe]
      %vm1132 = vcmask 1042432
      %vm1133 = vcmask 1046532
      %vm1134 = vmor %vm1132, %vm1133
      %v1135 = vrot.slane %v1084, 5
      %v1136 = vrot.slane %v1135, 4
      %v1137 = vrot.slane %v183, 5
      %v1138 = vsel %vm1134, %v1136, %v1137
      %v1139 = vrot.slane %v1137, 4
      %v1140 = vrot.slane %v230, 5
      %v1141 = vsel %vm1134, %v1139, %v1140
      %v1142 = vrot.slane %v1085, 5
      %v1143 = vrot.slane %v1142, 4
      %v1144 = vrot.slane %v185, 5
      %v1145 = vsel %vm1134, %v1143, %v1144
      %v1146 = vrot.slane %v1144, 4
      %v1147 = vrot.slane %v231, 5
      %v1148 = vsel %vm1134, %v1146, %v1147
      %v1149 = vrot.slane %v1086, 5
      %v1150 = vrot.slane %v1149, 4
      %v1151 = vrot.slane %v187, 5
      %v1152 = vsel %vm1134, %v1150, %v1151
      %v1153 = vrot.slane %v1151, 4
      %v1154 = vrot.slane %v232, 5
      %v1155 = vsel %vm1134, %v1153, %v1154
      %v1156 = vrot.slane %v1087, 5
      %v1157 = vrot.slane %v1156, 4
      %v1158 = vrot.slane %v189, 5
      %v1159 = vsel %vm1134, %v1157, %v1158
      %v1160 = vrot.slane %v1158, 4
      %v1161 = vrot.slane %v233, 5
      %v1162 = vsel %vm1134, %v1160, %v1161
      %v1163 = vrot.slane %v1088, 5
      %v1164 = vrot.slane %v1163, 4
      %v1165 = vrot.slane %v191, 5
      %v1166 = vsel %vm1134, %v1164, %v1165
      %v1167 = vrot.slane %v1165, 4
      %v1168 = vrot.slane %v234, 5
      %v1169 = vsel %vm1134, %v1167, %v1168
      %v1170 = vrot.slane %v1089, 5
      %v1171 = vrot.slane %v1170, 4
      %v1172 = vrot.slane %v193, 5
      %v1173 = vsel %vm1134, %v1171, %v1172
      %v1174 = vrot.slane %v1172, 4
      %v1175 = vrot.slane %v235, 5
      %v1176 = vsel %vm1134, %v1174, %v1175
      %v1177 = vrot.slane %v1090, 5
      %v1178 = vrot.slane %v1177, 4
      %v1179 = vrot.slane %v195, 5
      %v1180 = vsel %vm1134, %v1178, %v1179
      %v1181 = vrot.slane %v1179, 4
      %v1182 = vrot.slane %v236, 5
      %v1183 = vsel %vm1134, %v1181, %v1182
      %v1184 = vrot.slane %v1091, 5
      %v1185 = vrot.slane %v1184, 4
      %v1186 = vrot.slane %v197, 5
      %v1187 = vsel %vm1134, %v1185, %v1186
      %v1188 = vrot.slane %v1186, 4
      %v1189 = vrot.slane %v237, 5
      %v1190 = vsel %vm1134, %v1188, %v1189
      %v1191 = vrot.slane %v1092, 5
      %v1192 = vrot.slane %v1191, 4
      %v1193 = vrot.slane %v199, 5
      %v1194 = vsel %vm1134, %v1192, %v1193
      %v1195 = vrot.slane %v1193, 4
      %v1196 = vrot.slane %v238, 5
      %v1197 = vsel %vm1134, %v1195, %v1196
      %v1198 = vrot.slane %v1093, 5
      %v1199 = vrot.slane %v1198, 4
      %v1200 = vrot.slane %v201, 5
      %v1201 = vsel %vm1134, %v1199, %v1200
      %v1202 = vrot.slane %v1200, 4
      %v1203 = vrot.slane %v239, 5
      %v1204 = vsel %vm1134, %v1202, %v1203
      %v1205 = vrot.slane %v1094, 5
      %v1206 = vrot.slane %v1205, 4
      %v1207 = vrot.slane %v203, 5
      %v1208 = vsel %vm1134, %v1206, %v1207
      %v1209 = vrot.slane %v1207, 4
      %v1210 = vrot.slane %v240, 5
      %v1211 = vsel %vm1134, %v1209, %v1210
      %v1212 = vrot.slane %v1095, 5
      %v1213 = vrot.slane %v1212, 4
      %v1214 = vrot.slane %v205, 5
      %v1215 = vsel %vm1134, %v1213, %v1214
      %v1216 = vrot.slane %v1214, 4
      %v1217 = vrot.slane %v241, 5
      %v1218 = vsel %vm1134, %v1216, %v1217
      %v1219 = vrot.slane %v1096, 5
      %v1220 = vrot.slane %v1219, 4
      %v1221 = vrot.slane %v207, 5
      %v1222 = vsel %vm1134, %v1220, %v1221
      %v1223 = vrot.slane %v1221, 4
      %v1224 = vrot.slane %v242, 5
      %v1225 = vsel %vm1134, %v1223, %v1224
      %v1226 = vrot.slane %v1097, 5
      %v1227 = vrot.slane %v1226, 4
      %v1228 = vrot.slane %v209, 5
      %v1229 = vsel %vm1134, %v1227, %v1228
      %v1230 = vrot.slane %v1228, 4
      %v1231 = vrot.slane %v243, 5
      %v1232 = vsel %vm1134, %v1230, %v1231
      %v1233 = vrot.slane %v1098, 5
      %v1234 = vrot.slane %v1233, 4
      %v1235 = vrot.slane %v211, 5
      %v1236 = vsel %vm1134, %v1234, %v1235
      %v1237 = vrot.slane %v1235, 4
      %v1238 = vrot.slane %v244, 5
      %v1239 = vsel %vm1134, %v1237, %v1238
      %v1240 = vrot.slane %v1099, 5
      %v1241 = vrot.slane %v1240, 4
      %v1242 = vrot.slane %v213, 5
      %v1243 = vsel %vm1134, %v1241, %v1242
      %v1244 = vrot.slane %v1242, 4
      %v1245 = vrot.slane %v245, 5
      %v1246 = vsel %vm1134, %v1244, %v1245
      %s1247 = scalar_lea.vmem %s1, 128
      %v1248 = vld [vmem:[%s1247] sm:$0xf]
      %v1249 = vld [vmem:[%s1247 + $0x4] sm:$0xf]
      %v1250 = vld [vmem:[%s1247 + $0x8] sm:$0xf]
      %v1251 = vld [vmem:[%s1247 + $0xc] sm:$0xf]
      %v1252 = vld [vmem:[%s1247 + $0x10] sm:$0xf]
      %v1253 = vld [vmem:[%s1247 + $0x14] sm:$0xf]
      %v1254 = vld [vmem:[%s1247 + $0x18] sm:$0xf]
      %v1255 = vld [vmem:[%s1247 + $0x1c] sm:$0xf]
      %v1256 = vld [vmem:[%s1247 + $0x20] sm:$0xf]
      %v1257 = vld [vmem:[%s1247 + $0x24] sm:$0xf]
      %v1258 = vld [vmem:[%s1247 + $0x28] sm:$0xf]
      %v1259 = vld [vmem:[%s1247 + $0x2c] sm:$0xf]
      %v1260 = vld [vmem:[%s1247 + $0x30] sm:$0xf]
      %v1261 = vld [vmem:[%s1247 + $0x34] sm:$0xf]
      %v1262 = vld [vmem:[%s1247 + $0x38] sm:$0xf]
      %v1263 = vld [vmem:[%s1247 + $0x3c] sm:$0xf]
      %v1264 = vunpack.c.l.b16 %v1138
      %v1265 = vunpack.c.l.b16 %v1141
      %v1266 = vunpack.c.l.b16 %v1145
      %v1267 = vunpack.c.l.b16 %v1148
      %v1268 = vunpack.c.l.b16 %v1152
      %v1269 = vunpack.c.l.b16 %v1155
      %v1270 = vunpack.c.l.b16 %v1159
      %v1271 = vunpack.c.l.b16 %v1162
      %v1272 = vunpack.c.l.b16 %v1166
      %v1273 = vunpack.c.l.b16 %v1169
      %v1274 = vunpack.c.l.b16 %v1173
      %v1275 = vunpack.c.l.b16 %v1176
      %v1276 = vunpack.c.l.b16 %v1180
      %v1277 = vunpack.c.l.b16 %v1183
      %v1278 = vunpack.c.l.b16 %v1187
      %v1279 = vunpack.c.l.b16 %v1190
      %v1280 = vunpack.c.l.b16 %v1194
      %v1281 = vunpack.c.l.b16 %v1197
      %v1282 = vunpack.c.l.b16 %v1201
      %v1283 = vunpack.c.l.b16 %v1204
      %v1284 = vunpack.c.l.b16 %v1208
      %v1285 = vunpack.c.l.b16 %v1211
      %v1286 = vunpack.c.l.b16 %v1215
      %v1287 = vunpack.c.l.b16 %v1218
      %v1288 = vunpack.c.l.b16 %v1222
      %v1289 = vunpack.c.l.b16 %v1225
      %v1290 = vunpack.c.l.b16 %v1229
      %v1291 = vunpack.c.l.b16 %v1232
      %v1292 = vunpack.c.l.b16 %v1236
      %v1293 = vunpack.c.l.b16 %v1239
      %v1294 = vunpack.c.l.b16 %v1243
      %v1295 = vunpack.c.l.b16 %v1246
      %v1296 = vpack.c.b16 %v1265, %v1264
      %v1297 = vpack.c.b16 %v1267, %v1266
      %v1298 = vpack.c.b16 %v1269, %v1268
      %v1299 = vpack.c.b16 %v1271, %v1270
      %v1300 = vpack.c.b16 %v1273, %v1272
      %v1301 = vpack.c.b16 %v1275, %v1274
      %v1302 = vpack.c.b16 %v1277, %v1276
      %v1303 = vpack.c.b16 %v1279, %v1278
      %v1304 = vpack.c.b16 %v1281, %v1280
      %v1305 = vpack.c.b16 %v1283, %v1282
      %v1306 = vpack.c.b16 %v1285, %v1284
      %v1307 = vpack.c.b16 %v1287, %v1286
      %v1308 = vpack.c.b16 %v1289, %v1288
      %v1309 = vpack.c.b16 %v1291, %v1290
      %v1310 = vpack.c.b16 %v1293, %v1292
      %v1311 = vpack.c.b16 %v1295, %v1294
      %v1344 = vunpack.c.l.b16 %v1248
      %v1345 = vunpack.c.l.b16 %v1249
      %v1346 = vunpack.c.l.b16 %v1250
      %v1347 = vunpack.c.l.b16 %v1251
      %v1348 = vunpack.c.l.b16 %v1252
      %v1349 = vunpack.c.l.b16 %v1253
      %v1350 = vunpack.c.l.b16 %v1254
      %v1351 = vunpack.c.l.b16 %v1255
      %v1352 = vunpack.c.l.b16 %v1256
      %v1353 = vunpack.c.l.b16 %v1257
      %v1354 = vunpack.c.l.b16 %v1258
      %v1355 = vunpack.c.l.b16 %v1259
      %v1356 = vunpack.c.l.b16 %v1260
      %v1357 = vunpack.c.l.b16 %v1261
      %v1358 = vunpack.c.l.b16 %v1262
      %v1359 = vunpack.c.l.b16 %v1263
      %v1360 = vpack.c.b16 %v1345, %v1344
      %v1361 = vpack.c.b16 %v1347, %v1346
      %v1362 = vpack.c.b16 %v1349, %v1348
      %v1363 = vpack.c.b16 %v1351, %v1350
      %v1364 = vpack.c.b16 %v1353, %v1352
      %v1365 = vpack.c.b16 %v1355, %v1354
      %v1366 = vpack.c.b16 %v1357, %v1356
      %v1367 = vpack.c.b16 %v1359, %v1358
      %1376 = vmatpush.bf16.msra.mxu0 %v1367
      %1377 = vmatpush.bf16.msra.mxu0 %v1366
      %1378 = vmatpush.bf16.msra.mxu0 %v1365
      %1379 = vmatpush.bf16.msra.mxu0 %v1364
      %1380 = vmatpush.bf16.msra.mxu0 %v1363
      %1381 = vmatpush.bf16.msra.mxu0 %v1362
      %1382 = vmatpush.bf16.msra.mxu0 %v1361
      %1383 = vmatpush.bf16.msra.mxu0 %v1360
      %1384 = vmatmul.bf16.gmra.mxu0 %v1296
      %v1385 = vpop.f32.mrf.mxu0
      %v1386 = vadd.f32 0.0, %v1385
      %v1387 = vpop.f32.mrf.mxu0
      %v1388 = vadd.f32 0.0, %v1387
      %1389 = vmatmul.bf16.gmra.mxu0 %v1297
      %v1390 = vpop.f32.mrf.mxu0
      %v1391 = vadd.f32 0.0, %v1390
      %v1392 = vpop.f32.mrf.mxu0
      %v1393 = vadd.f32 0.0, %v1392
      %1394 = vmatmul.bf16.gmra.mxu0 %v1298
      %v1395 = vpop.f32.mrf.mxu0
      %v1396 = vadd.f32 0.0, %v1395
      %v1397 = vpop.f32.mrf.mxu0
      %v1398 = vadd.f32 0.0, %v1397
      %1399 = vmatmul.bf16.gmra.mxu0 %v1299
      %v1400 = vpop.f32.mrf.mxu0
      %v1401 = vadd.f32 0.0, %v1400
      %v1402 = vpop.f32.mrf.mxu0
      %v1403 = vadd.f32 0.0, %v1402
      %1404 = vmatmul.bf16.gmra.mxu0 %v1300
      %v1405 = vpop.f32.mrf.mxu0
      %v1406 = vadd.f32 0.0, %v1405
      %v1407 = vpop.f32.mrf.mxu0
      %v1408 = vadd.f32 0.0, %v1407
      %1409 = vmatmul.bf16.gmra.mxu0 %v1301
      %v1410 = vpop.f32.mrf.mxu0
      %v1411 = vadd.f32 0.0, %v1410
      %v1412 = vpop.f32.mrf.mxu0
      %v1413 = vadd.f32 0.0, %v1412
      %1414 = vmatmul.bf16.gmra.mxu0 %v1302
      %v1415 = vpop.f32.mrf.mxu0
      %v1416 = vadd.f32 0.0, %v1415
      %v1417 = vpop.f32.mrf.mxu0
      %v1418 = vadd.f32 0.0, %v1417
      %1419 = vmatmul.bf16.gmra.mxu0 %v1303
      %v1420 = vpop.f32.mrf.mxu0
      %v1421 = vadd.f32 0.0, %v1420
      %v1422 = vpop.f32.mrf.mxu0
      %v1423 = vadd.f32 0.0, %v1422
      %1424 = vmatmul.bf16.gmra.mxu0 %v1304
      %v1425 = vpop.f32.mrf.mxu0
      %v1426 = vadd.f32 0.0, %v1425
      %v1427 = vpop.f32.mrf.mxu0
      %v1428 = vadd.f32 0.0, %v1427
      %1429 = vmatmul.bf16.gmra.mxu0 %v1305
      %v1430 = vpop.f32.mrf.mxu0
      %v1431 = vadd.f32 0.0, %v1430
      %v1432 = vpop.f32.mrf.mxu0
      %v1433 = vadd.f32 0.0, %v1432
      %1434 = vmatmul.bf16.gmra.mxu0 %v1306
      %v1435 = vpop.f32.mrf.mxu0
      %v1436 = vadd.f32 0.0, %v1435
      %v1437 = vpop.f32.mrf.mxu0
      %v1438 = vadd.f32 0.0, %v1437
      %1439 = vmatmul.bf16.gmra.mxu0 %v1307
      %v1440 = vpop.f32.mrf.mxu0
      %v1441 = vadd.f32 0.0, %v1440
      %v1442 = vpop.f32.mrf.mxu0
      %v1443 = vadd.f32 0.0, %v1442
      %1444 = vmatmul.bf16.gmra.mxu0 %v1308
      %v1445 = vpop.f32.mrf.mxu0
      %v1446 = vadd.f32 0.0, %v1445
      %v1447 = vpop.f32.mrf.mxu0
      %v1448 = vadd.f32 0.0, %v1447
      %1449 = vmatmul.bf16.gmra.mxu0 %v1309
      %v1450 = vpop.f32.mrf.mxu0
      %v1451 = vadd.f32 0.0, %v1450
      %v1452 = vpop.f32.mrf.mxu0
      %v1453 = vadd.f32 0.0, %v1452
      %1454 = vmatmul.bf16.gmra.mxu0 %v1310
      %v1455 = vpop.f32.mrf.mxu0
      %v1456 = vadd.f32 0.0, %v1455
      %v1457 = vpop.f32.mrf.mxu0
      %v1458 = vadd.f32 0.0, %v1457
      %1459 = vmatmul.bf16.gmra.mxu0 %v1311
      %v1460 = vpop.f32.mrf.mxu0
      %v1461 = vadd.f32 0.0, %v1460
      %v1462 = vpop.f32.mrf.mxu0
      %v1463 = vadd.f32 0.0, %v1462
      %1464 = vdwg.mxu0
      %v1465 = vadd.f32 %v1005, %v1386
      %v1466 = vadd.f32 %v1007, %v1388
      %v1467 = vadd.f32 %v1010, %v1391
      %v1468 = vadd.f32 %v1012, %v1393
      %v1469 = vadd.f32 %v1015, %v1396
      %v1470 = vadd.f32 %v1017, %v1398
      %v1471 = vadd.f32 %v1020, %v1401
      %v1472 = vadd.f32 %v1022, %v1403
      %v1473 = vadd.f32 %v1025, %v1406
      %v1474 = vadd.f32 %v1027, %v1408
      %v1475 = vadd.f32 %v1030, %v1411
      %v1476 = vadd.f32 %v1032, %v1413
      %v1477 = vadd.f32 %v1035, %v1416
      %v1478 = vadd.f32 %v1037, %v1418
      %v1479 = vadd.f32 %v1040, %v1421
      %v1480 = vadd.f32 %v1042, %v1423
      %v1481 = vadd.f32 %v1045, %v1426
      %v1482 = vadd.f32 %v1047, %v1428
      %v1483 = vadd.f32 %v1050, %v1431
      %v1484 = vadd.f32 %v1052, %v1433
      %v1485 = vadd.f32 %v1055, %v1436
      %v1486 = vadd.f32 %v1057, %v1438
      %v1487 = vadd.f32 %v1060, %v1441
      %v1488 = vadd.f32 %v1062, %v1443
      %v1489 = vadd.f32 %v1065, %v1446
      %v1490 = vadd.f32 %v1067, %v1448
      %v1491 = vadd.f32 %v1070, %v1451
      %v1492 = vadd.f32 %v1072, %v1453
      %v1493 = vadd.f32 %v1075, %v1456
      %v1494 = vadd.f32 %v1077, %v1458
      %v1495 = vadd.f32 %v1080, %v1461
      %v1496 = vadd.f32 %v1082, %v1463
      %s1497 = scalar_lea.vmem %s172, 12
      %v1498 = vld [vmem:[%s1497] sm:$0xf]
      %v1499 = vld [vmem:[%s1497 + $0x4] sm:$0xf]
      %v1500 = vld [vmem:[%s1497 + $0xc] sm:$0xf]
      %v1501 = vld [vmem:[%s1497 + $0x10] sm:$0xf]
      %v1502 = vld [vmem:[%s1497 + $0x18] sm:$0xf]
      %v1503 = vld [vmem:[%s1497 + $0x1c] sm:$0xf]
      %v1504 = vld [vmem:[%s1497 + $0x24] sm:$0xf]
      %v1505 = vld [vmem:[%s1497 + $0x28] sm:$0xf]
      %v1506 = vld [vmem:[%s1497 + $0x30] sm:$0xf]
      %v1507 = vld [vmem:[%s1497 + $0x34] sm:$0xf]
      %v1508 = vld [vmem:[%s1497 + $0x3c] sm:$0xf]
      %v1509 = vld [vmem:[%s1497 + $0x40] sm:$0xf]
      %v1510 = vld [vmem:[%s1497 + $0x48] sm:$0xf]
      %v1511 = vld [vmem:[%s1497 + $0x4c] sm:$0xf]
      %v1512 = vld [vmem:[%s1497 + $0x54] sm:$0xf]
      %v1513 = vld [vmem:[%s1497 + $0x58] sm:$0xf]
      %v1514 = vld [vmem:[%s1497 + $0x60] sm:$0xf]
      %v1515 = vld [vmem:[%s1497 + $0x64] sm:$0xf]
      %v1516 = vld [vmem:[%s1497 + $0x6c] sm:$0xf]
      %v1517 = vld [vmem:[%s1497 + $0x70] sm:$0xf]
      %v1518 = vld [vmem:[%s1497 + $0x78] sm:$0xf]
      %v1519 = vld [vmem:[%s1497 + $0x7c] sm:$0xf]
      %v1520 = vld [vmem:[%s1497 + $0x84] sm:$0xf]
      %v1521 = vld [vmem:[%s1497 + $0x88] sm:$0xf]
      %v1522 = vld [vmem:[%s1497 + $0x90] sm:$0xf]
      %v1523 = vld [vmem:[%s1497 + $0x94] sm:$0xf]
      %v1524 = vld [vmem:[%s1497 + $0x9c] sm:$0xf]
      %v1525 = vld [vmem:[%s1497 + $0xa0] sm:$0xf]
      %v1526 = vld [vmem:[%s1497 + $0xa8] sm:$0xf]
      %v1527 = vld [vmem:[%s1497 + $0xac] sm:$0xf]
      %v1528 = vld [vmem:[%s1497 + $0xb4] sm:$0xf]
      %v1529 = vld [vmem:[%s1497 + $0xb8] sm:$0xf]
      %s1530 = scalar_lea.vmem %s1, 192
      %v1531 = vld [vmem:[%s1530] sm:$0xf]
      %v1532 = vld [vmem:[%s1530 + $0x4] sm:$0xf]
      %v1533 = vld [vmem:[%s1530 + $0x8] sm:$0xf]
      %v1534 = vld [vmem:[%s1530 + $0xc] sm:$0xf]
      %v1535 = vld [vmem:[%s1530 + $0x10] sm:$0xf]
      %v1536 = vld [vmem:[%s1530 + $0x14] sm:$0xf]
      %v1537 = vld [vmem:[%s1530 + $0x18] sm:$0xf]
      %v1538 = vld [vmem:[%s1530 + $0x1c] sm:$0xf]
      %v1539 = vld [vmem:[%s1530 + $0x20] sm:$0xf]
      %v1540 = vld [vmem:[%s1530 + $0x24] sm:$0xf]
      %v1541 = vld [vmem:[%s1530 + $0x28] sm:$0xf]
      %v1542 = vld [vmem:[%s1530 + $0x2c] sm:$0xf]
      %v1543 = vld [vmem:[%s1530 + $0x30] sm:$0xf]
      %v1544 = vld [vmem:[%s1530 + $0x34] sm:$0xf]
      %v1545 = vld [vmem:[%s1530 + $0x38] sm:$0xf]
      %v1546 = vld [vmem:[%s1530 + $0x3c] sm:$0xf]
      %v1579 = vunpack.c.l.b16 %v1498
      %v1580 = vunpack.c.l.b16 %v1499
      %v1581 = vunpack.c.l.b16 %v1500
      %v1582 = vunpack.c.l.b16 %v1501
      %v1583 = vunpack.c.l.b16 %v1502
      %v1584 = vunpack.c.l.b16 %v1503
      %v1585 = vunpack.c.l.b16 %v1504
      %v1586 = vunpack.c.l.b16 %v1505
      %v1587 = vunpack.c.l.b16 %v1506
      %v1588 = vunpack.c.l.b16 %v1507
      %v1589 = vunpack.c.l.b16 %v1508
      %v1590 = vunpack.c.l.b16 %v1509
      %v1591 = vunpack.c.l.b16 %v1510
      %v1592 = vunpack.c.l.b16 %v1511
      %v1593 = vunpack.c.l.b16 %v1512
      %v1594 = vunpack.c.l.b16 %v1513
      %v1595 = vunpack.c.l.b16 %v1514
      %v1596 = vunpack.c.l.b16 %v1515
      %v1597 = vunpack.c.l.b16 %v1516
      %v1598 = vunpack.c.l.b16 %v1517
      %v1599 = vunpack.c.l.b16 %v1518
      %v1600 = vunpack.c.l.b16 %v1519
      %v1601 = vunpack.c.l.b16 %v1520
      %v1602 = vunpack.c.l.b16 %v1521
      %v1603 = vunpack.c.l.b16 %v1522
      %v1604 = vunpack.c.l.b16 %v1523
      %v1605 = vunpack.c.l.b16 %v1524
      %v1606 = vunpack.c.l.b16 %v1525
      %v1607 = vunpack.c.l.b16 %v1526
      %v1608 = vunpack.c.l.b16 %v1527
      %v1609 = vunpack.c.l.b16 %v1528
      %v1610 = vunpack.c.l.b16 %v1529
      %v1611 = vpack.c.b16 %v1580, %v1579
      %v1612 = vpack.c.b16 %v1582, %v1581
      %v1613 = vpack.c.b16 %v1584, %v1583
      %v1614 = vpack.c.b16 %v1586, %v1585
      %v1615 = vpack.c.b16 %v1588, %v1587
      %v1616 = vpack.c.b16 %v1590, %v1589
      %v1617 = vpack.c.b16 %v1592, %v1591
      %v1618 = vpack.c.b16 %v1594, %v1593
      %v1619 = vpack.c.b16 %v1596, %v1595
      %v1620 = vpack.c.b16 %v1598, %v1597
      %v1621 = vpack.c.b16 %v1600, %v1599
      %v1622 = vpack.c.b16 %v1602, %v1601
      %v1623 = vpack.c.b16 %v1604, %v1603
      %v1624 = vpack.c.b16 %v1606, %v1605
      %v1625 = vpack.c.b16 %v1608, %v1607
      %v1626 = vpack.c.b16 %v1610, %v1609
      %v1659 = vunpack.c.l.b16 %v1531
      %v1660 = vunpack.c.l.b16 %v1532
      %v1661 = vunpack.c.l.b16 %v1533
      %v1662 = vunpack.c.l.b16 %v1534
      %v1663 = vunpack.c.l.b16 %v1535
      %v1664 = vunpack.c.l.b16 %v1536
      %v1665 = vunpack.c.l.b16 %v1537
      %v1666 = vunpack.c.l.b16 %v1538
      %v1667 = vunpack.c.l.b16 %v1539
      %v1668 = vunpack.c.l.b16 %v1540
      %v1669 = vunpack.c.l.b16 %v1541
      %v1670 = vunpack.c.l.b16 %v1542
      %v1671 = vunpack.c.l.b16 %v1543
      %v1672 = vunpack.c.l.b16 %v1544
      %v1673 = vunpack.c.l.b16 %v1545
      %v1674 = vunpack.c.l.b16 %v1546
      %v1675 = vpack.c.b16 %v1660, %v1659
      %v1676 = vpack.c.b16 %v1662, %v1661
      %v1677 = vpack.c.b16 %v1664, %v1663
      %v1678 = vpack.c.b16 %v1666, %v1665
      %v1679 = vpack.c.b16 %v1668, %v1667
      %v1680 = vpack.c.b16 %v1670, %v1669
      %v1681 = vpack.c.b16 %v1672, %v1671
      %v1682 = vpack.c.b16 %v1674, %v1673
      %1691 = vmatpush.bf16.msra.mxu0 %v1682
      %1692 = vmatpush.bf16.msra.mxu0 %v1681
      %1693 = vmatpush.bf16.msra.mxu0 %v1680
      %1694 = vmatpush.bf16.msra.mxu0 %v1679
      %1695 = vmatpush.bf16.msra.mxu0 %v1678
      %1696 = vmatpush.bf16.msra.mxu0 %v1677
      %1697 = vmatpush.bf16.msra.mxu0 %v1676
      %1698 = vmatpush.bf16.msra.mxu0 %v1675
      %1699 = vmatmul.bf16.gmra.mxu0 %v1611
      %v1700 = vpop.f32.mrf.mxu0
      %v1701 = vadd.f32 0.0, %v1700
      %v1702 = vpop.f32.mrf.mxu0
      %v1703 = vadd.f32 0.0, %v1702
      %1704 = vmatmul.bf16.gmra.mxu0 %v1612
      %v1705 = vpop.f32.mrf.mxu0
      %v1706 = vadd.f32 0.0, %v1705
      %v1707 = vpop.f32.mrf.mxu0
      %v1708 = vadd.f32 0.0, %v1707
      %1709 = vmatmul.bf16.gmra.mxu0 %v1613
      %v1710 = vpop.f32.mrf.mxu0
      %v1711 = vadd.f32 0.0, %v1710
      %v1712 = vpop.f32.mrf.mxu0
      %v1713 = vadd.f32 0.0, %v1712
      %1714 = vmatmul.bf16.gmra.mxu0 %v1614
      %v1715 = vpop.f32.mrf.mxu0
      %v1716 = vadd.f32 0.0, %v1715
      %v1717 = vpop.f32.mrf.mxu0
      %v1718 = vadd.f32 0.0, %v1717
      %1719 = vmatmul.bf16.gmra.mxu0 %v1615
      %v1720 = vpop.f32.mrf.mxu0
      %v1721 = vadd.f32 0.0, %v1720
      %v1722 = vpop.f32.mrf.mxu0
      %v1723 = vadd.f32 0.0, %v1722
      %1724 = vmatmul.bf16.gmra.mxu0 %v1616
      %v1725 = vpop.f32.mrf.mxu0
      %v1726 = vadd.f32 0.0, %v1725
      %v1727 = vpop.f32.mrf.mxu0
      %v1728 = vadd.f32 0.0, %v1727
      %1729 = vmatmul.bf16.gmra.mxu0 %v1617
      %v1730 = vpop.f32.mrf.mxu0
      %v1731 = vadd.f32 0.0, %v1730
      %v1732 = vpop.f32.mrf.mxu0
      %v1733 = vadd.f32 0.0, %v1732
      %1734 = vmatmul.bf16.gmra.mxu0 %v1618
      %v1735 = vpop.f32.mrf.mxu0
      %v1736 = vadd.f32 0.0, %v1735
      %v1737 = vpop.f32.mrf.mxu0
      %v1738 = vadd.f32 0.0, %v1737
      %1739 = vmatmul.bf16.gmra.mxu0 %v1619
      %v1740 = vpop.f32.mrf.mxu0
      %v1741 = vadd.f32 0.0, %v1740
      %v1742 = vpop.f32.mrf.mxu0
      %v1743 = vadd.f32 0.0, %v1742
      %1744 = vmatmul.bf16.gmra.mxu0 %v1620
      %v1745 = vpop.f32.mrf.mxu0
      %v1746 = vadd.f32 0.0, %v1745
      %v1747 = vpop.f32.mrf.mxu0
      %v1748 = vadd.f32 0.0, %v1747
      %1749 = vmatmul.bf16.gmra.mxu0 %v1621
      %v1750 = vpop.f32.mrf.mxu0
      %v1751 = vadd.f32 0.0, %v1750
      %v1752 = vpop.f32.mrf.mxu0
      %v1753 = vadd.f32 0.0, %v1752
      %1754 = vmatmul.bf16.gmra.mxu0 %v1622
      %v1755 = vpop.f32.mrf.mxu0
      %v1756 = vadd.f32 0.0, %v1755
      %v1757 = vpop.f32.mrf.mxu0
      %v1758 = vadd.f32 0.0, %v1757
      %1759 = vmatmul.bf16.gmra.mxu0 %v1623
      %v1760 = vpop.f32.mrf.mxu0
      %v1761 = vadd.f32 0.0, %v1760
      %v1762 = vpop.f32.mrf.mxu0
      %v1763 = vadd.f32 0.0, %v1762
      %1764 = vmatmul.bf16.gmra.mxu0 %v1624
      %v1765 = vpop.f32.mrf.mxu0
      %v1766 = vadd.f32 0.0, %v1765
      %v1767 = vpop.f32.mrf.mxu0
      %v1768 = vadd.f32 0.0, %v1767
      %1769 = vmatmul.bf16.gmra.mxu0 %v1625
      %v1770 = vpop.f32.mrf.mxu0
      %v1771 = vadd.f32 0.0, %v1770
      %v1772 = vpop.f32.mrf.mxu0
      %v1773 = vadd.f32 0.0, %v1772
      %1774 = vmatmul.bf16.gmra.mxu0 %v1626
      %v1775 = vpop.f32.mrf.mxu0
      %v1776 = vadd.f32 0.0, %v1775
      %v1777 = vpop.f32.mrf.mxu0
      %v1778 = vadd.f32 0.0, %v1777
      %1779 = vdwg.mxu0
      %v1780 = vadd.f32 %v1465, %v1701
      %v1781 = vadd.f32 %v1466, %v1703
      %v1782 = vadd.f32 %v1467, %v1706
      %v1783 = vadd.f32 %v1468, %v1708
      %v1784 = vadd.f32 %v1469, %v1711
      %v1785 = vadd.f32 %v1470, %v1713
      %v1786 = vadd.f32 %v1471, %v1716
      %v1787 = vadd.f32 %v1472, %v1718
      %v1788 = vadd.f32 %v1473, %v1721
      %v1789 = vadd.f32 %v1474, %v1723
      %v1790 = vadd.f32 %v1475, %v1726
      %v1791 = vadd.f32 %v1476, %v1728
      %v1792 = vadd.f32 %v1477, %v1731
      %v1793 = vadd.f32 %v1478, %v1733
      %v1794 = vadd.f32 %v1479, %v1736
      %v1795 = vadd.f32 %v1480, %v1738
      %v1796 = vadd.f32 %v1481, %v1741
      %v1797 = vadd.f32 %v1482, %v1743
      %v1798 = vadd.f32 %v1483, %v1746
      %v1799 = vadd.f32 %v1484, %v1748
      %v1800 = vadd.f32 %v1485, %v1751
      %v1801 = vadd.f32 %v1486, %v1753
      %v1802 = vadd.f32 %v1487, %v1756
      %v1803 = vadd.f32 %v1488, %v1758
      %v1804 = vadd.f32 %v1489, %v1761
      %v1805 = vadd.f32 %v1490, %v1763
      %v1806 = vadd.f32 %v1491, %v1766
      %v1807 = vadd.f32 %v1492, %v1768
      %v1808 = vadd.f32 %v1493, %v1771
      %v1809 = vadd.f32 %v1494, %v1773
      %v1810 = vadd.f32 %v1495, %v1776
      %v1811 = vadd.f32 %v1496, %v1778
      %v1812 = vld [vmem:[%s1497] sm:$0xf]
      %v1813 = vld [vmem:[%s1497 + $0x4] sm:$0xf]
      %v1814 = vld [vmem:[%s1497 + $0x8] sm:$0x1]
      %v1815 = vld [vmem:[%s1497 + $0xc] sm:$0xf]
      %v1816 = vld [vmem:[%s1497 + $0x10] sm:$0xf]
      %v1817 = vld [vmem:[%s1497 + $0x14] sm:$0x1]
      %v1818 = vld [vmem:[%s1497 + $0x18] sm:$0xf]
      %v1819 = vld [vmem:[%s1497 + $0x1c] sm:$0xf]
      %v1820 = vld [vmem:[%s1497 + $0x20] sm:$0x1]
      %v1821 = vld [vmem:[%s1497 + $0x24] sm:$0xf]
      %v1822 = vld [vmem:[%s1497 + $0x28] sm:$0xf]
      %v1823 = vld [vmem:[%s1497 + $0x2c] sm:$0x1]
      %v1824 = vld [vmem:[%s1497 + $0x30] sm:$0xf]
      %v1825 = vld [vmem:[%s1497 + $0x34] sm:$0xf]
      %v1826 = vld [vmem:[%s1497 + $0x38] sm:$0x1]
      %v1827 = vld [vmem:[%s1497 + $0x3c] sm:$0xf]
      %v1828 = vld [vmem:[%s1497 + $0x40] sm:$0xf]
      %v1829 = vld [vmem:[%s1497 + $0x44] sm:$0x1]
      %v1830 = vld [vmem:[%s1497 + $0x48] sm:$0xf]
      %v1831 = vld [vmem:[%s1497 + $0x4c] sm:$0xf]
      %v1832 = vld [vmem:[%s1497 + $0x50] sm:$0x1]
      %v1833 = vld [vmem:[%s1497 + $0x54] sm:$0xf]
      %v1834 = vld [vmem:[%s1497 + $0x58] sm:$0xf]
      %v1835 = vld [vmem:[%s1497 + $0x5c] sm:$0x1]
      %v1836 = vld [vmem:[%s1497 + $0x60] sm:$0xf]
      %v1837 = vld [vmem:[%s1497 + $0x64] sm:$0xf]
      %v1838 = vld [vmem:[%s1497 + $0x68] sm:$0x1]
      %v1839 = vld [vmem:[%s1497 + $0x6c] sm:$0xf]
      %v1840 = vld [vmem:[%s1497 + $0x70] sm:$0xf]
      %v1841 = vld [vmem:[%s1497 + $0x74] sm:$0x1]
      %v1842 = vld [vmem:[%s1497 + $0x78] sm:$0xf]
      %v1843 = vld [vmem:[%s1497 + $0x7c] sm:$0xf]
      %v1844 = vld [vmem:[%s1497 + $0x80] sm:$0x1]
      %v1845 = vld [vmem:[%s1497 + $0x84] sm:$0xf]
      %v1846 = vld [vmem:[%s1497 + $0x88] sm:$0xf]
      %v1847 = vld [vmem:[%s1497 + $0x8c] sm:$0x1]
      %v1848 = vld [vmem:[%s1497 + $0x90] sm:$0xf]
      %v1849 = vld [vmem:[%s1497 + $0x94] sm:$0xf]
      %v1850 = vld [vmem:[%s1497 + $0x98] sm:$0x1]
      %v1851 = vld [vmem:[%s1497 + $0x9c] sm:$0xf]
      %v1852 = vld [vmem:[%s1497 + $0xa0] sm:$0xf]
      %v1853 = vld [vmem:[%s1497 + $0xa4] sm:$0x1]
      %v1854 = vld [vmem:[%s1497 + $0xa8] sm:$0xf]
      %v1855 = vld [vmem:[%s1497 + $0xac] sm:$0xf]
      %v1856 = vld [vmem:[%s1497 + $0xb0] sm:$0x1]
      %v1857 = vld [vmem:[%s1497 + $0xb4] sm:$0xf]
      %v1858 = vld [vmem:[%s1497 + $0xb8] sm:$0xf]
      %v1859 = vld [vmem:[%s1497 + $0xbc] sm:$0x1]
      %v1861 = vshrl.u32 %v1812, 16
      %v1863 = vrot.slane %v1861, 4
      %v1864 = vshll.u32 %v1812, 16
      %v1866 = vrot.slane %v1864, 5
      %v1867 = vor.u32 %v1863, %v1866
      %v1868 = vrot.slane %v1867, 4
      %v1870 = vshll.u32 %v1813, 16
      %v1872 = vrot.slane %v1870, 5
      %v1873 = vsel %vm248, %v1868, %v1872
      %v1874 = vshrl.u32 %v1813, 16
      %v1876 = vrot.slane %v1874, 4
      %v1877 = vor.u32 %v1876, %v1872
      %v1878 = vrot.slane %v1877, 4
      %v1880 = vshll.u32 %v1814, 16
      %v1882 = vrot.slane %v1880, 5
      %v1883 = vsel %vm248, %v1878, %v1882
      %v1885 = vshrl.u32 %v1815, 16
      %v1887 = vrot.slane %v1885, 4
      %v1888 = vshll.u32 %v1815, 16
      %v1890 = vrot.slane %v1888, 5
      %v1891 = vor.u32 %v1887, %v1890
      %v1892 = vrot.slane %v1891, 4
      %v1894 = vshll.u32 %v1816, 16
      %v1896 = vrot.slane %v1894, 5
      %v1897 = vsel %vm248, %v1892, %v1896
      %v1898 = vshrl.u32 %v1816, 16
      %v1900 = vrot.slane %v1898, 4
      %v1901 = vor.u32 %v1900, %v1896
      %v1902 = vrot.slane %v1901, 4
      %v1904 = vshll.u32 %v1817, 16
      %v1906 = vrot.slane %v1904, 5
      %v1907 = vsel %vm248, %v1902, %v1906
      %v1909 = vshrl.u32 %v1818, 16
      %v1911 = vrot.slane %v1909, 4
      %v1912 = vshll.u32 %v1818, 16
      %v1914 = vrot.slane %v1912, 5
      %v1915 = vor.u32 %v1911, %v1914
      %v1916 = vrot.slane %v1915, 4
      %v1918 = vshll.u32 %v1819, 16
      %v1920 = vrot.slane %v1918, 5
      %v1921 = vsel %vm248, %v1916, %v1920
      %v1922 = vshrl.u32 %v1819, 16
      %v1924 = vrot.slane %v1922, 4
      %v1925 = vor.u32 %v1924, %v1920
      %v1926 = vrot.slane %v1925, 4
      %v1928 = vshll.u32 %v1820, 16
      %v1930 = vrot.slane %v1928, 5
      %v1931 = vsel %vm248, %v1926, %v1930
      %v1933 = vshrl.u32 %v1821, 16
      %v1935 = vrot.slane %v1933, 4
      %v1936 = vshll.u32 %v1821, 16
      %v1938 = vrot.slane %v1936, 5
      %v1939 = vor.u32 %v1935, %v1938
      %v1940 = vrot.slane %v1939, 4
      %v1942 = vshll.u32 %v1822, 16
      %v1944 = vrot.slane %v1942, 5
      %v1945 = vsel %vm248, %v1940, %v1944
      %v1946 = vshrl.u32 %v1822, 16
      %v1948 = vrot.slane %v1946, 4
      %v1949 = vor.u32 %v1948, %v1944
      %v1950 = vrot.slane %v1949, 4
      %v1952 = vshll.u32 %v1823, 16
      %v1954 = vrot.slane %v1952, 5
      %v1955 = vsel %vm248, %v1950, %v1954
      %v1957 = vshrl.u32 %v1824, 16
      %v1959 = vrot.slane %v1957, 4
      %v1960 = vshll.u32 %v1824, 16
      %v1962 = vrot.slane %v1960, 5
      %v1963 = vor.u32 %v1959, %v1962
      %v1964 = vrot.slane %v1963, 4
      %v1966 = vshll.u32 %v1825, 16
      %v1968 = vrot.slane %v1966, 5
      %v1969 = vsel %vm248, %v1964, %v1968
      %v1970 = vshrl.u32 %v1825, 16
      %v1972 = vrot.slane %v1970, 4
      %v1973 = vor.u32 %v1972, %v1968
      %v1974 = vrot.slane %v1973, 4
      %v1976 = vshll.u32 %v1826, 16
      %v1978 = vrot.slane %v1976, 5
      %v1979 = vsel %vm248, %v1974, %v1978
      %v1981 = vshrl.u32 %v1827, 16
      %v1983 = vrot.slane %v1981, 4
      %v1984 = vshll.u32 %v1827, 16
      %v1986 = vrot.slane %v1984, 5
      %v1987 = vor.u32 %v1983, %v1986
      %v1988 = vrot.slane %v1987, 4
      %v1990 = vshll.u32 %v1828, 16
      %v1992 = vrot.slane %v1990, 5
      %v1993 = vsel %vm248, %v1988, %v1992
      %v1994 = vshrl.u32 %v1828, 16
      %v1996 = vrot.slane %v1994, 4
      %v1997 = vor.u32 %v1996, %v1992
      %v1998 = vrot.slane %v1997, 4
      %v2000 = vshll.u32 %v1829, 16
      %v2002 = vrot.slane %v2000, 5
      %v2003 = vsel %vm248, %v1998, %v2002
      %v2005 = vshrl.u32 %v1830, 16
      %v2007 = vrot.slane %v2005, 4
      %v2008 = vshll.u32 %v1830, 16
      %v2010 = vrot.slane %v2008, 5
      %v2011 = vor.u32 %v2007, %v2010
      %v2012 = vrot.slane %v2011, 4
      %v2014 = vshll.u32 %v1831, 16
      %v2016 = vrot.slane %v2014, 5
      %v2017 = vsel %vm248, %v2012, %v2016
      %v2018 = vshrl.u32 %v1831, 16
      %v2020 = vrot.slane %v2018, 4
      %v2021 = vor.u32 %v2020, %v2016
      %v2022 = vrot.slane %v2021, 4
      %v2024 = vshll.u32 %v1832, 16
      %v2026 = vrot.slane %v2024, 5
      %v2027 = vsel %vm248, %v2022, %v2026
      %v2029 = vshrl.u32 %v1833, 16
      %v2031 = vrot.slane %v2029, 4
      %v2032 = vshll.u32 %v1833, 16
      %v2034 = vrot.slane %v2032, 5
      %v2035 = vor.u32 %v2031, %v2034
      %v2036 = vrot.slane %v2035, 4
      %v2038 = vshll.u32 %v1834, 16
      %v2040 = vrot.slane %v2038, 5
      %v2041 = vsel %vm248, %v2036, %v2040
      %v2042 = vshrl.u32 %v1834, 16
      %v2044 = vrot.slane %v2042, 4
      %v2045 = vor.u32 %v2044, %v2040
      %v2046 = vrot.slane %v2045, 4
      %v2048 = vshll.u32 %v1835, 16
      %v2050 = vrot.slane %v2048, 5
      %v2051 = vsel %vm248, %v2046, %v2050
      %v2053 = vshrl.u32 %v1836, 16
      %v2055 = vrot.slane %v2053, 4
      %v2056 = vshll.u32 %v1836, 16
      %v2058 = vrot.slane %v2056, 5
      %v2059 = vor.u32 %v2055, %v2058
      %v2060 = vrot.slane %v2059, 4
      %v2062 = vshll.u32 %v1837, 16
      %v2064 = vrot.slane %v2062, 5
      %v2065 = vsel %vm248, %v2060, %v2064
      %v2066 = vshrl.u32 %v1837, 16
      %v2068 = vrot.slane %v2066, 4
      %v2069 = vor.u32 %v2068, %v2064
      %v2070 = vrot.slane %v2069, 4
      %v2072 = vshll.u32 %v1838, 16
      %v2074 = vrot.slane %v2072, 5
      %v2075 = vsel %vm248, %v2070, %v2074
      %v2077 = vshrl.u32 %v1839, 16
      %v2079 = vrot.slane %v2077, 4
      %v2080 = vshll.u32 %v1839, 16
      %v2082 = vrot.slane %v2080, 5
      %v2083 = vor.u32 %v2079, %v2082
      %v2084 = vrot.slane %v2083, 4
      %v2086 = vshll.u32 %v1840, 16
      %v2088 = vrot.slane %v2086, 5
      %v2089 = vsel %vm248, %v2084, %v2088
      %v2090 = vshrl.u32 %v1840, 16
      %v2092 = vrot.slane %v2090, 4
      %v2093 = vor.u32 %v2092, %v2088
      %v2094 = vrot.slane %v2093, 4
      %v2096 = vshll.u32 %v1841, 16
      %v2098 = vrot.slane %v2096, 5
      %v2099 = vsel %vm248, %v2094, %v2098
      %v2101 = vshrl.u32 %v1842, 16
      %v2103 = vrot.slane %v2101, 4
      %v2104 = vshll.u32 %v1842, 16
      %v2106 = vrot.slane %v2104, 5
      %v2107 = vor.u32 %v2103, %v2106
      %v2108 = vrot.slane %v2107, 4
      %v2110 = vshll.u32 %v1843, 16
      %v2112 = vrot.slane %v2110, 5
      %v2113 = vsel %vm248, %v2108, %v2112
      %v2114 = vshrl.u32 %v1843, 16
      %v2116 = vrot.slane %v2114, 4
      %v2117 = vor.u32 %v2116, %v2112
      %v2118 = vrot.slane %v2117, 4
      %v2120 = vshll.u32 %v1844, 16
      %v2122 = vrot.slane %v2120, 5
      %v2123 = vsel %vm248, %v2118, %v2122
      %v2125 = vshrl.u32 %v1845, 16
      %v2127 = vrot.slane %v2125, 4
      %v2128 = vshll.u32 %v1845, 16
      %v2130 = vrot.slane %v2128, 5
      %v2131 = vor.u32 %v2127, %v2130
      %v2132 = vrot.slane %v2131, 4
      %v2134 = vshll.u32 %v1846, 16
      %v2136 = vrot.slane %v2134, 5
      %v2137 = vsel %vm248, %v2132, %v2136
      %v2138 = vshrl.u32 %v1846, 16
      %v2140 = vrot.slane %v2138, 4
      %v2141 = vor.u32 %v2140, %v2136
      %v2142 = vrot.slane %v2141, 4
      %v2144 = vshll.u32 %v1847, 16
      %v2146 = vrot.slane %v2144, 5
      %v2147 = vsel %vm248, %v2142, %v2146
      %v2149 = vshrl.u32 %v1848, 16
      %v2151 = vrot.slane %v2149, 4
      %v2152 = vshll.u32 %v1848, 16
      %v2154 = vrot.slane %v2152, 5
      %v2155 = vor.u32 %v2151, %v2154
      %v2156 = vrot.slane %v2155, 4
      %v2158 = vshll.u32 %v1849, 16
      %v2160 = vrot.slane %v2158, 5
      %v2161 = vsel %vm248, %v2156, %v2160
      %v2162 = vshrl.u32 %v1849, 16
      %v2164 = vrot.slane %v2162, 4
      %v2165 = vor.u32 %v2164, %v2160
      %v2166 = vrot.slane %v2165, 4
      %v2168 = vshll.u32 %v1850, 16
      %v2170 = vrot.slane %v2168, 5
      %v2171 = vsel %vm248, %v2166, %v2170
      %v2173 = vshrl.u32 %v1851, 16
      %v2175 = vrot.slane %v2173, 4
      %v2176 = vshll.u32 %v1851, 16
      %v2178 = vrot.slane %v2176, 5
      %v2179 = vor.u32 %v2175, %v2178
      %v2180 = vrot.slane %v2179, 4
      %v2182 = vshll.u32 %v1852, 16
      %v2184 = vrot.slane %v2182, 5
      %v2185 = vsel %vm248, %v2180, %v2184
      %v2186 = vshrl.u32 %v1852, 16
      %v2188 = vrot.slane %v2186, 4
      %v2189 = vor.u32 %v2188, %v2184
      %v2190 = vrot.slane %v2189, 4
      %v2192 = vshll.u32 %v1853, 16
      %v2194 = vrot.slane %v2192, 5
      %v2195 = vsel %vm248, %v2190, %v2194
      %v2197 = vshrl.u32 %v1854, 16
      %v2199 = vrot.slane %v2197, 4
      %v2200 = vshll.u32 %v1854, 16
      %v2202 = vrot.slane %v2200, 5
      %v2203 = vor.u32 %v2199, %v2202
      %v2204 = vrot.slane %v2203, 4
      %v2206 = vshll.u32 %v1855, 16
      %v2208 = vrot.slane %v2206, 5
      %v2209 = vsel %vm248, %v2204, %v2208
      %v2210 = vshrl.u32 %v1855, 16
      %v2212 = vrot.slane %v2210, 4
      %v2213 = vor.u32 %v2212, %v2208
      %v2214 = vrot.slane %v2213, 4
      %v2216 = vshll.u32 %v1856, 16
      %v2218 = vrot.slane %v2216, 5
      %v2219 = vsel %vm248, %v2214, %v2218
      %v2221 = vshrl.u32 %v1857, 16
      %v2223 = vrot.slane %v2221, 4
      %v2224 = vshll.u32 %v1857, 16
      %v2226 = vrot.slane %v2224, 5
      %v2227 = vor.u32 %v2223, %v2226
      %v2228 = vrot.slane %v2227, 4
      %v2230 = vshll.u32 %v1858, 16
      %v2232 = vrot.slane %v2230, 5
      %v2233 = vsel %vm248, %v2228, %v2232
      %v2234 = vshrl.u32 %v1858, 16
      %v2236 = vrot.slane %v2234, 4
      %v2237 = vor.u32 %v2236, %v2232
      %v2238 = vrot.slane %v2237, 4
      %v2240 = vshll.u32 %v1859, 16
      %v2242 = vrot.slane %v2240, 5
      %v2243 = vsel %vm248, %v2238, %v2242
      %s2244 = scalar_lea.vmem %s1, 256
      %v2245 = vld [vmem:[%s2244] sm:$0xf]
      %v2246 = vld [vmem:[%s2244 + $0x4] sm:$0xf]
      %v2247 = vld [vmem:[%s2244 + $0x8] sm:$0xf]
      %v2248 = vld [vmem:[%s2244 + $0xc] sm:$0xf]
      %v2249 = vld [vmem:[%s2244 + $0x10] sm:$0xf]
      %v2250 = vld [vmem:[%s2244 + $0x14] sm:$0xf]
      %v2251 = vld [vmem:[%s2244 + $0x18] sm:$0xf]
      %v2252 = vld [vmem:[%s2244 + $0x1c] sm:$0xf]
      %v2253 = vld [vmem:[%s2244 + $0x20] sm:$0xf]
      %v2254 = vld [vmem:[%s2244 + $0x24] sm:$0xf]
      %v2255 = vld [vmem:[%s2244 + $0x28] sm:$0xf]
      %v2256 = vld [vmem:[%s2244 + $0x2c] sm:$0xf]
      %v2257 = vld [vmem:[%s2244 + $0x30] sm:$0xf]
      %v2258 = vld [vmem:[%s2244 + $0x34] sm:$0xf]
      %v2259 = vld [vmem:[%s2244 + $0x38] sm:$0xf]
      %v2260 = vld [vmem:[%s2244 + $0x3c] sm:$0xf]
      %v2261 = vunpack.c.l.b16 %v1873
      %v2262 = vunpack.c.l.b16 %v1883
      %v2263 = vunpack.c.l.b16 %v1897
      %v2264 = vunpack.c.l.b16 %v1907
      %v2265 = vunpack.c.l.b16 %v1921
      %v2266 = vunpack.c.l.b16 %v1931
      %v2267 = vunpack.c.l.b16 %v1945
      %v2268 = vunpack.c.l.b16 %v1955
      %v2269 = vunpack.c.l.b16 %v1969
      %v2270 = vunpack.c.l.b16 %v1979
      %v2271 = vunpack.c.l.b16 %v1993
      %v2272 = vunpack.c.l.b16 %v2003
      %v2273 = vunpack.c.l.b16 %v2017
      %v2274 = vunpack.c.l.b16 %v2027
      %v2275 = vunpack.c.l.b16 %v2041
      %v2276 = vunpack.c.l.b16 %v2051
      %v2277 = vunpack.c.l.b16 %v2065
      %v2278 = vunpack.c.l.b16 %v2075
      %v2279 = vunpack.c.l.b16 %v2089
      %v2280 = vunpack.c.l.b16 %v2099
      %v2281 = vunpack.c.l.b16 %v2113
      %v2282 = vunpack.c.l.b16 %v2123
      %v2283 = vunpack.c.l.b16 %v2137
      %v2284 = vunpack.c.l.b16 %v2147
      %v2285 = vunpack.c.l.b16 %v2161
      %v2286 = vunpack.c.l.b16 %v2171
      %v2287 = vunpack.c.l.b16 %v2185
      %v2288 = vunpack.c.l.b16 %v2195
      %v2289 = vunpack.c.l.b16 %v2209
      %v2290 = vunpack.c.l.b16 %v2219
      %v2291 = vunpack.c.l.b16 %v2233
      %v2292 = vunpack.c.l.b16 %v2243
      %v2293 = vpack.c.b16 %v2262, %v2261
      %v2294 = vpack.c.b16 %v2264, %v2263
      %v2295 = vpack.c.b16 %v2266, %v2265
      %v2296 = vpack.c.b16 %v2268, %v2267
      %v2297 = vpack.c.b16 %v2270, %v2269
      %v2298 = vpack.c.b16 %v2272, %v2271
      %v2299 = vpack.c.b16 %v2274, %v2273
      %v2300 = vpack.c.b16 %v2276, %v2275
      %v2301 = vpack.c.b16 %v2278, %v2277
      %v2302 = vpack.c.b16 %v2280, %v2279
      %v2303 = vpack.c.b16 %v2282, %v2281
      %v2304 = vpack.c.b16 %v2284, %v2283
      %v2305 = vpack.c.b16 %v2286, %v2285
      %v2306 = vpack.c.b16 %v2288, %v2287
      %v2307 = vpack.c.b16 %v2290, %v2289
      %v2308 = vpack.c.b16 %v2292, %v2291
      %v2341 = vunpack.c.l.b16 %v2245
      %v2342 = vunpack.c.l.b16 %v2246
      %v2343 = vunpack.c.l.b16 %v2247
      %v2344 = vunpack.c.l.b16 %v2248
      %v2345 = vunpack.c.l.b16 %v2249
      %v2346 = vunpack.c.l.b16 %v2250
      %v2347 = vunpack.c.l.b16 %v2251
      %v2348 = vunpack.c.l.b16 %v2252
      %v2349 = vunpack.c.l.b16 %v2253
      %v2350 = vunpack.c.l.b16 %v2254
      %v2351 = vunpack.c.l.b16 %v2255
      %v2352 = vunpack.c.l.b16 %v2256
      %v2353 = vunpack.c.l.b16 %v2257
      %v2354 = vunpack.c.l.b16 %v2258
      %v2355 = vunpack.c.l.b16 %v2259
      %v2356 = vunpack.c.l.b16 %v2260
      %v2357 = vpack.c.b16 %v2342, %v2341
      %v2358 = vpack.c.b16 %v2344, %v2343
      %v2359 = vpack.c.b16 %v2346, %v2345
      %v2360 = vpack.c.b16 %v2348, %v2347
      %v2361 = vpack.c.b16 %v2350, %v2349
      %v2362 = vpack.c.b16 %v2352, %v2351
      %v2363 = vpack.c.b16 %v2354, %v2353
      %v2364 = vpack.c.b16 %v2356, %v2355
      %2373 = vmatpush.bf16.msra.mxu0 %v2364
      %2374 = vmatpush.bf16.msra.mxu0 %v2363
      %2375 = vmatpush.bf16.msra.mxu0 %v2362
      %2376 = vmatpush.bf16.msra.mxu0 %v2361
      %2377 = vmatpush.bf16.msra.mxu0 %v2360
      %2378 = vmatpush.bf16.msra.mxu0 %v2359
      %2379 = vmatpush.bf16.msra.mxu0 %v2358
      %2380 = vmatpush.bf16.msra.mxu0 %v2357
      %2381 = vmatmul.bf16.gmra.mxu0 %v2293
      %v2382 = vpop.f32.mrf.mxu0
      %v2383 = vadd.f32 0.0, %v2382
      %v2384 = vpop.f32.mrf.mxu0
      %v2385 = vadd.f32 0.0, %v2384
      %2386 = vmatmul.bf16.gmra.mxu0 %v2294
      %v2387 = vpop.f32.mrf.mxu0
      %v2388 = vadd.f32 0.0, %v2387
      %v2389 = vpop.f32.mrf.mxu0
      %v2390 = vadd.f32 0.0, %v2389
      %2391 = vmatmul.bf16.gmra.mxu0 %v2295
      %v2392 = vpop.f32.mrf.mxu0
      %v2393 = vadd.f32 0.0, %v2392
      %v2394 = vpop.f32.mrf.mxu0
      %v2395 = vadd.f32 0.0, %v2394
      %2396 = vmatmul.bf16.gmra.mxu0 %v2296
      %v2397 = vpop.f32.mrf.mxu0
      %v2398 = vadd.f32 0.0, %v2397
      %v2399 = vpop.f32.mrf.mxu0
      %v2400 = vadd.f32 0.0, %v2399
      %2401 = vmatmul.bf16.gmra.mxu0 %v2297
      %v2402 = vpop.f32.mrf.mxu0
      %v2403 = vadd.f32 0.0, %v2402
      %v2404 = vpop.f32.mrf.mxu0
      %v2405 = vadd.f32 0.0, %v2404
      %2406 = vmatmul.bf16.gmra.mxu0 %v2298
      %v2407 = vpop.f32.mrf.mxu0
      %v2408 = vadd.f32 0.0, %v2407
      %v2409 = vpop.f32.mrf.mxu0
      %v2410 = vadd.f32 0.0, %v2409
      %2411 = vmatmul.bf16.gmra.mxu0 %v2299
      %v2412 = vpop.f32.mrf.mxu0
      %v2413 = vadd.f32 0.0, %v2412
      %v2414 = vpop.f32.mrf.mxu0
      %v2415 = vadd.f32 0.0, %v2414
      %2416 = vmatmul.bf16.gmra.mxu0 %v2300
      %v2417 = vpop.f32.mrf.mxu0
      %v2418 = vadd.f32 0.0, %v2417
      %v2419 = vpop.f32.mrf.mxu0
      %v2420 = vadd.f32 0.0, %v2419
      %2421 = vmatmul.bf16.gmra.mxu0 %v2301
      %v2422 = vpop.f32.mrf.mxu0
      %v2423 = vadd.f32 0.0, %v2422
      %v2424 = vpop.f32.mrf.mxu0
      %v2425 = vadd.f32 0.0, %v2424
      %2426 = vmatmul.bf16.gmra.mxu0 %v2302
      %v2427 = vpop.f32.mrf.mxu0
      %v2428 = vadd.f32 0.0, %v2427
      %v2429 = vpop.f32.mrf.mxu0
      %v2430 = vadd.f32 0.0, %v2429
      %2431 = vmatmul.bf16.gmra.mxu0 %v2303
      %v2432 = vpop.f32.mrf.mxu0
      %v2433 = vadd.f32 0.0, %v2432
      %v2434 = vpop.f32.mrf.mxu0
      %v2435 = vadd.f32 0.0, %v2434
      %2436 = vmatmul.bf16.gmra.mxu0 %v2304
      %v2437 = vpop.f32.mrf.mxu0
      %v2438 = vadd.f32 0.0, %v2437
      %v2439 = vpop.f32.mrf.mxu0
      %v2440 = vadd.f32 0.0, %v2439
      %2441 = vmatmul.bf16.gmra.mxu0 %v2305
      %v2442 = vpop.f32.mrf.mxu0
      %v2443 = vadd.f32 0.0, %v2442
      %v2444 = vpop.f32.mrf.mxu0
      %v2445 = vadd.f32 0.0, %v2444
      %2446 = vmatmul.bf16.gmra.mxu0 %v2306
      %v2447 = vpop.f32.mrf.mxu0
      %v2448 = vadd.f32 0.0, %v2447
      %v2449 = vpop.f32.mrf.mxu0
      %v2450 = vadd.f32 0.0, %v2449
      %2451 = vmatmul.bf16.gmra.mxu0 %v2307
      %v2452 = vpop.f32.mrf.mxu0
      %v2453 = vadd.f32 0.0, %v2452
      %v2454 = vpop.f32.mrf.mxu0
      %v2455 = vadd.f32 0.0, %v2454
      %2456 = vmatmul.bf16.gmra.mxu0 %v2308
      %v2457 = vpop.f32.mrf.mxu0
      %v2458 = vadd.f32 0.0, %v2457
      %v2459 = vpop.f32.mrf.mxu0
      %v2460 = vadd.f32 0.0, %v2459
      %2461 = vdwg.mxu0
      %v2462 = vadd.f32 %v1780, %v2383
      %v2463 = vadd.f32 %v1781, %v2385
      %v2464 = vadd.f32 %v1782, %v2388
      %v2465 = vadd.f32 %v1783, %v2390
      %v2466 = vadd.f32 %v1784, %v2393
      %v2467 = vadd.f32 %v1785, %v2395
      %v2468 = vadd.f32 %v1786, %v2398
      %v2469 = vadd.f32 %v1787, %v2400
      %v2470 = vadd.f32 %v1788, %v2403
      %v2471 = vadd.f32 %v1789, %v2405
      %v2472 = vadd.f32 %v1790, %v2408
      %v2473 = vadd.f32 %v1791, %v2410
      %v2474 = vadd.f32 %v1792, %v2413
      %v2475 = vadd.f32 %v1793, %v2415
      %v2476 = vadd.f32 %v1794, %v2418
      %v2477 = vadd.f32 %v1795, %v2420
      %v2478 = vadd.f32 %v1796, %v2423
      %v2479 = vadd.f32 %v1797, %v2425
      %v2480 = vadd.f32 %v1798, %v2428
      %v2481 = vadd.f32 %v1799, %v2430
      %v2482 = vadd.f32 %v1800, %v2433
      %v2483 = vadd.f32 %v1801, %v2435
      %v2484 = vadd.f32 %v1802, %v2438
      %v2485 = vadd.f32 %v1803, %v2440
      %v2486 = vadd.f32 %v1804, %v2443
      %v2487 = vadd.f32 %v1805, %v2445
      %v2488 = vadd.f32 %v1806, %v2448
      %v2489 = vadd.f32 %v1807, %v2450
      %v2490 = vadd.f32 %v1808, %v2453
      %v2491 = vadd.f32 %v1809, %v2455
      %v2492 = vadd.f32 %v1810, %v2458
      %v2493 = vadd.f32 %v1811, %v2460
      %v2494 = vld [vmem:[%s1497] sm:$0xe]
      %v2495 = vld [vmem:[%s1497 + $0xc] sm:$0xe]
      %v2496 = vld [vmem:[%s1497 + $0x18] sm:$0xe]
      %v2497 = vld [vmem:[%s1497 + $0x24] sm:$0xe]
      %v2498 = vld [vmem:[%s1497 + $0x30] sm:$0xe]
      %v2499 = vld [vmem:[%s1497 + $0x3c] sm:$0xe]
      %v2500 = vld [vmem:[%s1497 + $0x48] sm:$0xe]
      %v2501 = vld [vmem:[%s1497 + $0x54] sm:$0xe]
      %v2502 = vld [vmem:[%s1497 + $0x60] sm:$0xe]
      %v2503 = vld [vmem:[%s1497 + $0x6c] sm:$0xe]
      %v2504 = vld [vmem:[%s1497 + $0x78] sm:$0xe]
      %v2505 = vld [vmem:[%s1497 + $0x84] sm:$0xe]
      %v2506 = vld [vmem:[%s1497 + $0x90] sm:$0xe]
      %v2507 = vld [vmem:[%s1497 + $0x9c] sm:$0xe]
      %v2508 = vld [vmem:[%s1497 + $0xa8] sm:$0xe]
      %v2509 = vld [vmem:[%s1497 + $0xb4] sm:$0xe]
      %v2558 = vrot.slane %v2494, 5
      %v2559 = vrot.slane %v2558, 4
      %v2560 = vrot.slane %v1813, 5
      %v2561 = vsel %vm1134, %v2559, %v2560
      %v2562 = vrot.slane %v2560, 4
      %v2563 = vrot.slane %v1814, 5
      %v2564 = vsel %vm1134, %v2562, %v2563
      %v2565 = vrot.slane %v2495, 5
      %v2566 = vrot.slane %v2565, 4
      %v2567 = vrot.slane %v1816, 5
      %v2568 = vsel %vm1134, %v2566, %v2567
      %v2569 = vrot.slane %v2567, 4
      %v2570 = vrot.slane %v1817, 5
      %v2571 = vsel %vm1134, %v2569, %v2570
      %v2572 = vrot.slane %v2496, 5
      %v2573 = vrot.slane %v2572, 4
      %v2574 = vrot.slane %v1819, 5
      %v2575 = vsel %vm1134, %v2573, %v2574
      %v2576 = vrot.slane %v2574, 4
      %v2577 = vrot.slane %v1820, 5
      %v2578 = vsel %vm1134, %v2576, %v2577
      %v2579 = vrot.slane %v2497, 5
      %v2580 = vrot.slane %v2579, 4
      %v2581 = vrot.slane %v1822, 5
      %v2582 = vsel %vm1134, %v2580, %v2581
      %v2583 = vrot.slane %v2581, 4
      %v2584 = vrot.slane %v1823, 5
      %v2585 = vsel %vm1134, %v2583, %v2584
      %v2586 = vrot.slane %v2498, 5
      %v2587 = vrot.slane %v2586, 4
      %v2588 = vrot.slane %v1825, 5
      %v2589 = vsel %vm1134, %v2587, %v2588
      %v2590 = vrot.slane %v2588, 4
      %v2591 = vrot.slane %v1826, 5
      %v2592 = vsel %vm1134, %v2590, %v2591
      %v2593 = vrot.slane %v2499, 5
      %v2594 = vrot.slane %v2593, 4
      %v2595 = vrot.slane %v1828, 5
      %v2596 = vsel %vm1134, %v2594, %v2595
      %v2597 = vrot.slane %v2595, 4
      %v2598 = vrot.slane %v1829, 5
      %v2599 = vsel %vm1134, %v2597, %v2598
      %v2600 = vrot.slane %v2500, 5
      %v2601 = vrot.slane %v2600, 4
      %v2602 = vrot.slane %v1831, 5
      %v2603 = vsel %vm1134, %v2601, %v2602
      %v2604 = vrot.slane %v2602, 4
      %v2605 = vrot.slane %v1832, 5
      %v2606 = vsel %vm1134, %v2604, %v2605
      %v2607 = vrot.slane %v2501, 5
      %v2608 = vrot.slane %v2607, 4
      %v2609 = vrot.slane %v1834, 5
      %v2610 = vsel %vm1134, %v2608, %v2609
      %v2611 = vrot.slane %v2609, 4
      %v2612 = vrot.slane %v1835, 5
      %v2613 = vsel %vm1134, %v2611, %v2612
      %v2614 = vrot.slane %v2502, 5
      %v2615 = vrot.slane %v2614, 4
      %v2616 = vrot.slane %v1837, 5
      %v2617 = vsel %vm1134, %v2615, %v2616
      %v2618 = vrot.slane %v2616, 4
      %v2619 = vrot.slane %v1838, 5
      %v2620 = vsel %vm1134, %v2618, %v2619
      %v2621 = vrot.slane %v2503, 5
      %v2622 = vrot.slane %v2621, 4
      %v2623 = vrot.slane %v1840, 5
      %v2624 = vsel %vm1134, %v2622, %v2623
      %v2625 = vrot.slane %v2623, 4
      %v2626 = vrot.slane %v1841, 5
      %v2627 = vsel %vm1134, %v2625, %v2626
      %v2628 = vrot.slane %v2504, 5
      %v2629 = vrot.slane %v2628, 4
      %v2630 = vrot.slane %v1843, 5
      %v2631 = vsel %vm1134, %v2629, %v2630
      %v2632 = vrot.slane %v2630, 4
      %v2633 = vrot.slane %v1844, 5
      %v2634 = vsel %vm1134, %v2632, %v2633
      %v2635 = vrot.slane %v2505, 5
      %v2636 = vrot.slane %v2635, 4
      %v2637 = vrot.slane %v1846, 5
      %v2638 = vsel %vm1134, %v2636, %v2637
      %v2639 = vrot.slane %v2637, 4
      %v2640 = vrot.slane %v1847, 5
      %v2641 = vsel %vm1134, %v2639, %v2640
      %v2642 = vrot.slane %v2506, 5
      %v2643 = vrot.slane %v2642, 4
      %v2644 = vrot.slane %v1849, 5
      %v2645 = vsel %vm1134, %v2643, %v2644
      %v2646 = vrot.slane %v2644, 4
      %v2647 = vrot.slane %v1850, 5
      %v2648 = vsel %vm1134, %v2646, %v2647
      %v2649 = vrot.slane %v2507, 5
      %v2650 = vrot.slane %v2649, 4
      %v2651 = vrot.slane %v1852, 5
      %v2652 = vsel %vm1134, %v2650, %v2651
      %v2653 = vrot.slane %v2651, 4
      %v2654 = vrot.slane %v1853, 5
      %v2655 = vsel %vm1134, %v2653, %v2654
      %v2656 = vrot.slane %v2508, 5
      %v2657 = vrot.slane %v2656, 4
      %v2658 = vrot.slane %v1855, 5
      %v2659 = vsel %vm1134, %v2657, %v2658
      %v2660 = vrot.slane %v2658, 4
      %v2661 = vrot.slane %v1856, 5
      %v2662 = vsel %vm1134, %v2660, %v2661
      %v2663 = vrot.slane %v2509, 5
      %v2664 = vrot.slane %v2663, 4
      %v2665 = vrot.slane %v1858, 5
      %v2666 = vsel %vm1134, %v2664, %v2665
      %v2667 = vrot.slane %v2665, 4
      %v2668 = vrot.slane %v1859, 5
      %v2669 = vsel %vm1134, %v2667, %v2668
      %s2670 = scalar_lea.vmem %s1, 320
      %v2671 = vld [vmem:[%s2670] sm:$0xf]
      %v2672 = vld [vmem:[%s2670 + $0x4] sm:$0xf]
      %v2673 = vld [vmem:[%s2670 + $0x8] sm:$0xf]
      %v2674 = vld [vmem:[%s2670 + $0xc] sm:$0xf]
      %v2675 = vld [vmem:[%s2670 + $0x10] sm:$0xf]
      %v2676 = vld [vmem:[%s2670 + $0x14] sm:$0xf]
      %v2677 = vld [vmem:[%s2670 + $0x18] sm:$0xf]
      %v2678 = vld [vmem:[%s2670 + $0x1c] sm:$0xf]
      %v2679 = vld [vmem:[%s2670 + $0x20] sm:$0xf]
      %v2680 = vld [vmem:[%s2670 + $0x24] sm:$0xf]
      %v2681 = vld [vmem:[%s2670 + $0x28] sm:$0xf]
      %v2682 = vld [vmem:[%s2670 + $0x2c] sm:$0xf]
      %v2683 = vld [vmem:[%s2670 + $0x30] sm:$0xf]
      %v2684 = vld [vmem:[%s2670 + $0x34] sm:$0xf]
      %v2685 = vld [vmem:[%s2670 + $0x38] sm:$0xf]
      %v2686 = vld [vmem:[%s2670 + $0x3c] sm:$0xf]
      %v2687 = vunpack.c.l.b16 %v2561
      %v2688 = vunpack.c.l.b16 %v2564
      %v2689 = vunpack.c.l.b16 %v2568
      %v2690 = vunpack.c.l.b16 %v2571
      %v2691 = vunpack.c.l.b16 %v2575
      %v2692 = vunpack.c.l.b16 %v2578
      %v2693 = vunpack.c.l.b16 %v2582
      %v2694 = vunpack.c.l.b16 %v2585
      %v2695 = vunpack.c.l.b16 %v2589
      %v2696 = vunpack.c.l.b16 %v2592
      %v2697 = vunpack.c.l.b16 %v2596
      %v2698 = vunpack.c.l.b16 %v2599
      %v2699 = vunpack.c.l.b16 %v2603
      %v2700 = vunpack.c.l.b16 %v2606
      %v2701 = vunpack.c.l.b16 %v2610
      %v2702 = vunpack.c.l.b16 %v2613
      %v2703 = vunpack.c.l.b16 %v2617
      %v2704 = vunpack.c.l.b16 %v2620
      %v2705 = vunpack.c.l.b16 %v2624
      %v2706 = vunpack.c.l.b16 %v2627
      %v2707 = vunpack.c.l.b16 %v2631
      %v2708 = vunpack.c.l.b16 %v2634
      %v2709 = vunpack.c.l.b16 %v2638
      %v2710 = vunpack.c.l.b16 %v2641
      %v2711 = vunpack.c.l.b16 %v2645
      %v2712 = vunpack.c.l.b16 %v2648
      %v2713 = vunpack.c.l.b16 %v2652
      %v2714 = vunpack.c.l.b16 %v2655
      %v2715 = vunpack.c.l.b16 %v2659
      %v2716 = vunpack.c.l.b16 %v2662
      %v2717 = vunpack.c.l.b16 %v2666
      %v2718 = vunpack.c.l.b16 %v2669
      %v2719 = vpack.c.b16 %v2688, %v2687
      %v2720 = vpack.c.b16 %v2690, %v2689
      %v2721 = vpack.c.b16 %v2692, %v2691
      %v2722 = vpack.c.b16 %v2694, %v2693
      %v2723 = vpack.c.b16 %v2696, %v2695
      %v2724 = vpack.c.b16 %v2698, %v2697
      %v2725 = vpack.c.b16 %v2700, %v2699
      %v2726 = vpack.c.b16 %v2702, %v2701
      %v2727 = vpack.c.b16 %v2704, %v2703
      %v2728 = vpack.c.b16 %v2706, %v2705
      %v2729 = vpack.c.b16 %v2708, %v2707
      %v2730 = vpack.c.b16 %v2710, %v2709
      %v2731 = vpack.c.b16 %v2712, %v2711
      %v2732 = vpack.c.b16 %v2714, %v2713
      %v2733 = vpack.c.b16 %v2716, %v2715
      %v2734 = vpack.c.b16 %v2718, %v2717
      %v2767 = vunpack.c.l.b16 %v2671
      %v2768 = vunpack.c.l.b16 %v2672
      %v2769 = vunpack.c.l.b16 %v2673
      %v2770 = vunpack.c.l.b16 %v2674
      %v2771 = vunpack.c.l.b16 %v2675
      %v2772 = vunpack.c.l.b16 %v2676
      %v2773 = vunpack.c.l.b16 %v2677
      %v2774 = vunpack.c.l.b16 %v2678
      %v2775 = vunpack.c.l.b16 %v2679
      %v2776 = vunpack.c.l.b16 %v2680
      %v2777 = vunpack.c.l.b16 %v2681
      %v2778 = vunpack.c.l.b16 %v2682
      %v2779 = vunpack.c.l.b16 %v2683
      %v2780 = vunpack.c.l.b16 %v2684
      %v2781 = vunpack.c.l.b16 %v2685
      %v2782 = vunpack.c.l.b16 %v2686
      %v2783 = vpack.c.b16 %v2768, %v2767
      %v2784 = vpack.c.b16 %v2770, %v2769
      %v2785 = vpack.c.b16 %v2772, %v2771
      %v2786 = vpack.c.b16 %v2774, %v2773
      %v2787 = vpack.c.b16 %v2776, %v2775
      %v2788 = vpack.c.b16 %v2778, %v2777
      %v2789 = vpack.c.b16 %v2780, %v2779
      %v2790 = vpack.c.b16 %v2782, %v2781
      %2799 = vmatpush.bf16.msra.mxu0 %v2790
      %2800 = vmatpush.bf16.msra.mxu0 %v2789
      %2801 = vmatpush.bf16.msra.mxu0 %v2788
      %2802 = vmatpush.bf16.msra.mxu0 %v2787
      %2803 = vmatpush.bf16.msra.mxu0 %v2786
      %2804 = vmatpush.bf16.msra.mxu0 %v2785
      %2805 = vmatpush.bf16.msra.mxu0 %v2784
      %2806 = vmatpush.bf16.msra.mxu0 %v2783
      %2807 = vmatmul.bf16.gmra.mxu0 %v2719
      %v2808 = vpop.f32.mrf.mxu0
      %v2809 = vadd.f32 0.0, %v2808
      %v2810 = vpop.f32.mrf.mxu0
      %v2811 = vadd.f32 0.0, %v2810
      %2812 = vmatmul.bf16.gmra.mxu0 %v2720
      %v2813 = vpop.f32.mrf.mxu0
      %v2814 = vadd.f32 0.0, %v2813
      %v2815 = vpop.f32.mrf.mxu0
      %v2816 = vadd.f32 0.0, %v2815
      %2817 = vmatmul.bf16.gmra.mxu0 %v2721
      %v2818 = vpop.f32.mrf.mxu0
      %v2819 = vadd.f32 0.0, %v2818
      %v2820 = vpop.f32.mrf.mxu0
      %v2821 = vadd.f32 0.0, %v2820
      %2822 = vmatmul.bf16.gmra.mxu0 %v2722
      %v2823 = vpop.f32.mrf.mxu0
      %v2824 = vadd.f32 0.0, %v2823
      %v2825 = vpop.f32.mrf.mxu0
      %v2826 = vadd.f32 0.0, %v2825
      %2827 = vmatmul.bf16.gmra.mxu0 %v2723
      %v2828 = vpop.f32.mrf.mxu0
      %v2829 = vadd.f32 0.0, %v2828
      %v2830 = vpop.f32.mrf.mxu0
      %v2831 = vadd.f32 0.0, %v2830
      %2832 = vmatmul.bf16.gmra.mxu0 %v2724
      %v2833 = vpop.f32.mrf.mxu0
      %v2834 = vadd.f32 0.0, %v2833
      %v2835 = vpop.f32.mrf.mxu0
      %v2836 = vadd.f32 0.0, %v2835
      %2837 = vmatmul.bf16.gmra.mxu0 %v2725
      %v2838 = vpop.f32.mrf.mxu0
      %v2839 = vadd.f32 0.0, %v2838
      %v2840 = vpop.f32.mrf.mxu0
      %v2841 = vadd.f32 0.0, %v2840
      %2842 = vmatmul.bf16.gmra.mxu0 %v2726
      %v2843 = vpop.f32.mrf.mxu0
      %v2844 = vadd.f32 0.0, %v2843
      %v2845 = vpop.f32.mrf.mxu0
      %v2846 = vadd.f32 0.0, %v2845
      %2847 = vmatmul.bf16.gmra.mxu0 %v2727
      %v2848 = vpop.f32.mrf.mxu0
      %v2849 = vadd.f32 0.0, %v2848
      %v2850 = vpop.f32.mrf.mxu0
      %v2851 = vadd.f32 0.0, %v2850
      %2852 = vmatmul.bf16.gmra.mxu0 %v2728
      %v2853 = vpop.f32.mrf.mxu0
      %v2854 = vadd.f32 0.0, %v2853
      %v2855 = vpop.f32.mrf.mxu0
      %v2856 = vadd.f32 0.0, %v2855
      %2857 = vmatmul.bf16.gmra.mxu0 %v2729
      %v2858 = vpop.f32.mrf.mxu0
      %v2859 = vadd.f32 0.0, %v2858
      %v2860 = vpop.f32.mrf.mxu0
      %v2861 = vadd.f32 0.0, %v2860
      %2862 = vmatmul.bf16.gmra.mxu0 %v2730
      %v2863 = vpop.f32.mrf.mxu0
      %v2864 = vadd.f32 0.0, %v2863
      %v2865 = vpop.f32.mrf.mxu0
      %v2866 = vadd.f32 0.0, %v2865
      %2867 = vmatmul.bf16.gmra.mxu0 %v2731
      %v2868 = vpop.f32.mrf.mxu0
      %v2869 = vadd.f32 0.0, %v2868
      %v2870 = vpop.f32.mrf.mxu0
      %v2871 = vadd.f32 0.0, %v2870
      %2872 = vmatmul.bf16.gmra.mxu0 %v2732
      %v2873 = vpop.f32.mrf.mxu0
      %v2874 = vadd.f32 0.0, %v2873
      %v2875 = vpop.f32.mrf.mxu0
      %v2876 = vadd.f32 0.0, %v2875
      %2877 = vmatmul.bf16.gmra.mxu0 %v2733
      %v2878 = vpop.f32.mrf.mxu0
      %v2879 = vadd.f32 0.0, %v2878
      %v2880 = vpop.f32.mrf.mxu0
      %v2881 = vadd.f32 0.0, %v2880
      %2882 = vmatmul.bf16.gmra.mxu0 %v2734
      %v2883 = vpop.f32.mrf.mxu0
      %v2884 = vadd.f32 0.0, %v2883
      %v2885 = vpop.f32.mrf.mxu0
      %v2886 = vadd.f32 0.0, %v2885
      %2887 = vdwg.mxu0
      %v2888 = vadd.f32 %v2462, %v2809
      %v2889 = vadd.f32 %v2463, %v2811
      %v2890 = vadd.f32 %v2464, %v2814
      %v2891 = vadd.f32 %v2465, %v2816
      %v2892 = vadd.f32 %v2466, %v2819
      %v2893 = vadd.f32 %v2467, %v2821
      %v2894 = vadd.f32 %v2468, %v2824
      %v2895 = vadd.f32 %v2469, %v2826
      %v2896 = vadd.f32 %v2470, %v2829
      %v2897 = vadd.f32 %v2471, %v2831
      %v2898 = vadd.f32 %v2472, %v2834
      %v2899 = vadd.f32 %v2473, %v2836
      %v2900 = vadd.f32 %v2474, %v2839
      %v2901 = vadd.f32 %v2475, %v2841
      %v2902 = vadd.f32 %v2476, %v2844
      %v2903 = vadd.f32 %v2477, %v2846
      %v2904 = vadd.f32 %v2478, %v2849
      %v2905 = vadd.f32 %v2479, %v2851
      %v2906 = vadd.f32 %v2480, %v2854
      %v2907 = vadd.f32 %v2481, %v2856
      %v2908 = vadd.f32 %v2482, %v2859
      %v2909 = vadd.f32 %v2483, %v2861
      %v2910 = vadd.f32 %v2484, %v2864
      %v2911 = vadd.f32 %v2485, %v2866
      %v2912 = vadd.f32 %v2486, %v2869
      %v2913 = vadd.f32 %v2487, %v2871
      %v2914 = vadd.f32 %v2488, %v2874
      %v2915 = vadd.f32 %v2489, %v2876
      %v2916 = vadd.f32 %v2490, %v2879
      %v2917 = vadd.f32 %v2491, %v2881
      %v2918 = vadd.f32 %v2492, %v2884
      %v2919 = vadd.f32 %v2493, %v2886
      %s2920 = scalar_lea.vmem %s172, 24
      %v2921 = vld [vmem:[%s2920] sm:$0xf]
      %v2922 = vld [vmem:[%s2920 + $0x4] sm:$0xf]
      %v2923 = vld [vmem:[%s2920 + $0xc] sm:$0xf]
      %v2924 = vld [vmem:[%s2920 + $0x10] sm:$0xf]
      %v2925 = vld [vmem:[%s2920 + $0x18] sm:$0xf]
      %v2926 = vld [vmem:[%s2920 + $0x1c] sm:$0xf]
      %v2927 = vld [vmem:[%s2920 + $0x24] sm:$0xf]
      %v2928 = vld [vmem:[%s2920 + $0x28] sm:$0xf]
      %v2929 = vld [vmem:[%s2920 + $0x30] sm:$0xf]
      %v2930 = vld [vmem:[%s2920 + $0x34] sm:$0xf]
      %v2931 = vld [vmem:[%s2920 + $0x3c] sm:$0xf]
      %v2932 = vld [vmem:[%s2920 + $0x40] sm:$0xf]
      %v2933 = vld [vmem:[%s2920 + $0x48] sm:$0xf]
      %v2934 = vld [vmem:[%s2920 + $0x4c] sm:$0xf]
      %v2935 = vld [vmem:[%s2920 + $0x54] sm:$0xf]
      %v2936 = vld [vmem:[%s2920 + $0x58] sm:$0xf]
      %v2937 = vld [vmem:[%s2920 + $0x60] sm:$0xf]
      %v2938 = vld [vmem:[%s2920 + $0x64] sm:$0xf]
      %v2939 = vld [vmem:[%s2920 + $0x6c] sm:$0xf]
      %v2940 = vld [vmem:[%s2920 + $0x70] sm:$0xf]
      %v2941 = vld [vmem:[%s2920 + $0x78] sm:$0xf]
      %v2942 = vld [vmem:[%s2920 + $0x7c] sm:$0xf]
      %v2943 = vld [vmem:[%s2920 + $0x84] sm:$0xf]
      %v2944 = vld [vmem:[%s2920 + $0x88] sm:$0xf]
      %v2945 = vld [vmem:[%s2920 + $0x90] sm:$0xf]
      %v2946 = vld [vmem:[%s2920 + $0x94] sm:$0xf]
      %v2947 = vld [vmem:[%s2920 + $0x9c] sm:$0xf]
      %v2948 = vld [vmem:[%s2920 + $0xa0] sm:$0xf]
      %v2949 = vld [vmem:[%s2920 + $0xa8] sm:$0xf]
      %v2950 = vld [vmem:[%s2920 + $0xac] sm:$0xf]
      %v2951 = vld [vmem:[%s2920 + $0xb4] sm:$0xf]
      %v2952 = vld [vmem:[%s2920 + $0xb8] sm:$0xf]
      %s2953 = scalar_lea.vmem %s1, 384
      %v2954 = vld [vmem:[%s2953] sm:$0xf]
      %v2955 = vld [vmem:[%s2953 + $0x4] sm:$0xf]
      %v2956 = vld [vmem:[%s2953 + $0x8] sm:$0xf]
      %v2957 = vld [vmem:[%s2953 + $0xc] sm:$0xf]
      %v2958 = vld [vmem:[%s2953 + $0x10] sm:$0xf]
      %v2959 = vld [vmem:[%s2953 + $0x14] sm:$0xf]
      %v2960 = vld [vmem:[%s2953 + $0x18] sm:$0xf]
      %v2961 = vld [vmem:[%s2953 + $0x1c] sm:$0xf]
      %v2962 = vld [vmem:[%s2953 + $0x20] sm:$0xf]
      %v2963 = vld [vmem:[%s2953 + $0x24] sm:$0xf]
      %v2964 = vld [vmem:[%s2953 + $0x28] sm:$0xf]
      %v2965 = vld [vmem:[%s2953 + $0x2c] sm:$0xf]
      %v2966 = vld [vmem:[%s2953 + $0x30] sm:$0xf]
      %v2967 = vld [vmem:[%s2953 + $0x34] sm:$0xf]
      %v2968 = vld [vmem:[%s2953 + $0x38] sm:$0xf]
      %v2969 = vld [vmem:[%s2953 + $0x3c] sm:$0xf]
      %v3002 = vunpack.c.l.b16 %v2921
      %v3003 = vunpack.c.l.b16 %v2922
      %v3004 = vunpack.c.l.b16 %v2923
      %v3005 = vunpack.c.l.b16 %v2924
      %v3006 = vunpack.c.l.b16 %v2925
      %v3007 = vunpack.c.l.b16 %v2926
      %v3008 = vunpack.c.l.b16 %v2927
      %v3009 = vunpack.c.l.b16 %v2928
      %v3010 = vunpack.c.l.b16 %v2929
      %v3011 = vunpack.c.l.b16 %v2930
      %v3012 = vunpack.c.l.b16 %v2931
      %v3013 = vunpack.c.l.b16 %v2932
      %v3014 = vunpack.c.l.b16 %v2933
      %v3015 = vunpack.c.l.b16 %v2934
      %v3016 = vunpack.c.l.b16 %v2935
      %v3017 = vunpack.c.l.b16 %v2936
      %v3018 = vunpack.c.l.b16 %v2937
      %v3019 = vunpack.c.l.b16 %v2938
      %v3020 = vunpack.c.l.b16 %v2939
      %v3021 = vunpack.c.l.b16 %v2940
      %v3022 = vunpack.c.l.b16 %v2941
      %v3023 = vunpack.c.l.b16 %v2942
      %v3024 = vunpack.c.l.b16 %v2943
      %v3025 = vunpack.c.l.b16 %v2944
      %v3026 = vunpack.c.l.b16 %v2945
      %v3027 = vunpack.c.l.b16 %v2946
      %v3028 = vunpack.c.l.b16 %v2947
      %v3029 = vunpack.c.l.b16 %v2948
      %v3030 = vunpack.c.l.b16 %v2949
      %v3031 = vunpack.c.l.b16 %v2950
      %v3032 = vunpack.c.l.b16 %v2951
      %v3033 = vunpack.c.l.b16 %v2952
      %v3034 = vpack.c.b16 %v3003, %v3002
      %v3035 = vpack.c.b16 %v3005, %v3004
      %v3036 = vpack.c.b16 %v3007, %v3006
      %v3037 = vpack.c.b16 %v3009, %v3008
      %v3038 = vpack.c.b16 %v3011, %v3010
      %v3039 = vpack.c.b16 %v3013, %v3012
      %v3040 = vpack.c.b16 %v3015, %v3014
      %v3041 = vpack.c.b16 %v3017, %v3016
      %v3042 = vpack.c.b16 %v3019, %v3018
      %v3043 = vpack.c.b16 %v3021, %v3020
      %v3044 = vpack.c.b16 %v3023, %v3022
      %v3045 = vpack.c.b16 %v3025, %v3024
      %v3046 = vpack.c.b16 %v3027, %v3026
      %v3047 = vpack.c.b16 %v3029, %v3028
      %v3048 = vpack.c.b16 %v3031, %v3030
      %v3049 = vpack.c.b16 %v3033, %v3032
      %v3082 = vunpack.c.l.b16 %v2954
      %v3083 = vunpack.c.l.b16 %v2955
      %v3084 = vunpack.c.l.b16 %v2956
      %v3085 = vunpack.c.l.b16 %v2957
      %v3086 = vunpack.c.l.b16 %v2958
      %v3087 = vunpack.c.l.b16 %v2959
      %v3088 = vunpack.c.l.b16 %v2960
      %v3089 = vunpack.c.l.b16 %v2961
      %v3090 = vunpack.c.l.b16 %v2962
      %v3091 = vunpack.c.l.b16 %v2963
      %v3092 = vunpack.c.l.b16 %v2964
      %v3093 = vunpack.c.l.b16 %v2965
      %v3094 = vunpack.c.l.b16 %v2966
      %v3095 = vunpack.c.l.b16 %v2967
      %v3096 = vunpack.c.l.b16 %v2968
      %v3097 = vunpack.c.l.b16 %v2969
      %v3098 = vpack.c.b16 %v3083, %v3082
      %v3099 = vpack.c.b16 %v3085, %v3084
      %v3100 = vpack.c.b16 %v3087, %v3086
      %v3101 = vpack.c.b16 %v3089, %v3088
      %v3102 = vpack.c.b16 %v3091, %v3090
      %v3103 = vpack.c.b16 %v3093, %v3092
      %v3104 = vpack.c.b16 %v3095, %v3094
      %v3105 = vpack.c.b16 %v3097, %v3096
      %3114 = vmatpush.bf16.msra.mxu0 %v3105
      %3115 = vmatpush.bf16.msra.mxu0 %v3104
      %3116 = vmatpush.bf16.msra.mxu0 %v3103
      %3117 = vmatpush.bf16.msra.mxu0 %v3102
      %3118 = vmatpush.bf16.msra.mxu0 %v3101
      %3119 = vmatpush.bf16.msra.mxu0 %v3100
      %3120 = vmatpush.bf16.msra.mxu0 %v3099
      %3121 = vmatpush.bf16.msra.mxu0 %v3098
      %3122 = vmatmul.bf16.gmra.mxu0 %v3034
      %v3123 = vpop.f32.mrf.mxu0
      %v3124 = vadd.f32 0.0, %v3123
      %v3125 = vpop.f32.mrf.mxu0
      %v3126 = vadd.f32 0.0, %v3125
      %3127 = vmatmul.bf16.gmra.mxu0 %v3035
      %v3128 = vpop.f32.mrf.mxu0
      %v3129 = vadd.f32 0.0, %v3128
      %v3130 = vpop.f32.mrf.mxu0
      %v3131 = vadd.f32 0.0, %v3130
      %3132 = vmatmul.bf16.gmra.mxu0 %v3036
      %v3133 = vpop.f32.mrf.mxu0
      %v3134 = vadd.f32 0.0, %v3133
      %v3135 = vpop.f32.mrf.mxu0
      %v3136 = vadd.f32 0.0, %v3135
      %3137 = vmatmul.bf16.gmra.mxu0 %v3037
      %v3138 = vpop.f32.mrf.mxu0
      %v3139 = vadd.f32 0.0, %v3138
      %v3140 = vpop.f32.mrf.mxu0
      %v3141 = vadd.f32 0.0, %v3140
      %3142 = vmatmul.bf16.gmra.mxu0 %v3038
      %v3143 = vpop.f32.mrf.mxu0
      %v3144 = vadd.f32 0.0, %v3143
      %v3145 = vpop.f32.mrf.mxu0
      %v3146 = vadd.f32 0.0, %v3145
      %3147 = vmatmul.bf16.gmra.mxu0 %v3039
      %v3148 = vpop.f32.mrf.mxu0
      %v3149 = vadd.f32 0.0, %v3148
      %v3150 = vpop.f32.mrf.mxu0
      %v3151 = vadd.f32 0.0, %v3150
      %3152 = vmatmul.bf16.gmra.mxu0 %v3040
      %v3153 = vpop.f32.mrf.mxu0
      %v3154 = vadd.f32 0.0, %v3153
      %v3155 = vpop.f32.mrf.mxu0
      %v3156 = vadd.f32 0.0, %v3155
      %3157 = vmatmul.bf16.gmra.mxu0 %v3041
      %v3158 = vpop.f32.mrf.mxu0
      %v3159 = vadd.f32 0.0, %v3158
      %v3160 = vpop.f32.mrf.mxu0
      %v3161 = vadd.f32 0.0, %v3160
      %3162 = vmatmul.bf16.gmra.mxu0 %v3042
      %v3163 = vpop.f32.mrf.mxu0
      %v3164 = vadd.f32 0.0, %v3163
      %v3165 = vpop.f32.mrf.mxu0
      %v3166 = vadd.f32 0.0, %v3165
      %3167 = vmatmul.bf16.gmra.mxu0 %v3043
      %v3168 = vpop.f32.mrf.mxu0
      %v3169 = vadd.f32 0.0, %v3168
      %v3170 = vpop.f32.mrf.mxu0
      %v3171 = vadd.f32 0.0, %v3170
      %3172 = vmatmul.bf16.gmra.mxu0 %v3044
      %v3173 = vpop.f32.mrf.mxu0
      %v3174 = vadd.f32 0.0, %v3173
      %v3175 = vpop.f32.mrf.mxu0
      %v3176 = vadd.f32 0.0, %v3175
      %3177 = vmatmul.bf16.gmra.mxu0 %v3045
      %v3178 = vpop.f32.mrf.mxu0
      %v3179 = vadd.f32 0.0, %v3178
      %v3180 = vpop.f32.mrf.mxu0
      %v3181 = vadd.f32 0.0, %v3180
      %3182 = vmatmul.bf16.gmra.mxu0 %v3046
      %v3183 = vpop.f32.mrf.mxu0
      %v3184 = vadd.f32 0.0, %v3183
      %v3185 = vpop.f32.mrf.mxu0
      %v3186 = vadd.f32 0.0, %v3185
      %3187 = vmatmul.bf16.gmra.mxu0 %v3047
      %v3188 = vpop.f32.mrf.mxu0
      %v3189 = vadd.f32 0.0, %v3188
      %v3190 = vpop.f32.mrf.mxu0
      %v3191 = vadd.f32 0.0, %v3190
      %3192 = vmatmul.bf16.gmra.mxu0 %v3048
      %v3193 = vpop.f32.mrf.mxu0
      %v3194 = vadd.f32 0.0, %v3193
      %v3195 = vpop.f32.mrf.mxu0
      %v3196 = vadd.f32 0.0, %v3195
      %3197 = vmatmul.bf16.gmra.mxu0 %v3049
      %v3198 = vpop.f32.mrf.mxu0
      %v3199 = vadd.f32 0.0, %v3198
      %v3200 = vpop.f32.mrf.mxu0
      %v3201 = vadd.f32 0.0, %v3200
      %3202 = vdwg.mxu0
      %v3203 = vadd.f32 %v2888, %v3124
      %v3204 = vadd.f32 %v2889, %v3126
      %v3205 = vadd.f32 %v2890, %v3129
      %v3206 = vadd.f32 %v2891, %v3131
      %v3207 = vadd.f32 %v2892, %v3134
      %v3208 = vadd.f32 %v2893, %v3136
      %v3209 = vadd.f32 %v2894, %v3139
      %v3210 = vadd.f32 %v2895, %v3141
      %v3211 = vadd.f32 %v2896, %v3144
      %v3212 = vadd.f32 %v2897, %v3146
      %v3213 = vadd.f32 %v2898, %v3149
      %v3214 = vadd.f32 %v2899, %v3151
      %v3215 = vadd.f32 %v2900, %v3154
      %v3216 = vadd.f32 %v2901, %v3156
      %v3217 = vadd.f32 %v2902, %v3159
      %v3218 = vadd.f32 %v2903, %v3161
      %v3219 = vadd.f32 %v2904, %v3164
      %v3220 = vadd.f32 %v2905, %v3166
      %v3221 = vadd.f32 %v2906, %v3169
      %v3222 = vadd.f32 %v2907, %v3171
      %v3223 = vadd.f32 %v2908, %v3174
      %v3224 = vadd.f32 %v2909, %v3176
      %v3225 = vadd.f32 %v2910, %v3179
      %v3226 = vadd.f32 %v2911, %v3181
      %v3227 = vadd.f32 %v2912, %v3184
      %v3228 = vadd.f32 %v2913, %v3186
      %v3229 = vadd.f32 %v2914, %v3189
      %v3230 = vadd.f32 %v2915, %v3191
      %v3231 = vadd.f32 %v2916, %v3194
      %v3232 = vadd.f32 %v2917, %v3196
      %v3233 = vadd.f32 %v2918, %v3199
      %v3234 = vadd.f32 %v2919, %v3201
      %v3235 = vld [vmem:[%s2920] sm:$0xf]
      %v3236 = vld [vmem:[%s2920 + $0x4] sm:$0xf]
      %v3237 = vld [vmem:[%s2920 + $0x8] sm:$0x1]
      %v3238 = vld [vmem:[%s2920 + $0xc] sm:$0xf]
      %v3239 = vld [vmem:[%s2920 + $0x10] sm:$0xf]
      %v3240 = vld [vmem:[%s2920 + $0x14] sm:$0x1]
      %v3241 = vld [vmem:[%s2920 + $0x18] sm:$0xf]
      %v3242 = vld [vmem:[%s2920 + $0x1c] sm:$0xf]
      %v3243 = vld [vmem:[%s2920 + $0x20] sm:$0x1]
      %v3244 = vld [vmem:[%s2920 + $0x24] sm:$0xf]
      %v3245 = vld [vmem:[%s2920 + $0x28] sm:$0xf]
      %v3246 = vld [vmem:[%s2920 + $0x2c] sm:$0x1]
      %v3247 = vld [vmem:[%s2920 + $0x30] sm:$0xf]
      %v3248 = vld [vmem:[%s2920 + $0x34] sm:$0xf]
      %v3249 = vld [vmem:[%s2920 + $0x38] sm:$0x1]
      %v3250 = vld [vmem:[%s2920 + $0x3c] sm:$0xf]
      %v3251 = vld [vmem:[%s2920 + $0x40] sm:$0xf]
      %v3252 = vld [vmem:[%s2920 + $0x44] sm:$0x1]
      %v3253 = vld [vmem:[%s2920 + $0x48] sm:$0xf]
      %v3254 = vld [vmem:[%s2920 + $0x4c] sm:$0xf]
      %v3255 = vld [vmem:[%s2920 + $0x50] sm:$0x1]
      %v3256 = vld [vmem:[%s2920 + $0x54] sm:$0xf]
      %v3257 = vld [vmem:[%s2920 + $0x58] sm:$0xf]
      %v3258 = vld [vmem:[%s2920 + $0x5c] sm:$0x1]
      %v3259 = vld [vmem:[%s2920 + $0x60] sm:$0xf]
      %v3260 = vld [vmem:[%s2920 + $0x64] sm:$0xf]
      %v3261 = vld [vmem:[%s2920 + $0x68] sm:$0x1]
      %v3262 = vld [vmem:[%s2920 + $0x6c] sm:$0xf]
      %v3263 = vld [vmem:[%s2920 + $0x70] sm:$0xf]
      %v3264 = vld [vmem:[%s2920 + $0x74] sm:$0x1]
      %v3265 = vld [vmem:[%s2920 + $0x78] sm:$0xf]
      %v3266 = vld [vmem:[%s2920 + $0x7c] sm:$0xf]
      %v3267 = vld [vmem:[%s2920 + $0x80] sm:$0x1]
      %v3268 = vld [vmem:[%s2920 + $0x84] sm:$0xf]
      %v3269 = vld [vmem:[%s2920 + $0x88] sm:$0xf]
      %v3270 = vld [vmem:[%s2920 + $0x8c] sm:$0x1]
      %v3271 = vld [vmem:[%s2920 + $0x90] sm:$0xf]
      %v3272 = vld [vmem:[%s2920 + $0x94] sm:$0xf]
      %v3273 = vld [vmem:[%s2920 + $0x98] sm:$0x1]
      %v3274 = vld [vmem:[%s2920 + $0x9c] sm:$0xf]
      %v3275 = vld [vmem:[%s2920 + $0xa0] sm:$0xf]
      %v3276 = vld [vmem:[%s2920 + $0xa4] sm:$0x1]
      %v3277 = vld [vmem:[%s2920 + $0xa8] sm:$0xf]
      %v3278 = vld [vmem:[%s2920 + $0xac] sm:$0xf]
      %v3279 = vld [vmem:[%s2920 + $0xb0] sm:$0x1]
      %v3280 = vld [vmem:[%s2920 + $0xb4] sm:$0xf]
      %v3281 = vld [vmem:[%s2920 + $0xb8] sm:$0xf]
      %v3282 = vld [vmem:[%s2920 + $0xbc] sm:$0x1]
      %v3284 = vshrl.u32 %v3235, 16
      %v3286 = vrot.slane %v3284, 4
      %v3287 = vshll.u32 %v3235, 16
      %v3289 = vrot.slane %v3287, 5
      %v3290 = vor.u32 %v3286, %v3289
      %v3291 = vrot.slane %v3290, 4
      %v3293 = vshll.u32 %v3236, 16
      %v3295 = vrot.slane %v3293, 5
      %v3296 = vsel %vm248, %v3291, %v3295
      %v3297 = vshrl.u32 %v3236, 16
      %v3299 = vrot.slane %v3297, 4
      %v3300 = vor.u32 %v3299, %v3295
      %v3301 = vrot.slane %v3300, 4
      %v3303 = vshll.u32 %v3237, 16
      %v3305 = vrot.slane %v3303, 5
      %v3306 = vsel %vm248, %v3301, %v3305
      %v3308 = vshrl.u32 %v3238, 16
      %v3310 = vrot.slane %v3308, 4
      %v3311 = vshll.u32 %v3238, 16
      %v3313 = vrot.slane %v3311, 5
      %v3314 = vor.u32 %v3310, %v3313
      %v3315 = vrot.slane %v3314, 4
      %v3317 = vshll.u32 %v3239, 16
      %v3319 = vrot.slane %v3317, 5
      %v3320 = vsel %vm248, %v3315, %v3319
      %v3321 = vshrl.u32 %v3239, 16
      %v3323 = vrot.slane %v3321, 4
      %v3324 = vor.u32 %v3323, %v3319
      %v3325 = vrot.slane %v3324, 4
      %v3327 = vshll.u32 %v3240, 16
      %v3329 = vrot.slane %v3327, 5
      %v3330 = vsel %vm248, %v3325, %v3329
      %v3332 = vshrl.u32 %v3241, 16
      %v3334 = vrot.slane %v3332, 4
      %v3335 = vshll.u32 %v3241, 16
      %v3337 = vrot.slane %v3335, 5
      %v3338 = vor.u32 %v3334, %v3337
      %v3339 = vrot.slane %v3338, 4
      %v3341 = vshll.u32 %v3242, 16
      %v3343 = vrot.slane %v3341, 5
      %v3344 = vsel %vm248, %v3339, %v3343
      %v3345 = vshrl.u32 %v3242, 16
      %v3347 = vrot.slane %v3345, 4
      %v3348 = vor.u32 %v3347, %v3343
      %v3349 = vrot.slane %v3348, 4
      %v3351 = vshll.u32 %v3243, 16
      %v3353 = vrot.slane %v3351, 5
      %v3354 = vsel %vm248, %v3349, %v3353
      %v3356 = vshrl.u32 %v3244, 16
      %v3358 = vrot.slane %v3356, 4
      %v3359 = vshll.u32 %v3244, 16
      %v3361 = vrot.slane %v3359, 5
      %v3362 = vor.u32 %v3358, %v3361
      %v3363 = vrot.slane %v3362, 4
      %v3365 = vshll.u32 %v3245, 16
      %v3367 = vrot.slane %v3365, 5
      %v3368 = vsel %vm248, %v3363, %v3367
      %v3369 = vshrl.u32 %v3245, 16
      %v3371 = vrot.slane %v3369, 4
      %v3372 = vor.u32 %v3371, %v3367
      %v3373 = vrot.slane %v3372, 4
      %v3375 = vshll.u32 %v3246, 16
      %v3377 = vrot.slane %v3375, 5
      %v3378 = vsel %vm248, %v3373, %v3377
      %v3380 = vshrl.u32 %v3247, 16
      %v3382 = vrot.slane %v3380, 4
      %v3383 = vshll.u32 %v3247, 16
      %v3385 = vrot.slane %v3383, 5
      %v3386 = vor.u32 %v3382, %v3385
      %v3387 = vrot.slane %v3386, 4
      %v3389 = vshll.u32 %v3248, 16
      %v3391 = vrot.slane %v3389, 5
      %v3392 = vsel %vm248, %v3387, %v3391
      %v3393 = vshrl.u32 %v3248, 16
      %v3395 = vrot.slane %v3393, 4
      %v3396 = vor.u32 %v3395, %v3391
      %v3397 = vrot.slane %v3396, 4
      %v3399 = vshll.u32 %v3249, 16
      %v3401 = vrot.slane %v3399, 5
      %v3402 = vsel %vm248, %v3397, %v3401
      %v3404 = vshrl.u32 %v3250, 16
      %v3406 = vrot.slane %v3404, 4
      %v3407 = vshll.u32 %v3250, 16
      %v3409 = vrot.slane %v3407, 5
      %v3410 = vor.u32 %v3406, %v3409
      %v3411 = vrot.slane %v3410, 4
      %v3413 = vshll.u32 %v3251, 16
      %v3415 = vrot.slane %v3413, 5
      %v3416 = vsel %vm248, %v3411, %v3415
      %v3417 = vshrl.u32 %v3251, 16
      %v3419 = vrot.slane %v3417, 4
      %v3420 = vor.u32 %v3419, %v3415
      %v3421 = vrot.slane %v3420, 4
      %v3423 = vshll.u32 %v3252, 16
      %v3425 = vrot.slane %v3423, 5
      %v3426 = vsel %vm248, %v3421, %v3425
      %v3428 = vshrl.u32 %v3253, 16
      %v3430 = vrot.slane %v3428, 4
      %v3431 = vshll.u32 %v3253, 16
      %v3433 = vrot.slane %v3431, 5
      %v3434 = vor.u32 %v3430, %v3433
      %v3435 = vrot.slane %v3434, 4
      %v3437 = vshll.u32 %v3254, 16
      %v3439 = vrot.slane %v3437, 5
      %v3440 = vsel %vm248, %v3435, %v3439
      %v3441 = vshrl.u32 %v3254, 16
      %v3443 = vrot.slane %v3441, 4
      %v3444 = vor.u32 %v3443, %v3439
      %v3445 = vrot.slane %v3444, 4
      %v3447 = vshll.u32 %v3255, 16
      %v3449 = vrot.slane %v3447, 5
      %v3450 = vsel %vm248, %v3445, %v3449
      %v3452 = vshrl.u32 %v3256, 16
      %v3454 = vrot.slane %v3452, 4
      %v3455 = vshll.u32 %v3256, 16
      %v3457 = vrot.slane %v3455, 5
      %v3458 = vor.u32 %v3454, %v3457
      %v3459 = vrot.slane %v3458, 4
      %v3461 = vshll.u32 %v3257, 16
      %v3463 = vrot.slane %v3461, 5
      %v3464 = vsel %vm248, %v3459, %v3463
      %v3465 = vshrl.u32 %v3257, 16
      %v3467 = vrot.slane %v3465, 4
      %v3468 = vor.u32 %v3467, %v3463
      %v3469 = vrot.slane %v3468, 4
      %v3471 = vshll.u32 %v3258, 16
      %v3473 = vrot.slane %v3471, 5
      %v3474 = vsel %vm248, %v3469, %v3473
      %v3476 = vshrl.u32 %v3259, 16
      %v3478 = vrot.slane %v3476, 4
      %v3479 = vshll.u32 %v3259, 16
      %v3481 = vrot.slane %v3479, 5
      %v3482 = vor.u32 %v3478, %v3481
      %v3483 = vrot.slane %v3482, 4
      %v3485 = vshll.u32 %v3260, 16
      %v3487 = vrot.slane %v3485, 5
      %v3488 = vsel %vm248, %v3483, %v3487
      %v3489 = vshrl.u32 %v3260, 16
      %v3491 = vrot.slane %v3489, 4
      %v3492 = vor.u32 %v3491, %v3487
      %v3493 = vrot.slane %v3492, 4
      %v3495 = vshll.u32 %v3261, 16
      %v3497 = vrot.slane %v3495, 5
      %v3498 = vsel %vm248, %v3493, %v3497
      %v3500 = vshrl.u32 %v3262, 16
      %v3502 = vrot.slane %v3500, 4
      %v3503 = vshll.u32 %v3262, 16
      %v3505 = vrot.slane %v3503, 5
      %v3506 = vor.u32 %v3502, %v3505
      %v3507 = vrot.slane %v3506, 4
      %v3509 = vshll.u32 %v3263, 16
      %v3511 = vrot.slane %v3509, 5
      %v3512 = vsel %vm248, %v3507, %v3511
      %v3513 = vshrl.u32 %v3263, 16
      %v3515 = vrot.slane %v3513, 4
      %v3516 = vor.u32 %v3515, %v3511
      %v3517 = vrot.slane %v3516, 4
      %v3519 = vshll.u32 %v3264, 16
      %v3521 = vrot.slane %v3519, 5
      %v3522 = vsel %vm248, %v3517, %v3521
      %v3524 = vshrl.u32 %v3265, 16
      %v3526 = vrot.slane %v3524, 4
      %v3527 = vshll.u32 %v3265, 16
      %v3529 = vrot.slane %v3527, 5
      %v3530 = vor.u32 %v3526, %v3529
      %v3531 = vrot.slane %v3530, 4
      %v3533 = vshll.u32 %v3266, 16
      %v3535 = vrot.slane %v3533, 5
      %v3536 = vsel %vm248, %v3531, %v3535
      %v3537 = vshrl.u32 %v3266, 16
      %v3539 = vrot.slane %v3537, 4
      %v3540 = vor.u32 %v3539, %v3535
      %v3541 = vrot.slane %v3540, 4
      %v3543 = vshll.u32 %v3267, 16
      %v3545 = vrot.slane %v3543, 5
      %v3546 = vsel %vm248, %v3541, %v3545
      %v3548 = vshrl.u32 %v3268, 16
      %v3550 = vrot.slane %v3548, 4
      %v3551 = vshll.u32 %v3268, 16
      %v3553 = vrot.slane %v3551, 5
      %v3554 = vor.u32 %v3550, %v3553
      %v3555 = vrot.slane %v3554, 4
      %v3557 = vshll.u32 %v3269, 16
      %v3559 = vrot.slane %v3557, 5
      %v3560 = vsel %vm248, %v3555, %v3559
      %v3561 = vshrl.u32 %v3269, 16
      %v3563 = vrot.slane %v3561, 4
      %v3564 = vor.u32 %v3563, %v3559
      %v3565 = vrot.slane %v3564, 4
      %v3567 = vshll.u32 %v3270, 16
      %v3569 = vrot.slane %v3567, 5
      %v3570 = vsel %vm248, %v3565, %v3569
      %v3572 = vshrl.u32 %v3271, 16
      %v3574 = vrot.slane %v3572, 4
      %v3575 = vshll.u32 %v3271, 16
      %v3577 = vrot.slane %v3575, 5
      %v3578 = vor.u32 %v3574, %v3577
      %v3579 = vrot.slane %v3578, 4
      %v3581 = vshll.u32 %v3272, 16
      %v3583 = vrot.slane %v3581, 5
      %v3584 = vsel %vm248, %v3579, %v3583
      %v3585 = vshrl.u32 %v3272, 16
      %v3587 = vrot.slane %v3585, 4
      %v3588 = vor.u32 %v3587, %v3583
      %v3589 = vrot.slane %v3588, 4
      %v3591 = vshll.u32 %v3273, 16
      %v3593 = vrot.slane %v3591, 5
      %v3594 = vsel %vm248, %v3589, %v3593
      %v3596 = vshrl.u32 %v3274, 16
      %v3598 = vrot.slane %v3596, 4
      %v3599 = vshll.u32 %v3274, 16
      %v3601 = vrot.slane %v3599, 5
      %v3602 = vor.u32 %v3598, %v3601
      %v3603 = vrot.slane %v3602, 4
      %v3605 = vshll.u32 %v3275, 16
      %v3607 = vrot.slane %v3605, 5
      %v3608 = vsel %vm248, %v3603, %v3607
      %v3609 = vshrl.u32 %v3275, 16
      %v3611 = vrot.slane %v3609, 4
      %v3612 = vor.u32 %v3611, %v3607
      %v3613 = vrot.slane %v3612, 4
      %v3615 = vshll.u32 %v3276, 16
      %v3617 = vrot.slane %v3615, 5
      %v3618 = vsel %vm248, %v3613, %v3617
      %v3620 = vshrl.u32 %v3277, 16
      %v3622 = vrot.slane %v3620, 4
      %v3623 = vshll.u32 %v3277, 16
      %v3625 = vrot.slane %v3623, 5
      %v3626 = vor.u32 %v3622, %v3625
      %v3627 = vrot.slane %v3626, 4
      %v3629 = vshll.u32 %v3278, 16
      %v3631 = vrot.slane %v3629, 5
      %v3632 = vsel %vm248, %v3627, %v3631
      %v3633 = vshrl.u32 %v3278, 16
      %v3635 = vrot.slane %v3633, 4
      %v3636 = vor.u32 %v3635, %v3631
      %v3637 = vrot.slane %v3636, 4
      %v3639 = vshll.u32 %v3279, 16
      %v3641 = vrot.slane %v3639, 5
      %v3642 = vsel %vm248, %v3637, %v3641
      %v3644 = vshrl.u32 %v3280, 16
      %v3646 = vrot.slane %v3644, 4
      %v3647 = vshll.u32 %v3280, 16
      %v3649 = vrot.slane %v3647, 5
      %v3650 = vor.u32 %v3646, %v3649
      %v3651 = vrot.slane %v3650, 4
      %v3653 = vshll.u32 %v3281, 16
      %v3655 = vrot.slane %v3653, 5
      %v3656 = vsel %vm248, %v3651, %v3655
      %v3657 = vshrl.u32 %v3281, 16
      %v3659 = vrot.slane %v3657, 4
      %v3660 = vor.u32 %v3659, %v3655
      %v3661 = vrot.slane %v3660, 4
      %v3663 = vshll.u32 %v3282, 16
      %v3665 = vrot.slane %v3663, 5
      %v3666 = vsel %vm248, %v3661, %v3665
      %s3667 = scalar_lea.vmem %s1, 448
      %v3668 = vld [vmem:[%s3667] sm:$0xf]
      %v3669 = vld [vmem:[%s3667 + $0x4] sm:$0xf]
      %v3670 = vld [vmem:[%s3667 + $0x8] sm:$0xf]
      %v3671 = vld [vmem:[%s3667 + $0xc] sm:$0xf]
      %v3672 = vld [vmem:[%s3667 + $0x10] sm:$0xf]
      %v3673 = vld [vmem:[%s3667 + $0x14] sm:$0xf]
      %v3674 = vld [vmem:[%s3667 + $0x18] sm:$0xf]
      %v3675 = vld [vmem:[%s3667 + $0x1c] sm:$0xf]
      %v3676 = vld [vmem:[%s3667 + $0x20] sm:$0xf]
      %v3677 = vld [vmem:[%s3667 + $0x24] sm:$0xf]
      %v3678 = vld [vmem:[%s3667 + $0x28] sm:$0xf]
      %v3679 = vld [vmem:[%s3667 + $0x2c] sm:$0xf]
      %v3680 = vld [vmem:[%s3667 + $0x30] sm:$0xf]
      %v3681 = vld [vmem:[%s3667 + $0x34] sm:$0xf]
      %v3682 = vld [vmem:[%s3667 + $0x38] sm:$0xf]
      %v3683 = vld [vmem:[%s3667 + $0x3c] sm:$0xf]
      %v3684 = vunpack.c.l.b16 %v3296
      %v3685 = vunpack.c.l.b16 %v3306
      %v3686 = vunpack.c.l.b16 %v3320
      %v3687 = vunpack.c.l.b16 %v3330
      %v3688 = vunpack.c.l.b16 %v3344
      %v3689 = vunpack.c.l.b16 %v3354
      %v3690 = vunpack.c.l.b16 %v3368
      %v3691 = vunpack.c.l.b16 %v3378
      %v3692 = vunpack.c.l.b16 %v3392
      %v3693 = vunpack.c.l.b16 %v3402
      %v3694 = vunpack.c.l.b16 %v3416
      %v3695 = vunpack.c.l.b16 %v3426
      %v3696 = vunpack.c.l.b16 %v3440
      %v3697 = vunpack.c.l.b16 %v3450
      %v3698 = vunpack.c.l.b16 %v3464
      %v3699 = vunpack.c.l.b16 %v3474
      %v3700 = vunpack.c.l.b16 %v3488
      %v3701 = vunpack.c.l.b16 %v3498
      %v3702 = vunpack.c.l.b16 %v3512
      %v3703 = vunpack.c.l.b16 %v3522
      %v3704 = vunpack.c.l.b16 %v3536
      %v3705 = vunpack.c.l.b16 %v3546
      %v3706 = vunpack.c.l.b16 %v3560
      %v3707 = vunpack.c.l.b16 %v3570
      %v3708 = vunpack.c.l.b16 %v3584
      %v3709 = vunpack.c.l.b16 %v3594
      %v3710 = vunpack.c.l.b16 %v3608
      %v3711 = vunpack.c.l.b16 %v3618
      %v3712 = vunpack.c.l.b16 %v3632
      %v3713 = vunpack.c.l.b16 %v3642
      %v3714 = vunpack.c.l.b16 %v3656
      %v3715 = vunpack.c.l.b16 %v3666
      %v3716 = vpack.c.b16 %v3685, %v3684
      %v3717 = vpack.c.b16 %v3687, %v3686
      %v3718 = vpack.c.b16 %v3689, %v3688
      %v3719 = vpack.c.b16 %v3691, %v3690
      %v3720 = vpack.c.b16 %v3693, %v3692
      %v3721 = vpack.c.b16 %v3695, %v3694
      %v3722 = vpack.c.b16 %v3697, %v3696
      %v3723 = vpack.c.b16 %v3699, %v3698
      %v3724 = vpack.c.b16 %v3701, %v3700
      %v3725 = vpack.c.b16 %v3703, %v3702
      %v3726 = vpack.c.b16 %v3705, %v3704
      %v3727 = vpack.c.b16 %v3707, %v3706
      %v3728 = vpack.c.b16 %v3709, %v3708
      %v3729 = vpack.c.b16 %v3711, %v3710
      %v3730 = vpack.c.b16 %v3713, %v3712
      %v3731 = vpack.c.b16 %v3715, %v3714
      %v3764 = vunpack.c.l.b16 %v3668
      %v3765 = vunpack.c.l.b16 %v3669
      %v3766 = vunpack.c.l.b16 %v3670
      %v3767 = vunpack.c.l.b16 %v3671
      %v3768 = vunpack.c.l.b16 %v3672
      %v3769 = vunpack.c.l.b16 %v3673
      %v3770 = vunpack.c.l.b16 %v3674
      %v3771 = vunpack.c.l.b16 %v3675
      %v3772 = vunpack.c.l.b16 %v3676
      %v3773 = vunpack.c.l.b16 %v3677
      %v3774 = vunpack.c.l.b16 %v3678
      %v3775 = vunpack.c.l.b16 %v3679
      %v3776 = vunpack.c.l.b16 %v3680
      %v3777 = vunpack.c.l.b16 %v3681
      %v3778 = vunpack.c.l.b16 %v3682
      %v3779 = vunpack.c.l.b16 %v3683
      %v3780 = vpack.c.b16 %v3765, %v3764
      %v3781 = vpack.c.b16 %v3767, %v3766
      %v3782 = vpack.c.b16 %v3769, %v3768
      %v3783 = vpack.c.b16 %v3771, %v3770
      %v3784 = vpack.c.b16 %v3773, %v3772
      %v3785 = vpack.c.b16 %v3775, %v3774
      %v3786 = vpack.c.b16 %v3777, %v3776
      %v3787 = vpack.c.b16 %v3779, %v3778
      %3796 = vmatpush.bf16.msra.mxu0 %v3787
      %3797 = vmatpush.bf16.msra.mxu0 %v3786
      %3798 = vmatpush.bf16.msra.mxu0 %v3785
      %3799 = vmatpush.bf16.msra.mxu0 %v3784
      %3800 = vmatpush.bf16.msra.mxu0 %v3783
      %3801 = vmatpush.bf16.msra.mxu0 %v3782
      %3802 = vmatpush.bf16.msra.mxu0 %v3781
      %3803 = vmatpush.bf16.msra.mxu0 %v3780
      %3804 = vmatmul.bf16.gmra.mxu0 %v3716
      %v3805 = vpop.f32.mrf.mxu0
      %v3806 = vadd.f32 0.0, %v3805
      %v3807 = vpop.f32.mrf.mxu0
      %v3808 = vadd.f32 0.0, %v3807
      %3809 = vmatmul.bf16.gmra.mxu0 %v3717
      %v3810 = vpop.f32.mrf.mxu0
      %v3811 = vadd.f32 0.0, %v3810
      %v3812 = vpop.f32.mrf.mxu0
      %v3813 = vadd.f32 0.0, %v3812
      %3814 = vmatmul.bf16.gmra.mxu0 %v3718
      %v3815 = vpop.f32.mrf.mxu0
      %v3816 = vadd.f32 0.0, %v3815
      %v3817 = vpop.f32.mrf.mxu0
      %v3818 = vadd.f32 0.0, %v3817
      %3819 = vmatmul.bf16.gmra.mxu0 %v3719
      %v3820 = vpop.f32.mrf.mxu0
      %v3821 = vadd.f32 0.0, %v3820
      %v3822 = vpop.f32.mrf.mxu0
      %v3823 = vadd.f32 0.0, %v3822
      %3824 = vmatmul.bf16.gmra.mxu0 %v3720
      %v3825 = vpop.f32.mrf.mxu0
      %v3826 = vadd.f32 0.0, %v3825
      %v3827 = vpop.f32.mrf.mxu0
      %v3828 = vadd.f32 0.0, %v3827
      %3829 = vmatmul.bf16.gmra.mxu0 %v3721
      %v3830 = vpop.f32.mrf.mxu0
      %v3831 = vadd.f32 0.0, %v3830
      %v3832 = vpop.f32.mrf.mxu0
      %v3833 = vadd.f32 0.0, %v3832
      %3834 = vmatmul.bf16.gmra.mxu0 %v3722
      %v3835 = vpop.f32.mrf.mxu0
      %v3836 = vadd.f32 0.0, %v3835
      %v3837 = vpop.f32.mrf.mxu0
      %v3838 = vadd.f32 0.0, %v3837
      %3839 = vmatmul.bf16.gmra.mxu0 %v3723
      %v3840 = vpop.f32.mrf.mxu0
      %v3841 = vadd.f32 0.0, %v3840
      %v3842 = vpop.f32.mrf.mxu0
      %v3843 = vadd.f32 0.0, %v3842
      %3844 = vmatmul.bf16.gmra.mxu0 %v3724
      %v3845 = vpop.f32.mrf.mxu0
      %v3846 = vadd.f32 0.0, %v3845
      %v3847 = vpop.f32.mrf.mxu0
      %v3848 = vadd.f32 0.0, %v3847
      %3849 = vmatmul.bf16.gmra.mxu0 %v3725
      %v3850 = vpop.f32.mrf.mxu0
      %v3851 = vadd.f32 0.0, %v3850
      %v3852 = vpop.f32.mrf.mxu0
      %v3853 = vadd.f32 0.0, %v3852
      %3854 = vmatmul.bf16.gmra.mxu0 %v3726
      %v3855 = vpop.f32.mrf.mxu0
      %v3856 = vadd.f32 0.0, %v3855
      %v3857 = vpop.f32.mrf.mxu0
      %v3858 = vadd.f32 0.0, %v3857
      %3859 = vmatmul.bf16.gmra.mxu0 %v3727
      %v3860 = vpop.f32.mrf.mxu0
      %v3861 = vadd.f32 0.0, %v3860
      %v3862 = vpop.f32.mrf.mxu0
      %v3863 = vadd.f32 0.0, %v3862
      %3864 = vmatmul.bf16.gmra.mxu0 %v3728
      %v3865 = vpop.f32.mrf.mxu0
      %v3866 = vadd.f32 0.0, %v3865
      %v3867 = vpop.f32.mrf.mxu0
      %v3868 = vadd.f32 0.0, %v3867
      %3869 = vmatmul.bf16.gmra.mxu0 %v3729
      %v3870 = vpop.f32.mrf.mxu0
      %v3871 = vadd.f32 0.0, %v3870
      %v3872 = vpop.f32.mrf.mxu0
      %v3873 = vadd.f32 0.0, %v3872
      %3874 = vmatmul.bf16.gmra.mxu0 %v3730
      %v3875 = vpop.f32.mrf.mxu0
      %v3876 = vadd.f32 0.0, %v3875
      %v3877 = vpop.f32.mrf.mxu0
      %v3878 = vadd.f32 0.0, %v3877
      %3879 = vmatmul.bf16.gmra.mxu0 %v3731
      %v3880 = vpop.f32.mrf.mxu0
      %v3881 = vadd.f32 0.0, %v3880
      %v3882 = vpop.f32.mrf.mxu0
      %v3883 = vadd.f32 0.0, %v3882
      %3884 = vdwg.mxu0
      %v3885 = vadd.f32 %v3203, %v3806
      %v3886 = vadd.f32 %v3204, %v3808
      %v3887 = vadd.f32 %v3205, %v3811
      %v3888 = vadd.f32 %v3206, %v3813
      %v3889 = vadd.f32 %v3207, %v3816
      %v3890 = vadd.f32 %v3208, %v3818
      %v3891 = vadd.f32 %v3209, %v3821
      %v3892 = vadd.f32 %v3210, %v3823
      %v3893 = vadd.f32 %v3211, %v3826
      %v3894 = vadd.f32 %v3212, %v3828
      %v3895 = vadd.f32 %v3213, %v3831
      %v3896 = vadd.f32 %v3214, %v3833
      %v3897 = vadd.f32 %v3215, %v3836
      %v3898 = vadd.f32 %v3216, %v3838
      %v3899 = vadd.f32 %v3217, %v3841
      %v3900 = vadd.f32 %v3218, %v3843
      %v3901 = vadd.f32 %v3219, %v3846
      %v3902 = vadd.f32 %v3220, %v3848
      %v3903 = vadd.f32 %v3221, %v3851
      %v3904 = vadd.f32 %v3222, %v3853
      %v3905 = vadd.f32 %v3223, %v3856
      %v3906 = vadd.f32 %v3224, %v3858
      %v3907 = vadd.f32 %v3225, %v3861
      %v3908 = vadd.f32 %v3226, %v3863
      %v3909 = vadd.f32 %v3227, %v3866
      %v3910 = vadd.f32 %v3228, %v3868
      %v3911 = vadd.f32 %v3229, %v3871
      %v3912 = vadd.f32 %v3230, %v3873
      %v3913 = vadd.f32 %v3231, %v3876
      %v3914 = vadd.f32 %v3232, %v3878
      %v3915 = vadd.f32 %v3233, %v3881
      %v3916 = vadd.f32 %v3234, %v3883
      %v3917 = vld [vmem:[%s2920] sm:$0xe]
      %v3918 = vld [vmem:[%s2920 + $0xc] sm:$0xe]
      %v3919 = vld [vmem:[%s2920 + $0x18] sm:$0xe]
      %v3920 = vld [vmem:[%s2920 + $0x24] sm:$0xe]
      %v3921 = vld [vmem:[%s2920 + $0x30] sm:$0xe]
      %v3922 = vld [vmem:[%s2920 + $0x3c] sm:$0xe]
      %v3923 = vld [vmem:[%s2920 + $0x48] sm:$0xe]
      %v3924 = vld [vmem:[%s2920 + $0x54] sm:$0xe]
      %v3925 = vld [vmem:[%s2920 + $0x60] sm:$0xe]
      %v3926 = vld [vmem:[%s2920 + $0x6c] sm:$0xe]
      %v3927 = vld [vmem:[%s2920 + $0x78] sm:$0xe]
      %v3928 = vld [vmem:[%s2920 + $0x84] sm:$0xe]
      %v3929 = vld [vmem:[%s2920 + $0x90] sm:$0xe]
      %v3930 = vld [vmem:[%s2920 + $0x9c] sm:$0xe]
      %v3931 = vld [vmem:[%s2920 + $0xa8] sm:$0xe]
      %v3932 = vld [vmem:[%s2920 + $0xb4] sm:$0xe]
      %v3981 = vrot.slane %v3917, 5
      %v3982 = vrot.slane %v3981, 4
      %v3983 = vrot.slane %v3236, 5
      %v3984 = vsel %vm1134, %v3982, %v3983
      %v3985 = vrot.slane %v3983, 4
      %v3986 = vrot.slane %v3237, 5
      %v3987 = vsel %vm1134, %v3985, %v3986
      %v3988 = vrot.slane %v3918, 5
      %v3989 = vrot.slane %v3988, 4
      %v3990 = vrot.slane %v3239, 5
      %v3991 = vsel %vm1134, %v3989, %v3990
      %v3992 = vrot.slane %v3990, 4
      %v3993 = vrot.slane %v3240, 5
      %v3994 = vsel %vm1134, %v3992, %v3993
      %v3995 = vrot.slane %v3919, 5
      %v3996 = vrot.slane %v3995, 4
      %v3997 = vrot.slane %v3242, 5
      %v3998 = vsel %vm1134, %v3996, %v3997
      %v3999 = vrot.slane %v3997, 4
      %v4000 = vrot.slane %v3243, 5
      %v4001 = vsel %vm1134, %v3999, %v4000
      %v4002 = vrot.slane %v3920, 5
      %v4003 = vrot.slane %v4002, 4
      %v4004 = vrot.slane %v3245, 5
      %v4005 = vsel %vm1134, %v4003, %v4004
      %v4006 = vrot.slane %v4004, 4
      %v4007 = vrot.slane %v3246, 5
      %v4008 = vsel %vm1134, %v4006, %v4007
      %v4009 = vrot.slane %v3921, 5
      %v4010 = vrot.slane %v4009, 4
      %v4011 = vrot.slane %v3248, 5
      %v4012 = vsel %vm1134, %v4010, %v4011
      %v4013 = vrot.slane %v4011, 4
      %v4014 = vrot.slane %v3249, 5
      %v4015 = vsel %vm1134, %v4013, %v4014
      %v4016 = vrot.slane %v3922, 5
      %v4017 = vrot.slane %v4016, 4
      %v4018 = vrot.slane %v3251, 5
      %v4019 = vsel %vm1134, %v4017, %v4018
      %v4020 = vrot.slane %v4018, 4
      %v4021 = vrot.slane %v3252, 5
      %v4022 = vsel %vm1134, %v4020, %v4021
      %v4023 = vrot.slane %v3923, 5
      %v4024 = vrot.slane %v4023, 4
      %v4025 = vrot.slane %v3254, 5
      %v4026 = vsel %vm1134, %v4024, %v4025
      %v4027 = vrot.slane %v4025, 4
      %v4028 = vrot.slane %v3255, 5
      %v4029 = vsel %vm1134, %v4027, %v4028
      %v4030 = vrot.slane %v3924, 5
      %v4031 = vrot.slane %v4030, 4
      %v4032 = vrot.slane %v3257, 5
      %v4033 = vsel %vm1134, %v4031, %v4032
      %v4034 = vrot.slane %v4032, 4
      %v4035 = vrot.slane %v3258, 5
      %v4036 = vsel %vm1134, %v4034, %v4035
      %v4037 = vrot.slane %v3925, 5
      %v4038 = vrot.slane %v4037, 4
      %v4039 = vrot.slane %v3260, 5
      %v4040 = vsel %vm1134, %v4038, %v4039
      %v4041 = vrot.slane %v4039, 4
      %v4042 = vrot.slane %v3261, 5
      %v4043 = vsel %vm1134, %v4041, %v4042
      %v4044 = vrot.slane %v3926, 5
      %v4045 = vrot.slane %v4044, 4
      %v4046 = vrot.slane %v3263, 5
      %v4047 = vsel %vm1134, %v4045, %v4046
      %v4048 = vrot.slane %v4046, 4
      %v4049 = vrot.slane %v3264, 5
      %v4050 = vsel %vm1134, %v4048, %v4049
      %v4051 = vrot.slane %v3927, 5
      %v4052 = vrot.slane %v4051, 4
      %v4053 = vrot.slane %v3266, 5
      %v4054 = vsel %vm1134, %v4052, %v4053
      %v4055 = vrot.slane %v4053, 4
      %v4056 = vrot.slane %v3267, 5
      %v4057 = vsel %vm1134, %v4055, %v4056
      %v4058 = vrot.slane %v3928, 5
      %v4059 = vrot.slane %v4058, 4
      %v4060 = vrot.slane %v3269, 5
      %v4061 = vsel %vm1134, %v4059, %v4060
      %v4062 = vrot.slane %v4060, 4
      %v4063 = vrot.slane %v3270, 5
      %v4064 = vsel %vm1134, %v4062, %v4063
      %v4065 = vrot.slane %v3929, 5
      %v4066 = vrot.slane %v4065, 4
      %v4067 = vrot.slane %v3272, 5
      %v4068 = vsel %vm1134, %v4066, %v4067
      %v4069 = vrot.slane %v4067, 4
      %v4070 = vrot.slane %v3273, 5
      %v4071 = vsel %vm1134, %v4069, %v4070
      %v4072 = vrot.slane %v3930, 5
      %v4073 = vrot.slane %v4072, 4
      %v4074 = vrot.slane %v3275, 5
      %v4075 = vsel %vm1134, %v4073, %v4074
      %v4076 = vrot.slane %v4074, 4
      %v4077 = vrot.slane %v3276, 5
      %v4078 = vsel %vm1134, %v4076, %v4077
      %v4079 = vrot.slane %v3931, 5
      %v4080 = vrot.slane %v4079, 4
      %v4081 = vrot.slane %v3278, 5
      %v4082 = vsel %vm1134, %v4080, %v4081
      %v4083 = vrot.slane %v4081, 4
      %v4084 = vrot.slane %v3279, 5
      %v4085 = vsel %vm1134, %v4083, %v4084
      %v4086 = vrot.slane %v3932, 5
      %v4087 = vrot.slane %v4086, 4
      %v4088 = vrot.slane %v3281, 5
      %v4089 = vsel %vm1134, %v4087, %v4088
      %v4090 = vrot.slane %v4088, 4
      %v4091 = vrot.slane %v3282, 5
      %v4092 = vsel %vm1134, %v4090, %v4091
      %s4093 = scalar_lea.vmem %s1, 512
      %v4094 = vld [vmem:[%s4093] sm:$0xf]
      %v4095 = vld [vmem:[%s4093 + $0x4] sm:$0xf]
      %v4096 = vld [vmem:[%s4093 + $0x8] sm:$0xf]
      %v4097 = vld [vmem:[%s4093 + $0xc] sm:$0xf]
      %v4098 = vld [vmem:[%s4093 + $0x10] sm:$0xf]
      %v4099 = vld [vmem:[%s4093 + $0x14] sm:$0xf]
      %v4100 = vld [vmem:[%s4093 + $0x18] sm:$0xf]
      %v4101 = vld [vmem:[%s4093 + $0x1c] sm:$0xf]
      %v4102 = vld [vmem:[%s4093 + $0x20] sm:$0xf]
      %v4103 = vld [vmem:[%s4093 + $0x24] sm:$0xf]
      %v4104 = vld [vmem:[%s4093 + $0x28] sm:$0xf]
      %v4105 = vld [vmem:[%s4093 + $0x2c] sm:$0xf]
      %v4106 = vld [vmem:[%s4093 + $0x30] sm:$0xf]
      %v4107 = vld [vmem:[%s4093 + $0x34] sm:$0xf]
      %v4108 = vld [vmem:[%s4093 + $0x38] sm:$0xf]
      %v4109 = vld [vmem:[%s4093 + $0x3c] sm:$0xf]
      %v4110 = vunpack.c.l.b16 %v3984
      %v4111 = vunpack.c.l.b16 %v3987
      %v4112 = vunpack.c.l.b16 %v3991
      %v4113 = vunpack.c.l.b16 %v3994
      %v4114 = vunpack.c.l.b16 %v3998
      %v4115 = vunpack.c.l.b16 %v4001
      %v4116 = vunpack.c.l.b16 %v4005
      %v4117 = vunpack.c.l.b16 %v4008
      %v4118 = vunpack.c.l.b16 %v4012
      %v4119 = vunpack.c.l.b16 %v4015
      %v4120 = vunpack.c.l.b16 %v4019
      %v4121 = vunpack.c.l.b16 %v4022
      %v4122 = vunpack.c.l.b16 %v4026
      %v4123 = vunpack.c.l.b16 %v4029
      %v4124 = vunpack.c.l.b16 %v4033
      %v4125 = vunpack.c.l.b16 %v4036
      %v4126 = vunpack.c.l.b16 %v4040
      %v4127 = vunpack.c.l.b16 %v4043
      %v4128 = vunpack.c.l.b16 %v4047
      %v4129 = vunpack.c.l.b16 %v4050
      %v4130 = vunpack.c.l.b16 %v4054
      %v4131 = vunpack.c.l.b16 %v4057
      %v4132 = vunpack.c.l.b16 %v4061
      %v4133 = vunpack.c.l.b16 %v4064
      %v4134 = vunpack.c.l.b16 %v4068
      %v4135 = vunpack.c.l.b16 %v4071
      %v4136 = vunpack.c.l.b16 %v4075
      %v4137 = vunpack.c.l.b16 %v4078
      %v4138 = vunpack.c.l.b16 %v4082
      %v4139 = vunpack.c.l.b16 %v4085
      %v4140 = vunpack.c.l.b16 %v4089
      %v4141 = vunpack.c.l.b16 %v4092
      %v4142 = vpack.c.b16 %v4111, %v4110
      %v4143 = vpack.c.b16 %v4113, %v4112
      %v4144 = vpack.c.b16 %v4115, %v4114
      %v4145 = vpack.c.b16 %v4117, %v4116
      %v4146 = vpack.c.b16 %v4119, %v4118
      %v4147 = vpack.c.b16 %v4121, %v4120
      %v4148 = vpack.c.b16 %v4123, %v4122
      %v4149 = vpack.c.b16 %v4125, %v4124
      %v4150 = vpack.c.b16 %v4127, %v4126
      %v4151 = vpack.c.b16 %v4129, %v4128
      %v4152 = vpack.c.b16 %v4131, %v4130
      %v4153 = vpack.c.b16 %v4133, %v4132
      %v4154 = vpack.c.b16 %v4135, %v4134
      %v4155 = vpack.c.b16 %v4137, %v4136
      %v4156 = vpack.c.b16 %v4139, %v4138
      %v4157 = vpack.c.b16 %v4141, %v4140
      %v4190 = vunpack.c.l.b16 %v4094
      %v4191 = vunpack.c.l.b16 %v4095
      %v4192 = vunpack.c.l.b16 %v4096
      %v4193 = vunpack.c.l.b16 %v4097
      %v4194 = vunpack.c.l.b16 %v4098
      %v4195 = vunpack.c.l.b16 %v4099
      %v4196 = vunpack.c.l.b16 %v4100
      %v4197 = vunpack.c.l.b16 %v4101
      %v4198 = vunpack.c.l.b16 %v4102
      %v4199 = vunpack.c.l.b16 %v4103
      %v4200 = vunpack.c.l.b16 %v4104
      %v4201 = vunpack.c.l.b16 %v4105
      %v4202 = vunpack.c.l.b16 %v4106
      %v4203 = vunpack.c.l.b16 %v4107
      %v4204 = vunpack.c.l.b16 %v4108
      %v4205 = vunpack.c.l.b16 %v4109
      %v4206 = vpack.c.b16 %v4191, %v4190
      %v4207 = vpack.c.b16 %v4193, %v4192
      %v4208 = vpack.c.b16 %v4195, %v4194
      %v4209 = vpack.c.b16 %v4197, %v4196
      %v4210 = vpack.c.b16 %v4199, %v4198
      %v4211 = vpack.c.b16 %v4201, %v4200
      %v4212 = vpack.c.b16 %v4203, %v4202
      %v4213 = vpack.c.b16 %v4205, %v4204
      %4222 = vmatpush.bf16.msra.mxu0 %v4213
      %4223 = vmatpush.bf16.msra.mxu0 %v4212
      %4224 = vmatpush.bf16.msra.mxu0 %v4211
      %4225 = vmatpush.bf16.msra.mxu0 %v4210
      %4226 = vmatpush.bf16.msra.mxu0 %v4209
      %4227 = vmatpush.bf16.msra.mxu0 %v4208
      %4228 = vmatpush.bf16.msra.mxu0 %v4207
      %4229 = vmatpush.bf16.msra.mxu0 %v4206
      %4230 = vmatmul.bf16.gmra.mxu0 %v4142
      %v4231 = vpop.f32.mrf.mxu0
      %v4232 = vadd.f32 0.0, %v4231
      %v4233 = vpop.f32.mrf.mxu0
      %v4234 = vadd.f32 0.0, %v4233
      %4235 = vmatmul.bf16.gmra.mxu0 %v4143
      %v4236 = vpop.f32.mrf.mxu0
      %v4237 = vadd.f32 0.0, %v4236
      %v4238 = vpop.f32.mrf.mxu0
      %v4239 = vadd.f32 0.0, %v4238
      %4240 = vmatmul.bf16.gmra.mxu0 %v4144
      %v4241 = vpop.f32.mrf.mxu0
      %v4242 = vadd.f32 0.0, %v4241
      %v4243 = vpop.f32.mrf.mxu0
      %v4244 = vadd.f32 0.0, %v4243
      %4245 = vmatmul.bf16.gmra.mxu0 %v4145
      %v4246 = vpop.f32.mrf.mxu0
      %v4247 = vadd.f32 0.0, %v4246
      %v4248 = vpop.f32.mrf.mxu0
      %v4249 = vadd.f32 0.0, %v4248
      %4250 = vmatmul.bf16.gmra.mxu0 %v4146
      %v4251 = vpop.f32.mrf.mxu0
      %v4252 = vadd.f32 0.0, %v4251
      %v4253 = vpop.f32.mrf.mxu0
      %v4254 = vadd.f32 0.0, %v4253
      %4255 = vmatmul.bf16.gmra.mxu0 %v4147
      %v4256 = vpop.f32.mrf.mxu0
      %v4257 = vadd.f32 0.0, %v4256
      %v4258 = vpop.f32.mrf.mxu0
      %v4259 = vadd.f32 0.0, %v4258
      %4260 = vmatmul.bf16.gmra.mxu0 %v4148
      %v4261 = vpop.f32.mrf.mxu0
      %v4262 = vadd.f32 0.0, %v4261
      %v4263 = vpop.f32.mrf.mxu0
      %v4264 = vadd.f32 0.0, %v4263
      %4265 = vmatmul.bf16.gmra.mxu0 %v4149
      %v4266 = vpop.f32.mrf.mxu0
      %v4267 = vadd.f32 0.0, %v4266
      %v4268 = vpop.f32.mrf.mxu0
      %v4269 = vadd.f32 0.0, %v4268
      %4270 = vmatmul.bf16.gmra.mxu0 %v4150
      %v4271 = vpop.f32.mrf.mxu0
      %v4272 = vadd.f32 0.0, %v4271
      %v4273 = vpop.f32.mrf.mxu0
      %v4274 = vadd.f32 0.0, %v4273
      %4275 = vmatmul.bf16.gmra.mxu0 %v4151
      %v4276 = vpop.f32.mrf.mxu0
      %v4277 = vadd.f32 0.0, %v4276
      %v4278 = vpop.f32.mrf.mxu0
      %v4279 = vadd.f32 0.0, %v4278
      %4280 = vmatmul.bf16.gmra.mxu0 %v4152
      %v4281 = vpop.f32.mrf.mxu0
      %v4282 = vadd.f32 0.0, %v4281
      %v4283 = vpop.f32.mrf.mxu0
      %v4284 = vadd.f32 0.0, %v4283
      %4285 = vmatmul.bf16.gmra.mxu0 %v4153
      %v4286 = vpop.f32.mrf.mxu0
      %v4287 = vadd.f32 0.0, %v4286
      %v4288 = vpop.f32.mrf.mxu0
      %v4289 = vadd.f32 0.0, %v4288
      %4290 = vmatmul.bf16.gmra.mxu0 %v4154
      %v4291 = vpop.f32.mrf.mxu0
      %v4292 = vadd.f32 0.0, %v4291
      %v4293 = vpop.f32.mrf.mxu0
      %v4294 = vadd.f32 0.0, %v4293
      %4295 = vmatmul.bf16.gmra.mxu0 %v4155
      %v4296 = vpop.f32.mrf.mxu0
      %v4297 = vadd.f32 0.0, %v4296
      %v4298 = vpop.f32.mrf.mxu0
      %v4299 = vadd.f32 0.0, %v4298
      %4300 = vmatmul.bf16.gmra.mxu0 %v4156
      %v4301 = vpop.f32.mrf.mxu0
      %v4302 = vadd.f32 0.0, %v4301
      %v4303 = vpop.f32.mrf.mxu0
      %v4304 = vadd.f32 0.0, %v4303
      %4305 = vmatmul.bf16.gmra.mxu0 %v4157
      %v4306 = vpop.f32.mrf.mxu0
      %v4307 = vadd.f32 0.0, %v4306
      %v4308 = vpop.f32.mrf.mxu0
      %v4309 = vadd.f32 0.0, %v4308
      %4310 = vdwg.mxu0
      %v4311 = vadd.f32 %v3885, %v4232
      %v4312 = vadd.f32 %v3886, %v4234
      %v4313 = vadd.f32 %v3887, %v4237
      %v4314 = vadd.f32 %v3888, %v4239
      %v4315 = vadd.f32 %v3889, %v4242
      %v4316 = vadd.f32 %v3890, %v4244
      %v4317 = vadd.f32 %v3891, %v4247
      %v4318 = vadd.f32 %v3892, %v4249
      %v4319 = vadd.f32 %v3893, %v4252
      %v4320 = vadd.f32 %v3894, %v4254
      %v4321 = vadd.f32 %v3895, %v4257
      %v4322 = vadd.f32 %v3896, %v4259
      %v4323 = vadd.f32 %v3897, %v4262
      %v4324 = vadd.f32 %v3898, %v4264
      %v4325 = vadd.f32 %v3899, %v4267
      %v4326 = vadd.f32 %v3900, %v4269
      %v4327 = vadd.f32 %v3901, %v4272
      %v4328 = vadd.f32 %v3902, %v4274
      %v4329 = vadd.f32 %v3903, %v4277
      %v4330 = vadd.f32 %v3904, %v4279
      %v4331 = vadd.f32 %v3905, %v4282
      %v4332 = vadd.f32 %v3906, %v4284
      %v4333 = vadd.f32 %v3907, %v4287
      %v4334 = vadd.f32 %v3908, %v4289
      %v4335 = vadd.f32 %v3909, %v4292
      %v4336 = vadd.f32 %v3910, %v4294
      %v4337 = vadd.f32 %v3911, %v4297
      %v4338 = vadd.f32 %v3912, %v4299
      %v4339 = vadd.f32 %v3913, %v4302
      %v4340 = vadd.f32 %v3914, %v4304
      %v4341 = vadd.f32 %v3915, %v4307
      %v4342 = vadd.f32 %v3916, %v4309
      %v4343 = vadd.f32 %v4311, %v4312
      %v4344 = vadd.f32 %v4343, %v4313
      %v4345 = vadd.f32 %v4344, %v4314
      %v4346 = vadd.f32 %v4345, %v4315
      %v4347 = vadd.f32 %v4346, %v4316
      %v4348 = vadd.f32 %v4347, %v4317
      %v4349 = vadd.f32 %v4348, %v4318
      %v4350 = vadd.f32 %v4349, %v4319
      %v4351 = vadd.f32 %v4350, %v4320
      %v4352 = vadd.f32 %v4351, %v4321
      %v4353 = vadd.f32 %v4352, %v4322
      %v4354 = vadd.f32 %v4353, %v4323
      %v4355 = vadd.f32 %v4354, %v4324
      %v4356 = vadd.f32 %v4355, %v4325
      %v4357 = vadd.f32 %v4356, %v4326
      %v4358 = vadd.f32 %v4357, %v4327
      %v4359 = vadd.f32 %v4358, %v4328
      %v4360 = vadd.f32 %v4359, %v4329
      %v4361 = vadd.f32 %v4360, %v4330
      %v4362 = vadd.f32 %v4361, %v4331
      %v4363 = vadd.f32 %v4362, %v4332
      %v4364 = vadd.f32 %v4363, %v4333
      %v4365 = vadd.f32 %v4364, %v4334
      %v4366 = vadd.f32 %v4365, %v4335
      %v4367 = vadd.f32 %v4366, %v4336
      %v4368 = vadd.f32 %v4367, %v4337
      %v4369 = vadd.f32 %v4368, %v4338
      %v4370 = vadd.f32 %v4369, %v4339
      %v4371 = vadd.f32 %v4370, %v4340
      %v4372 = vadd.f32 %v4371, %v4341
      %v4373 = vadd.f32 %v4372, %v4342
      %v4374 = vrot.slane %v4373, 4
      %v4375 = vadd.f32 %v4373, %v4374
      %v4376 = vrot.slane %v4375, 2
      %v4377 = vadd.f32 %v4375, %v4376
      %v4378 = vrot.slane %v4377, 1
      %v4379 = vadd.f32 %v4377, %v4378
      %v4380 = vmul.f32 %v4311, %v4311
      %v4381 = vmul.f32 %v4312, %v4312
      %v4382 = vmul.f32 %v4313, %v4313
      %v4383 = vmul.f32 %v4314, %v4314
      %v4384 = vmul.f32 %v4315, %v4315
      %v4385 = vmul.f32 %v4316, %v4316
      %v4386 = vmul.f32 %v4317, %v4317
      %v4387 = vmul.f32 %v4318, %v4318
      %v4388 = vmul.f32 %v4319, %v4319
      %v4389 = vmul.f32 %v4320, %v4320
      %v4390 = vmul.f32 %v4321, %v4321
      %v4391 = vmul.f32 %v4322, %v4322
      %v4392 = vmul.f32 %v4323, %v4323
      %v4393 = vmul.f32 %v4324, %v4324
      %v4394 = vmul.f32 %v4325, %v4325
      %v4395 = vmul.f32 %v4326, %v4326
      %v4396 = vmul.f32 %v4327, %v4327
      %v4397 = vmul.f32 %v4328, %v4328
      %v4398 = vmul.f32 %v4329, %v4329
      %v4399 = vmul.f32 %v4330, %v4330
      %v4400 = vmul.f32 %v4331, %v4331
      %v4401 = vmul.f32 %v4332, %v4332
      %v4402 = vmul.f32 %v4333, %v4333
      %v4403 = vmul.f32 %v4334, %v4334
      %v4404 = vmul.f32 %v4335, %v4335
      %v4405 = vmul.f32 %v4336, %v4336
      %v4406 = vmul.f32 %v4337, %v4337
      %v4407 = vmul.f32 %v4338, %v4338
      %v4408 = vmul.f32 %v4339, %v4339
      %v4409 = vmul.f32 %v4340, %v4340
      %v4410 = vmul.f32 %v4341, %v4341
      %v4411 = vmul.f32 %v4342, %v4342
      %v4412 = vadd.f32 %v4380, %v4381
      %v4413 = vadd.f32 %v4412, %v4382
      %v4414 = vadd.f32 %v4413, %v4383
      %v4415 = vadd.f32 %v4414, %v4384
      %v4416 = vadd.f32 %v4415, %v4385
      %v4417 = vadd.f32 %v4416, %v4386
      %v4418 = vadd.f32 %v4417, %v4387
      %v4419 = vadd.f32 %v4418, %v4388
      %v4420 = vadd.f32 %v4419, %v4389
      %v4421 = vadd.f32 %v4420, %v4390
      %v4422 = vadd.f32 %v4421, %v4391
      %v4423 = vadd.f32 %v4422, %v4392
      %v4424 = vadd.f32 %v4423, %v4393
      %v4425 = vadd.f32 %v4424, %v4394
      %v4426 = vadd.f32 %v4425, %v4395
      %v4427 = vadd.f32 %v4426, %v4396
      %v4428 = vadd.f32 %v4427, %v4397
      %v4429 = vadd.f32 %v4428, %v4398
      %v4430 = vadd.f32 %v4429, %v4399
      %v4431 = vadd.f32 %v4430, %v4400
      %v4432 = vadd.f32 %v4431, %v4401
      %v4433 = vadd.f32 %v4432, %v4402
      %v4434 = vadd.f32 %v4433, %v4403
      %v4435 = vadd.f32 %v4434, %v4404
      %v4436 = vadd.f32 %v4435, %v4405
      %v4437 = vadd.f32 %v4436, %v4406
      %v4438 = vadd.f32 %v4437, %v4407
      %v4439 = vadd.f32 %v4438, %v4408
      %v4440 = vadd.f32 %v4439, %v4409
      %v4441 = vadd.f32 %v4440, %v4410
      %v4442 = vadd.f32 %v4441, %v4411
      %v4443 = vrot.slane %v4442, 4
      %v4444 = vadd.f32 %v4442, %v4443
      %v4445 = vrot.slane %v4444, 2
      %v4446 = vadd.f32 %v4444, %v4445
      %v4447 = vrot.slane %v4446, 1
      %v4448 = vadd.f32 %v4446, %v4447
      %vm4449 = vcmask 1040384
      %v4450 = vsel %vm4449, %v4379, %v4448
      %4451 = vst [vmem:[%s181] sm:$0x3] %v4450
      %v4452 = vpack.c.bf16 %v4311, %v4311
      %v4453 = vpack.c.bf16 %v4312, %v4312
      %v4454 = vpack.c.bf16 %v4313, %v4313
      %v4455 = vpack.c.bf16 %v4314, %v4314
      %v4456 = vpack.c.bf16 %v4315, %v4315
      %v4457 = vpack.c.bf16 %v4316, %v4316
      %v4458 = vpack.c.bf16 %v4317, %v4317
      %v4459 = vpack.c.bf16 %v4318, %v4318
      %v4460 = vpack.c.bf16 %v4319, %v4319
      %v4461 = vpack.c.bf16 %v4320, %v4320
      %v4462 = vpack.c.bf16 %v4321, %v4321
      %v4463 = vpack.c.bf16 %v4322, %v4322
      %v4464 = vpack.c.bf16 %v4323, %v4323
      %v4465 = vpack.c.bf16 %v4324, %v4324
      %v4466 = vpack.c.bf16 %v4325, %v4325
      %v4467 = vpack.c.bf16 %v4326, %v4326
      %v4468 = vpack.c.bf16 %v4327, %v4327
      %v4469 = vpack.c.bf16 %v4328, %v4328
      %v4470 = vpack.c.bf16 %v4329, %v4329
      %v4471 = vpack.c.bf16 %v4330, %v4330
      %v4472 = vpack.c.bf16 %v4331, %v4331
      %v4473 = vpack.c.bf16 %v4332, %v4332
      %v4474 = vpack.c.bf16 %v4333, %v4333
      %v4475 = vpack.c.bf16 %v4334, %v4334
      %v4476 = vpack.c.bf16 %v4335, %v4335
      %v4477 = vpack.c.bf16 %v4336, %v4336
      %v4478 = vpack.c.bf16 %v4337, %v4337
      %v4479 = vpack.c.bf16 %v4338, %v4338
      %v4480 = vpack.c.bf16 %v4339, %v4339
      %v4481 = vpack.c.bf16 %v4340, %v4340
      %v4482 = vpack.c.bf16 %v4341, %v4341
      %v4483 = vpack.c.bf16 %v4342, %v4342
      %4484 = vst [vmem:[%s177] sm:$0xf] %v4452
      %4485 = vst [vmem:[%s177 + $0x4] sm:$0xf] %v4453
      %4486 = vst [vmem:[%s177 + $0x8] sm:$0xf] %v4454
      %4487 = vst [vmem:[%s177 + $0xc] sm:$0xf] %v4455
      %4488 = vst [vmem:[%s177 + $0x10] sm:$0xf] %v4456
      %4489 = vst [vmem:[%s177 + $0x14] sm:$0xf] %v4457
      %4490 = vst [vmem:[%s177 + $0x18] sm:$0xf] %v4458
      %4491 = vst [vmem:[%s177 + $0x1c] sm:$0xf] %v4459
      %4492 = vst [vmem:[%s177 + $0x20] sm:$0xf] %v4460
      %4493 = vst [vmem:[%s177 + $0x24] sm:$0xf] %v4461
      %4494 = vst [vmem:[%s177 + $0x28] sm:$0xf] %v4462
      %4495 = vst [vmem:[%s177 + $0x2c] sm:$0xf] %v4463
      %4496 = vst [vmem:[%s177 + $0x30] sm:$0xf] %v4464
      %4497 = vst [vmem:[%s177 + $0x34] sm:$0xf] %v4465
      %4498 = vst [vmem:[%s177 + $0x38] sm:$0xf] %v4466
      %4499 = vst [vmem:[%s177 + $0x3c] sm:$0xf] %v4467
      %4500 = vst [vmem:[%s177 + $0x40] sm:$0xf] %v4468
      %4501 = vst [vmem:[%s177 + $0x44] sm:$0xf] %v4469
      %4502 = vst [vmem:[%s177 + $0x48] sm:$0xf] %v4470
      %4503 = vst [vmem:[%s177 + $0x4c] sm:$0xf] %v4471
      %4504 = vst [vmem:[%s177 + $0x50] sm:$0xf] %v4472
      %4505 = vst [vmem:[%s177 + $0x54] sm:$0xf] %v4473
      %4506 = vst [vmem:[%s177 + $0x58] sm:$0xf] %v4474
      %4507 = vst [vmem:[%s177 + $0x5c] sm:$0xf] %v4475
      %4508 = vst [vmem:[%s177 + $0x60] sm:$0xf] %v4476
      %4509 = vst [vmem:[%s177 + $0x64] sm:$0xf] %v4477
      %4510 = vst [vmem:[%s177 + $0x68] sm:$0xf] %v4478
      %4511 = vst [vmem:[%s177 + $0x6c] sm:$0xf] %v4479
      %4512 = vst [vmem:[%s177 + $0x70] sm:$0xf] %v4480
      %4513 = vst [vmem:[%s177 + $0x74] sm:$0xf] %v4481
      %4514 = vst [vmem:[%s177 + $0x78] sm:$0xf] %v4482
      %4515 = vst [vmem:[%s177 + $0x7c] sm:$0xf] %v4483
      %p4516 = scmp.lt.s32.totalorder %s15, 1
      %s4517 = scalar_select %p4516, %s15, 1
      %s4518 = smul.addr %s4517, 32
      %s4519 = smul.addr %s4518, 4
      %s4520 = scalar_lea.vmem %s2, %s4519
      %p4521 = scmp.lt.s32.totalorder %s15, 1
      %s4522 = scalar_select %p4521, %s15, 1
      %s4523 = smul.addr %s4522, 2
      %s4524 = scalar_lea.vmem %s3, %s4523
      // Predicated region
      $region29: #{residual_block_forward.4} parent=27 // pred_check
        %p4525 = pneg %p80
      $region30: #{residual_block_forward.4} parent=27 // pred_check_branch
        %4527 = sbr.rel (%p4525) target = $region32
      $region31: #{residual_block_forward.4} parent=27 // pred_region
        _
      $region32: #{residual_block_forward.4} parent=27 // pred_fallthru
        _
      // Predicated region
      $region33: #{residual_block_forward.4} parent=27 // pred_check
        %p4528 = pneg %p106
      $region34: #{residual_block_forward.4} parent=27 // pred_check_branch
        %4530 = sbr.rel (%p4528) target = $region36
      $region35: #{residual_block_forward.4} parent=27 // pred_region
        _
      $region36: #{residual_block_forward.4} parent=27 // pred_fallthru
        _
    $region28: #{residual_block_forward.4} parent=5 // pred_fallthru
      _
    %p4531 = scmp.le.s32.totalorder 2, %s10
    // Predicated region
    $region37: #{residual_block_forward.4} parent=5 // pred_check
      %p4532 = pneg %p4531
    $region38: #{residual_block_forward.4} parent=5 // pred_check_branch
      %4534 = sbr.rel (%p4532) target = $region40
    $region39: #{residual_block_forward.4} parent=5 // pred_region
      %s4535 = ssub.s32 %s10, 2
      // Predicated region
      $region41: #{residual_block_forward.4} parent=39 // pred_check
        %p4536 = pneg %p86
      $region42: #{residual_block_forward.4} parent=39 // pred_check_branch
        %4538 = sbr.rel (%p4536) target = $region44
      $region43: #{residual_block_forward.4} parent=39 // pred_region
        %p4539 = scmp.lt.s32.totalorder %s16, 1
        %s4540 = scalar_select %p4539, %s16, 1
        %s4541 = smul.addr %s4540, 32
        %s4542 = smul.addr %s4541, 4
        %s4543 = scalar_lea.vmem %s2, %s4542
      $region44: #{residual_block_forward.4} parent=39 // pred_fallthru
        _
      // Predicated region
      $region45: #{residual_block_forward.4} parent=39 // pred_check
        %p4544 = pneg %p112
      $region46: #{residual_block_forward.4} parent=39 // pred_check_branch
        %4546 = sbr.rel (%p4544) target = $region48
      $region47: #{residual_block_forward.4} parent=39 // pred_region
        %p4547 = scmp.lt.s32.totalorder %s16, 1
        %s4548 = scalar_select %p4547, %s16, 1
        %s4549 = smul.addr %s4548, 2
        %s4550 = scalar_lea.vmem %s3, %s4549
      $region48: #{residual_block_forward.4} parent=39 // pred_fallthru
        _
    $region40: #{residual_block_forward.4} parent=5 // pred_fallthru
      _
  $region6: #{residual_block_forward.4} parent=0 // loop_footer
    %s14 = sadd.s32 1, %s10
  $region7: #{residual_block_forward.4} parent=0 // loop_footer_branch
    %9 = sbr.rel target = $region3
  $region8: #{residual_block_forward.4} parent=0 // loop_exit
    _

</llo_original>
